<compile_context>
chip_gen: v5e
topology: v5e:2x2
jax: 0.10.0
libtpu: 0.0.40
codegen_flags: <defaults>
</compile_context>

<pallas_src>
import functools

import jax
import jax.numpy as jnp
import numpy as np
from jax.experimental import pallas as pl
from jax.experimental.pallas import tpu as pltpu


def _attention_kernel(x_ref, wq_ref, wk_ref, wv_ref, wo_ref, bo_ref, o_ref,
                      *, heads, scale):
    # x_ref:  (1, N, dim)      activation tile for one batch element
    # w{q,k,v}_ref: (H, dim, d)   per-head projection weights (x @ W orientation)
    # wo_ref: (H, d, dim)      per-head output-projection weights
    # bo_ref: (1, dim)         output-projection bias
    x = x_ref[0]                                                    # (N, dim) f32
    acc = jnp.zeros((x.shape[0], o_ref.shape[-1]), jnp.float32)     # (N, dim)

    for h in range(heads):                       # static unroll, heads is small
        qh = jnp.dot(x, wq_ref[h], preferred_element_type=jnp.float32) * scale
        kh = jnp.dot(x, wk_ref[h], preferred_element_type=jnp.float32)
        vh = jnp.dot(x, wv_ref[h], preferred_element_type=jnp.float32)
        # scores: contract over the head dim without an explicit transpose
        dots = jnp.einsum("qd,kd->qk", qh, kh,
                          preferred_element_type=jnp.float32)       # (N, N)
        attn = jax.nn.softmax(dots, axis=-1)                        # stable softmax
        out_h = jnp.dot(attn, vh, preferred_element_type=jnp.float32)  # (N, d)
        # fold the per-head slice of the output projection into the accumulator
        acc = acc + jnp.dot(out_h, wo_ref[h], preferred_element_type=jnp.float32)

    o_ref[0] = (acc + bo_ref[...]).astype(o_ref.dtype)              # single lane-dense store


def attention_pallas(x, wq, wk, wv, wo, bo, *, scale):
    """x: [B, N, dim] f32; wq/wk/wv: [H, dim, d]; wo: [H, d, dim]; bo: [1, dim]."""
    B, N, dim = x.shape
    H, _, d = wq.shape
    assert N % 8 == 0 and dim % 128 == 0, "demo expects (8,128)-aligned seq/dim"

    kernel = functools.partial(_attention_kernel, heads=H, scale=scale)

    return pl.pallas_call(
        kernel,
        out_shape=jax.ShapeDtypeStruct((B, N, dim), x.dtype),
        grid_spec=pltpu.PrefetchScalarGridSpec(
            num_scalar_prefetch=0,
            grid=(B,),
            in_specs=[
                pl.BlockSpec((1, N, dim), lambda b: (b, 0, 0)),   # x tile
                pl.BlockSpec((H, dim, d), lambda b: (0, 0, 0)),   # Wq (VMEM-resident)
                pl.BlockSpec((H, dim, d), lambda b: (0, 0, 0)),   # Wk
                pl.BlockSpec((H, dim, d), lambda b: (0, 0, 0)),   # Wv
                pl.BlockSpec((H, d, dim), lambda b: (0, 0, 0)),   # Wo
                pl.BlockSpec((1, dim), lambda b: (0, 0)),         # bo
            ],
            out_specs=pl.BlockSpec((1, N, dim), lambda b: (b, 0, 0)),
        ),
        compiler_params=pltpu.CompilerParams(
            dimension_semantics=("parallel",),   # batch axis -> megacore split on v7x
        ),
    )(x, wq, wk, wv, wo, bo)


if __name__ == "__main__":
    # Small, lane-aligned shapes consistent with the module.
    B, N, dim = 2, 128, 128
    heads, dim_head = 4, 32
    scale = dim_head ** (-0.5)

    key = jax.random.PRNGKey(0)
    kx, kq, kk, kv, ko, kb = jax.random.split(key, 6)

    x = jax.random.normal(kx, (B, N, dim), dtype=jnp.float32)
    # to_qkv (Linear, bias=False): per-head weight slabs in `x @ W` orientation.
    wq = 0.05 * jax.random.normal(kq, (heads, dim, dim_head), dtype=jnp.float32)
    wk = 0.05 * jax.random.normal(kk, (heads, dim, dim_head), dtype=jnp.float32)
    wv = 0.05 * jax.random.normal(kv, (heads, dim, dim_head), dtype=jnp.float32)
    # to_out = Linear(inner_dim, dim) + Dropout(0.0); bias included, dropout omitted.
    wo = 0.05 * jax.random.normal(ko, (heads, dim_head, dim), dtype=jnp.float32)
    bo = 0.05 * jax.random.normal(kb, (1, dim), dtype=jnp.float32)

    out = attention_pallas(x, wq, wk, wv, wo, bo, scale=scale)
    out = jax.block_until_ready(out)

    # Pure-JAX reference (silent sanity check).
    q = jnp.einsum("bnc,hcd->bhnd", x, wq) * scale
    k = jnp.einsum("bnc,hcd->bhnd", x, wk)
    v = jnp.einsum("bnc,hcd->bhnd", x, wv)
    dots = jnp.einsum("bhqd,bhkd->bhqk", q, k)
    attn = jax.nn.softmax(dots, axis=-1)
    o = jnp.einsum("bhqk,bhkd->bhqd", attn, v)
    ref = jnp.einsum("bhnd,hdc->bnc", o, wo) + bo
    np.testing.assert_allclose(np.asarray(out), np.asarray(ref), rtol=2e-5, atol=2e-5)

    print("KERNEL_OK")
</pallas_src>

<mosaic_0001>
module attributes {stable_mosaic.version = 11 : i64} {
  func.func @_attention_kernel(%arg0: i32, %arg1: memref<1x128x128xf32, #tpu.memory_space<vmem>>, %arg2: memref<4x128x32xf32, #tpu.memory_space<vmem>>, %arg3: memref<4x128x32xf32, #tpu.memory_space<vmem>>, %arg4: memref<4x128x32xf32, #tpu.memory_space<vmem>>, %arg5: memref<4x32x128xf32, #tpu.memory_space<vmem>>, %arg6: memref<1x128xf32, #tpu.memory_space<vmem>>, %arg7: memref<1x128x128xf32, #tpu.memory_space<vmem>>) attributes {dimension_semantics = [#tpu.dimension_semantics<parallel>], iteration_bounds = array<i64: 2>, scalar_prefetch = 0 : i64, scratch_operands = 0 : i64, tpu.core_type = #tpu.core_type<tc>, window_params = [{transform_indices = @transform_0, window_bounds = array<i64: 1, 128, 128>}, {pipeline_mode = #tpu.pipeline_mode<synchronous>, transform_indices = @transform_1, window_bounds = array<i64: 4, 128, 32>}, {pipeline_mode = #tpu.pipeline_mode<synchronous>, transform_indices = @transform_2, window_bounds = array<i64: 4, 128, 32>}, {pipeline_mode = #tpu.pipeline_mode<synchronous>, transform_indices = @transform_3, window_bounds = array<i64: 4, 128, 32>}, {pipeline_mode = #tpu.pipeline_mode<synchronous>, transform_indices = @transform_4, window_bounds = array<i64: 4, 32, 128>}, {pipeline_mode = #tpu.pipeline_mode<synchronous>, transform_indices = @transform_5, window_bounds = array<i64: 1, 128>}, {transform_indices = @transform_6, window_bounds = array<i64: 1, 128, 128>}]} {
    %c0 = arith.constant 0 : index
    %c0_0 = arith.constant 0 : index
    %c0_1 = arith.constant 0 : index
    %0 = vector.load %arg1[%c0, %c0_0, %c0_1] : memref<1x128x128xf32, #tpu.memory_space<vmem>>, vector<1x128x128xf32>
    %1 = vector.shape_cast %0 : vector<1x128x128xf32> to vector<128x128xf32>
    %cst = arith.constant 0.000000e+00 : f32
    %2 = vector.broadcast %cst : f32 to vector<128x128xf32>
    %c0_2 = arith.constant 0 : index
    %c0_3 = arith.constant 0 : index
    %c0_4 = arith.constant 0 : index
    %3 = vector.load %arg2[%c0_2, %c0_3, %c0_4] : memref<4x128x32xf32, #tpu.memory_space<vmem>>, vector<1x128x32xf32>
    %4 = vector.shape_cast %3 : vector<1x128x32xf32> to vector<128x32xf32>
    %cst_5 = arith.constant dense<0.000000e+00> : vector<128x32xf32>
    %5 = tpu.matmul %1, %4, %cst_5 {dimension_numbers = #tpu.dot_dimension_numbers<[1], [0], [0], [1], [0, 0, 1, 1], [], []>} : vector<128x128xf32>, vector<128x32xf32>, vector<128x32xf32> -> vector<128x32xf32>
    %cst_6 = arith.constant 0.176776692 : f32
    %6 = vector.broadcast %cst_6 : f32 to vector<128x32xf32>
    %7 = arith.mulf %5, %6 : vector<128x32xf32>
    %c0_7 = arith.constant 0 : index
    %c0_8 = arith.constant 0 : index
    %c0_9 = arith.constant 0 : index
    %8 = vector.load %arg3[%c0_7, %c0_8, %c0_9] : memref<4x128x32xf32, #tpu.memory_space<vmem>>, vector<1x128x32xf32>
    %9 = vector.shape_cast %8 : vector<1x128x32xf32> to vector<128x32xf32>
    %cst_10 = arith.constant dense<0.000000e+00> : vector<128x32xf32>
    %10 = tpu.matmul %1, %9, %cst_10 {dimension_numbers = #tpu.dot_dimension_numbers<[1], [0], [0], [1], [0, 0, 1, 1], [], []>} : vector<128x128xf32>, vector<128x32xf32>, vector<128x32xf32> -> vector<128x32xf32>
    %c0_11 = arith.constant 0 : index
    %c0_12 = arith.constant 0 : index
    %c0_13 = arith.constant 0 : index
    %11 = vector.load %arg4[%c0_11, %c0_12, %c0_13] : memref<4x128x32xf32, #tpu.memory_space<vmem>>, vector<1x128x32xf32>
    %12 = vector.shape_cast %11 : vector<1x128x32xf32> to vector<128x32xf32>
    %cst_14 = arith.constant dense<0.000000e+00> : vector<128x32xf32>
    %13 = tpu.matmul %1, %12, %cst_14 {dimension_numbers = #tpu.dot_dimension_numbers<[1], [0], [0], [1], [0, 0, 1, 1], [], []>} : vector<128x128xf32>, vector<128x32xf32>, vector<128x32xf32> -> vector<128x32xf32>
    "tpu.trace_start"() <{level = 10 : i32, message = "qd,kd->qk"}> : () -> ()
    %cst_15 = arith.constant dense<0.000000e+00> : vector<128x128xf32>
    %14 = tpu.matmul %7, %10, %cst_15 {dimension_numbers = #tpu.dot_dimension_numbers<[1], [1], [0], [0], [0, 0, 1, 0], [], []>} : vector<128x32xf32>, vector<128x32xf32>, vector<128x128xf32> -> vector<128x128xf32>
    "tpu.trace_stop"() : () -> ()
    %cst_16 = arith.constant dense<0xFF800000> : vector<128xf32>
    %15 = vector.multi_reduction <maximumf>, %14, %cst_16 [1] : vector<128x128xf32> to vector<128xf32>
    %cst_17 = arith.constant 0xFF800000 : f32
    %16 = vector.broadcast %cst_17 : f32 to vector<128xf32>
    %17 = arith.maximumf %16, %15 : vector<128xf32>
    %18 = vector.shape_cast %17 : vector<128xf32> to vector<128x1xf32>
    %19 = vector.broadcast %18 : vector<128x1xf32> to vector<128x128xf32>
    %20 = arith.subf %14, %19 : vector<128x128xf32>
    %21 = math.exp %20 : vector<128x128xf32>
    %cst_18 = arith.constant dense<0.000000e+00> : vector<128xf32>
    %22 = vector.multi_reduction <add>, %21, %cst_18 [1] : vector<128x128xf32> to vector<128xf32>
    %23 = vector.shape_cast %22 : vector<128xf32> to vector<128x1xf32>
    %24 = vector.broadcast %23 : vector<128x1xf32> to vector<128x128xf32>
    %25 = arith.divf %21, %24 : vector<128x128xf32>
    %cst_19 = arith.constant dense<0.000000e+00> : vector<128x32xf32>
    %26 = tpu.matmul %25, %13, %cst_19 {dimension_numbers = #tpu.dot_dimension_numbers<[1], [0], [0], [1], [0, 0, 1, 1], [], []>} : vector<128x128xf32>, vector<128x32xf32>, vector<128x32xf32> -> vector<128x32xf32>
    %c0_20 = arith.constant 0 : index
    %c0_21 = arith.constant 0 : index
    %c0_22 = arith.constant 0 : index
    %27 = vector.load %arg5[%c0_20, %c0_21, %c0_22] : memref<4x32x128xf32, #tpu.memory_space<vmem>>, vector<1x32x128xf32>
    %28 = vector.shape_cast %27 : vector<1x32x128xf32> to vector<32x128xf32>
    %cst_23 = arith.constant dense<0.000000e+00> : vector<128x128xf32>
    %29 = tpu.matmul %26, %28, %cst_23 {dimension_numbers = #tpu.dot_dimension_numbers<[1], [0], [0], [1], [0, 0, 1, 1], [], []>} : vector<128x32xf32>, vector<32x128xf32>, vector<128x128xf32> -> vector<128x128xf32>
    %30 = arith.addf %2, %29 : vector<128x128xf32>
    %c1 = arith.constant 1 : index
    %c0_24 = arith.constant 0 : index
    %c0_25 = arith.constant 0 : index
    %31 = vector.load %arg2[%c1, %c0_24, %c0_25] : memref<4x128x32xf32, #tpu.memory_space<vmem>>, vector<1x128x32xf32>
    %32 = vector.shape_cast %31 : vector<1x128x32xf32> to vector<128x32xf32>
    %cst_26 = arith.constant dense<0.000000e+00> : vector<128x32xf32>
    %33 = tpu.matmul %1, %32, %cst_26 {dimension_numbers = #tpu.dot_dimension_numbers<[1], [0], [0], [1], [0, 0, 1, 1], [], []>} : vector<128x128xf32>, vector<128x32xf32>, vector<128x32xf32> -> vector<128x32xf32>
    %cst_27 = arith.constant 0.176776692 : f32
    %34 = vector.broadcast %cst_27 : f32 to vector<128x32xf32>
    %35 = arith.mulf %33, %34 : vector<128x32xf32>
    %c1_28 = arith.constant 1 : index
    %c0_29 = arith.constant 0 : index
    %c0_30 = arith.constant 0 : index
    %36 = vector.load %arg3[%c1_28, %c0_29, %c0_30] : memref<4x128x32xf32, #tpu.memory_space<vmem>>, vector<1x128x32xf32>
    %37 = vector.shape_cast %36 : vector<1x128x32xf32> to vector<128x32xf32>
    %cst_31 = arith.constant dense<0.000000e+00> : vector<128x32xf32>
    %38 = tpu.matmul %1, %37, %cst_31 {dimension_numbers = #tpu.dot_dimension_numbers<[1], [0], [0], [1], [0, 0, 1, 1], [], []>} : vector<128x128xf32>, vector<128x32xf32>, vector<128x32xf32> -> vector<128x32xf32>
    %c1_32 = arith.constant 1 : index
    %c0_33 = arith.constant 0 : index
    %c0_34 = arith.constant 0 : index
    %39 = vector.load %arg4[%c1_32, %c0_33, %c0_34] : memref<4x128x32xf32, #tpu.memory_space<vmem>>, vector<1x128x32xf32>
    %40 = vector.shape_cast %39 : vector<1x128x32xf32> to vector<128x32xf32>
    %cst_35 = arith.constant dense<0.000000e+00> : vector<128x32xf32>
    %41 = tpu.matmul %1, %40, %cst_35 {dimension_numbers = #tpu.dot_dimension_numbers<[1], [0], [0], [1], [0, 0, 1, 1], [], []>} : vector<128x128xf32>, vector<128x32xf32>, vector<128x32xf32> -> vector<128x32xf32>
    "tpu.trace_start"() <{level = 10 : i32, message = "qd,kd->qk"}> : () -> ()
    %cst_36 = arith.constant dense<0.000000e+00> : vector<128x128xf32>
    %42 = tpu.matmul %35, %38, %cst_36 {dimension_numbers = #tpu.dot_dimension_numbers<[1], [1], [0], [0], [0, 0, 1, 0], [], []>} : vector<128x32xf32>, vector<128x32xf32>, vector<128x128xf32> -> vector<128x128xf32>
    "tpu.trace_stop"() : () -> ()
    %cst_37 = arith.constant dense<0xFF800000> : vector<128xf32>
    %43 = vector.multi_reduction <maximumf>, %42, %cst_37 [1] : vector<128x128xf32> to vector<128xf32>
    %cst_38 = arith.constant 0xFF800000 : f32
    %44 = vector.broadcast %cst_38 : f32 to vector<128xf32>
    %45 = arith.maximumf %44, %43 : vector<128xf32>
    %46 = vector.shape_cast %45 : vector<128xf32> to vector<128x1xf32>
    %47 = vector.broadcast %46 : vector<128x1xf32> to vector<128x128xf32>
    %48 = arith.subf %42, %47 : vector<128x128xf32>
    %49 = math.exp %48 : vector<128x128xf32>
    %cst_39 = arith.constant dense<0.000000e+00> : vector<128xf32>
    %50 = vector.multi_reduction <add>, %49, %cst_39 [1] : vector<128x128xf32> to vector<128xf32>
    %51 = vector.shape_cast %50 : vector<128xf32> to vector<128x1xf32>
    %52 = vector.broadcast %51 : vector<128x1xf32> to vector<128x128xf32>
    %53 = arith.divf %49, %52 : vector<128x128xf32>
    %cst_40 = arith.constant dense<0.000000e+00> : vector<128x32xf32>
    %54 = tpu.matmul %53, %41, %cst_40 {dimension_numbers = #tpu.dot_dimension_numbers<[1], [0], [0], [1], [0, 0, 1, 1], [], []>} : vector<128x128xf32>, vector<128x32xf32>, vector<128x32xf32> -> vector<128x32xf32>
    %c1_41 = arith.constant 1 : index
    %c0_42 = arith.constant 0 : index
    %c0_43 = arith.constant 0 : index
    %55 = vector.load %arg5[%c1_41, %c0_42, %c0_43] : memref<4x32x128xf32, #tpu.memory_space<vmem>>, vector<1x32x128xf32>
    %56 = vector.shape_cast %55 : vector<1x32x128xf32> to vector<32x128xf32>
    %cst_44 = arith.constant dense<0.000000e+00> : vector<128x128xf32>
    %57 = tpu.matmul %54, %56, %cst_44 {dimension_numbers = #tpu.dot_dimension_numbers<[1], [0], [0], [1], [0, 0, 1, 1], [], []>} : vector<128x32xf32>, vector<32x128xf32>, vector<128x128xf32> -> vector<128x128xf32>
    %58 = arith.addf %30, %57 : vector<128x128xf32>
    %c2 = arith.constant 2 : index
    %c0_45 = arith.constant 0 : index
    %c0_46 = arith.constant 0 : index
    %59 = vector.load %arg2[%c2, %c0_45, %c0_46] : memref<4x128x32xf32, #tpu.memory_space<vmem>>, vector<1x128x32xf32>
    %60 = vector.shape_cast %59 : vector<1x128x32xf32> to vector<128x32xf32>
    %cst_47 = arith.constant dense<0.000000e+00> : vector<128x32xf32>
    %61 = tpu.matmul %1, %60, %cst_47 {dimension_numbers = #tpu.dot_dimension_numbers<[1], [0], [0], [1], [0, 0, 1, 1], [], []>} : vector<128x128xf32>, vector<128x32xf32>, vector<128x32xf32> -> vector<128x32xf32>
    %cst_48 = arith.constant 0.176776692 : f32
    %62 = vector.broadcast %cst_48 : f32 to vector<128x32xf32>
    %63 = arith.mulf %61, %62 : vector<128x32xf32>
    %c2_49 = arith.constant 2 : index
    %c0_50 = arith.constant 0 : index
    %c0_51 = arith.constant 0 : index
    %64 = vector.load %arg3[%c2_49, %c0_50, %c0_51] : memref<4x128x32xf32, #tpu.memory_space<vmem>>, vector<1x128x32xf32>
    %65 = vector.shape_cast %64 : vector<1x128x32xf32> to vector<128x32xf32>
    %cst_52 = arith.constant dense<0.000000e+00> : vector<128x32xf32>
    %66 = tpu.matmul %1, %65, %cst_52 {dimension_numbers = #tpu.dot_dimension_numbers<[1], [0], [0], [1], [0, 0, 1, 1], [], []>} : vector<128x128xf32>, vector<128x32xf32>, vector<128x32xf32> -> vector<128x32xf32>
    %c2_53 = arith.constant 2 : index
    %c0_54 = arith.constant 0 : index
    %c0_55 = arith.constant 0 : index
    %67 = vector.load %arg4[%c2_53, %c0_54, %c0_55] : memref<4x128x32xf32, #tpu.memory_space<vmem>>, vector<1x128x32xf32>
    %68 = vector.shape_cast %67 : vector<1x128x32xf32> to vector<128x32xf32>
    %cst_56 = arith.constant dense<0.000000e+00> : vector<128x32xf32>
    %69 = tpu.matmul %1, %68, %cst_56 {dimension_numbers = #tpu.dot_dimension_numbers<[1], [0], [0], [1], [0, 0, 1, 1], [], []>} : vector<128x128xf32>, vector<128x32xf32>, vector<128x32xf32> -> vector<128x32xf32>
    "tpu.trace_start"() <{level = 10 : i32, message = "qd,kd->qk"}> : () -> ()
    %cst_57 = arith.constant dense<0.000000e+00> : vector<128x128xf32>
    %70 = tpu.matmul %63, %66, %cst_57 {dimension_numbers = #tpu.dot_dimension_numbers<[1], [1], [0], [0], [0, 0, 1, 0], [], []>} : vector<128x32xf32>, vector<128x32xf32>, vector<128x128xf32> -> vector<128x128xf32>
    "tpu.trace_stop"() : () -> ()
    %cst_58 = arith.constant dense<0xFF800000> : vector<128xf32>
    %71 = vector.multi_reduction <maximumf>, %70, %cst_58 [1] : vector<128x128xf32> to vector<128xf32>
    %cst_59 = arith.constant 0xFF800000 : f32
    %72 = vector.broadcast %cst_59 : f32 to vector<128xf32>
    %73 = arith.maximumf %72, %71 : vector<128xf32>
    %74 = vector.shape_cast %73 : vector<128xf32> to vector<128x1xf32>
    %75 = vector.broadcast %74 : vector<128x1xf32> to vector<128x128xf32>
    %76 = arith.subf %70, %75 : vector<128x128xf32>
    %77 = math.exp %76 : vector<128x128xf32>
    %cst_60 = arith.constant dense<0.000000e+00> : vector<128xf32>
    %78 = vector.multi_reduction <add>, %77, %cst_60 [1] : vector<128x128xf32> to vector<128xf32>
    %79 = vector.shape_cast %78 : vector<128xf32> to vector<128x1xf32>
    %80 = vector.broadcast %79 : vector<128x1xf32> to vector<128x128xf32>
    %81 = arith.divf %77, %80 : vector<128x128xf32>
    %cst_61 = arith.constant dense<0.000000e+00> : vector<128x32xf32>
    %82 = tpu.matmul %81, %69, %cst_61 {dimension_numbers = #tpu.dot_dimension_numbers<[1], [0], [0], [1], [0, 0, 1, 1], [], []>} : vector<128x128xf32>, vector<128x32xf32>, vector<128x32xf32> -> vector<128x32xf32>
    %c2_62 = arith.constant 2 : index
    %c0_63 = arith.constant 0 : index
    %c0_64 = arith.constant 0 : index
    %83 = vector.load %arg5[%c2_62, %c0_63, %c0_64] : memref<4x32x128xf32, #tpu.memory_space<vmem>>, vector<1x32x128xf32>
    %84 = vector.shape_cast %83 : vector<1x32x128xf32> to vector<32x128xf32>
    %cst_65 = arith.constant dense<0.000000e+00> : vector<128x128xf32>
    %85 = tpu.matmul %82, %84, %cst_65 {dimension_numbers = #tpu.dot_dimension_numbers<[1], [0], [0], [1], [0, 0, 1, 1], [], []>} : vector<128x32xf32>, vector<32x128xf32>, vector<128x128xf32> -> vector<128x128xf32>
    %86 = arith.addf %58, %85 : vector<128x128xf32>
    %c3 = arith.constant 3 : index
    %c0_66 = arith.constant 0 : index
    %c0_67 = arith.constant 0 : index
    %87 = vector.load %arg2[%c3, %c0_66, %c0_67] : memref<4x128x32xf32, #tpu.memory_space<vmem>>, vector<1x128x32xf32>
    %88 = vector.shape_cast %87 : vector<1x128x32xf32> to vector<128x32xf32>
    %cst_68 = arith.constant dense<0.000000e+00> : vector<128x32xf32>
    %89 = tpu.matmul %1, %88, %cst_68 {dimension_numbers = #tpu.dot_dimension_numbers<[1], [0], [0], [1], [0, 0, 1, 1], [], []>} : vector<128x128xf32>, vector<128x32xf32>, vector<128x32xf32> -> vector<128x32xf32>
    %cst_69 = arith.constant 0.176776692 : f32
    %90 = vector.broadcast %cst_69 : f32 to vector<128x32xf32>
    %91 = arith.mulf %89, %90 : vector<128x32xf32>
    %c3_70 = arith.constant 3 : index
    %c0_71 = arith.constant 0 : index
    %c0_72 = arith.constant 0 : index
    %92 = vector.load %arg3[%c3_70, %c0_71, %c0_72] : memref<4x128x32xf32, #tpu.memory_space<vmem>>, vector<1x128x32xf32>
    %93 = vector.shape_cast %92 : vector<1x128x32xf32> to vector<128x32xf32>
    %cst_73 = arith.constant dense<0.000000e+00> : vector<128x32xf32>
    %94 = tpu.matmul %1, %93, %cst_73 {dimension_numbers = #tpu.dot_dimension_numbers<[1], [0], [0], [1], [0, 0, 1, 1], [], []>} : vector<128x128xf32>, vector<128x32xf32>, vector<128x32xf32> -> vector<128x32xf32>
    %c3_74 = arith.constant 3 : index
    %c0_75 = arith.constant 0 : index
    %c0_76 = arith.constant 0 : index
    %95 = vector.load %arg4[%c3_74, %c0_75, %c0_76] : memref<4x128x32xf32, #tpu.memory_space<vmem>>, vector<1x128x32xf32>
    %96 = vector.shape_cast %95 : vector<1x128x32xf32> to vector<128x32xf32>
    %cst_77 = arith.constant dense<0.000000e+00> : vector<128x32xf32>
    %97 = tpu.matmul %1, %96, %cst_77 {dimension_numbers = #tpu.dot_dimension_numbers<[1], [0], [0], [1], [0, 0, 1, 1], [], []>} : vector<128x128xf32>, vector<128x32xf32>, vector<128x32xf32> -> vector<128x32xf32>
    "tpu.trace_start"() <{level = 10 : i32, message = "qd,kd->qk"}> : () -> ()
    %cst_78 = arith.constant dense<0.000000e+00> : vector<128x128xf32>
    %98 = tpu.matmul %91, %94, %cst_78 {dimension_numbers = #tpu.dot_dimension_numbers<[1], [1], [0], [0], [0, 0, 1, 0], [], []>} : vector<128x32xf32>, vector<128x32xf32>, vector<128x128xf32> -> vector<128x128xf32>
    "tpu.trace_stop"() : () -> ()
    %cst_79 = arith.constant dense<0xFF800000> : vector<128xf32>
    %99 = vector.multi_reduction <maximumf>, %98, %cst_79 [1] : vector<128x128xf32> to vector<128xf32>
    %cst_80 = arith.constant 0xFF800000 : f32
    %100 = vector.broadcast %cst_80 : f32 to vector<128xf32>
    %101 = arith.maximumf %100, %99 : vector<128xf32>
    %102 = vector.shape_cast %101 : vector<128xf32> to vector<128x1xf32>
    %103 = vector.broadcast %102 : vector<128x1xf32> to vector<128x128xf32>
    %104 = arith.subf %98, %103 : vector<128x128xf32>
    %105 = math.exp %104 : vector<128x128xf32>
    %cst_81 = arith.constant dense<0.000000e+00> : vector<128xf32>
    %106 = vector.multi_reduction <add>, %105, %cst_81 [1] : vector<128x128xf32> to vector<128xf32>
    %107 = vector.shape_cast %106 : vector<128xf32> to vector<128x1xf32>
    %108 = vector.broadcast %107 : vector<128x1xf32> to vector<128x128xf32>
    %109 = arith.divf %105, %108 : vector<128x128xf32>
    %cst_82 = arith.constant dense<0.000000e+00> : vector<128x32xf32>
    %110 = tpu.matmul %109, %97, %cst_82 {dimension_numbers = #tpu.dot_dimension_numbers<[1], [0], [0], [1], [0, 0, 1, 1], [], []>} : vector<128x128xf32>, vector<128x32xf32>, vector<128x32xf32> -> vector<128x32xf32>
    %c3_83 = arith.constant 3 : index
    %c0_84 = arith.constant 0 : index
    %c0_85 = arith.constant 0 : index
    %111 = vector.load %arg5[%c3_83, %c0_84, %c0_85] : memref<4x32x128xf32, #tpu.memory_space<vmem>>, vector<1x32x128xf32>
    %112 = vector.shape_cast %111 : vector<1x32x128xf32> to vector<32x128xf32>
    %cst_86 = arith.constant dense<0.000000e+00> : vector<128x128xf32>
    %113 = tpu.matmul %110, %112, %cst_86 {dimension_numbers = #tpu.dot_dimension_numbers<[1], [0], [0], [1], [0, 0, 1, 1], [], []>} : vector<128x32xf32>, vector<32x128xf32>, vector<128x128xf32> -> vector<128x128xf32>
    %114 = arith.addf %86, %113 : vector<128x128xf32>
    %c0_87 = arith.constant 0 : index
    %c0_88 = arith.constant 0 : index
    %115 = vector.load %arg6[%c0_87, %c0_88] : memref<1x128xf32, #tpu.memory_space<vmem>>, vector<1x128xf32>
    %116 = vector.broadcast %115 : vector<1x128xf32> to vector<128x128xf32>
    %117 = arith.addf %114, %116 : vector<128x128xf32>
    %c0_89 = arith.constant 0 : index
    %c0_90 = arith.constant 0 : index
    %c0_91 = arith.constant 0 : index
    %118 = vector.load %arg7[%c0_89, %c0_90, %c0_91] : memref<1x128x128xf32, #tpu.memory_space<vmem>>, vector<1x128x128xf32>
    %119 = vector.shape_cast %118 : vector<1x128x128xf32> to vector<128x128xf32>
    %120 = vector.shape_cast %117 : vector<128x128xf32> to vector<1x128x128xf32>
    tpu.vector_store %arg7[%c0_89, %c0_90, %c0_91], %120 {strides = array<i32>} : memref<1x128x128xf32, #tpu.memory_space<vmem>>, vector<1x128x128xf32>,
    return
  }
  func.func @transform_0(%arg0: i32) -> (i32, i32, i32) {
    %c0_i32 = arith.constant 0 : i32
    %c0_i32_0 = arith.constant 0 : i32
    %c0_i32_1 = arith.constant 0 : i32
    return %arg0, %c0_i32, %c0_i32_0 : i32, i32, i32
  }
  func.func @transform_1(%arg0: i32) -> (i32, i32, i32) {
    %c0_i32 = arith.constant 0 : i32
    %c0_i32_0 = arith.constant 0 : i32
    %c0_i32_1 = arith.constant 0 : i32
    %c0_i32_2 = arith.constant 0 : i32
    return %c0_i32, %c0_i32_0, %c0_i32_1 : i32, i32, i32
  }
  func.func @transform_2(%arg0: i32) -> (i32, i32, i32) {
    %c0_i32 = arith.constant 0 : i32
    %c0_i32_0 = arith.constant 0 : i32
    %c0_i32_1 = arith.constant 0 : i32
    %c0_i32_2 = arith.constant 0 : i32
    return %c0_i32, %c0_i32_0, %c0_i32_1 : i32, i32, i32
  }
  func.func @transform_3(%arg0: i32) -> (i32, i32, i32) {
    %c0_i32 = arith.constant 0 : i32
    %c0_i32_0 = arith.constant 0 : i32
    %c0_i32_1 = arith.constant 0 : i32
    %c0_i32_2 = arith.constant 0 : i32
    return %c0_i32, %c0_i32_0, %c0_i32_1 : i32, i32, i32
  }
  func.func @transform_4(%arg0: i32) -> (i32, i32, i32) {
    %c0_i32 = arith.constant 0 : i32
    %c0_i32_0 = arith.constant 0 : i32
    %c0_i32_1 = arith.constant 0 : i32
    %c0_i32_2 = arith.constant 0 : i32
    return %c0_i32, %c0_i32_0, %c0_i32_1 : i32, i32, i32
  }
  func.func @transform_5(%arg0: i32) -> (i32, i32) {
    %c0_i32 = arith.constant 0 : i32
    %c0_i32_0 = arith.constant 0 : i32
    %c0_i32_1 = arith.constant 0 : i32
    return %c0_i32, %c0_i32_0 : i32, i32
  }
  func.func @transform_6(%arg0: i32) -> (i32, i32, i32) {
    %c0_i32 = arith.constant 0 : i32
    %c0_i32_0 = arith.constant 0 : i32
    %c0_i32_1 = arith.constant 0 : i32
    return %arg0, %c0_i32, %c0_i32_0 : i32, i32, i32
  }
}

</mosaic_0001>

<llo_original>
// kernel: tpu_custom_call.1
$region0: #{tpu_custom_call.1}
  #allocation0 [shape = 'u32[]', space=smem, size = 0x4, offset = 0x4, fixed_abs, tag = 'smem constant byte address 0x4 - core index']
  #allocation1 [shape = 'u32[72,128]{1,0:T(1,128)}', space=vmem, size = 0x9000, scoped, tag = 'internal scratch']
  %s0 = inlined_call_operand.vmem [shape: f32[2,128,128], index: 0, kind: input, shape index: {}]
  %s1 = inlined_call_operand.vmem [shape: f32[4,128,32], index: 1, kind: input, shape index: {}]
  %s2 = inlined_call_operand.vmem [shape: f32[4,128,32], index: 2, kind: input, shape index: {}]
  %s3 = inlined_call_operand.vmem [shape: f32[4,128,32], index: 3, kind: input, shape index: {}]
  %s4 = inlined_call_operand.vmem [shape: f32[4,32,128], index: 4, kind: input, shape index: {}]
  %s5 = inlined_call_operand.vmem [shape: f32[1,128], index: 5, kind: input, shape index: {}]
  %s6 = inlined_call_operand.hbm [shape: f32[2,128,128], index: 6, kind: output, shape index: {}]
  %s7 = sld [smem:[#allocation0]]
  $region57: #{tpu_custom_call.1} parent=0
    _
  %s9 = ssub.s32 1, %s7
  %s10 = scalar_select 0, %s9, %s7
  $region1: #{tpu_custom_call.1} parent=0
    #allocation2 [shape = 'u8[131072]{0}', space=vmem, size = 0x20000, scoped, tag = 'output window, operand 0']
    #allocation3 [shape = 's32[2]{0}', space=sflag, size = 0x8, scoped, tag = 'scoped memory for tpu_custom_call.1']
    %11 = vsyncpa [#allocation3], 0
    %s12 = scalar_lea.sflag [#allocation3], 1
    %13 = vsyncpa %s12, 0
    loop: start=0, step=1, limit=4
    $region2: #{tpu_custom_call.1} parent=1 // loop_pre_header
      _
    $region3: #{tpu_custom_call.1} parent=1 // loop_header
      %s15 = sphi 0, %s19
      %p16 = scmp.ge.s32.totalorder %s15, 4
      %s25 = sphi 0, %s27
      %s28 = sphi 0, %s25
      %s29 = sphi 0, %s28
      %s45 = sphi 0, %s29
      %s49 = sphi 0, %s49
      %s51 = sphi 0, %s49
      %s52 = sphi 0, %s51
      %s66 = sphi 0, %s52
      %s70 = sphi 0, %s70
      %s72 = sphi 0, %s70
      %s73 = sphi 0, %s72
      %s87 = sphi 0, %s73
      %s91 = sphi 0, %s91
      %s93 = sphi 0, %s91
      %s94 = sphi 0, %s93
      %s108 = sphi 0, %s94
      %s112 = sphi 0, %s112
      %s114 = sphi 0, %s112
      %s115 = sphi 0, %s114
      %s129 = sphi 0, %s115
      %s133 = sphi 0, %s133
      %s135 = sphi 0, %s133
      %s136 = sphi 0, %s135
      %s150 = sphi 0, %s136
      %s156 = sphi 0, %s158
      %s159 = sphi 0, %s156
      %s160 = sphi 0, %s159
      %s176 = sphi 0, %s160
    $region4: #{tpu_custom_call.1} parent=1 // loop_header_branch
      %18 = sbr.rel (%p16) target = $region8
    $region5: #{tpu_custom_call.1} parent=1 // loop_body
      %s20 = ssub.s32 %s15, 1
      %s21 = ssub.s32 %s15, 2
      %s22 = sadd.s32 %s15, 1
      %s23 = ssub.s32 %s15, %s22
      %p24 = scmp.eq.s32.totalorder %s23, 0
      %s26 = sadd.s32 %s25, 1
      %s27 = scalar_select %p24, %s25, %s26
      %p30 = pneg %p24
      %p31 = scmp.eq.s32.totalorder %s15, 1
      %p32 = por %p30, %p31
      %p33 = scmp.ne.s32.totalorder %s25, %s28
      %p34 = scmp.eq.s32.totalorder %s15, 0
      %p35 = por %p33, %p34
      %p36 = scmp.ne.s32.totalorder %s25, %s28
      %p37 = scmp.eq.s32.totalorder %s20, 1
      %p38 = por %p36, %p37
      %p39 = scmp.ne.s32.totalorder %s28, %s29
      %p40 = scmp.eq.s32.totalorder %s20, 0
      %p41 = por %p39, %p40
      %p42 = scmp.ne.s32.totalorder %s28, %s29
      %p43 = scmp.eq.s32.totalorder %s21, 1
      %p44 = por %p42, %p43
      %p46 = scmp.ne.s32.totalorder %s29, %s45
      %p47 = scmp.eq.s32.totalorder %s21, 0
      %p48 = por %p46, %p47
      %s50 = sadd.s32 %s49, 1
      %p53 = scmp.eq.s32.totalorder %s15, 1
      %p54 = scmp.ne.s32.totalorder %s49, %s51
      %p55 = scmp.eq.s32.totalorder %s15, 0
      %p56 = por %p54, %p55
      %p57 = scmp.ne.s32.totalorder %s49, %s51
      %p58 = scmp.eq.s32.totalorder %s20, 1
      %p59 = por %p57, %p58
      %p60 = scmp.ne.s32.totalorder %s51, %s52
      %p61 = scmp.eq.s32.totalorder %s20, 0
      %p62 = por %p60, %p61
      %p63 = scmp.ne.s32.totalorder %s51, %s52
      %p64 = scmp.eq.s32.totalorder %s21, 1
      %p65 = por %p63, %p64
      %p67 = scmp.ne.s32.totalorder %s52, %s66
      %p68 = scmp.eq.s32.totalorder %s21, 0
      %p69 = por %p67, %p68
      %s71 = sadd.s32 %s70, 1
      %p74 = scmp.eq.s32.totalorder %s15, 1
      %p75 = scmp.ne.s32.totalorder %s70, %s72
      %p76 = scmp.eq.s32.totalorder %s15, 0
      %p77 = por %p75, %p76
      %p78 = scmp.ne.s32.totalorder %s70, %s72
      %p79 = scmp.eq.s32.totalorder %s20, 1
      %p80 = por %p78, %p79
      %p81 = scmp.ne.s32.totalorder %s72, %s73
      %p82 = scmp.eq.s32.totalorder %s20, 0
      %p83 = por %p81, %p82
      %p84 = scmp.ne.s32.totalorder %s72, %s73
      %p85 = scmp.eq.s32.totalorder %s21, 1
      %p86 = por %p84, %p85
      %p88 = scmp.ne.s32.totalorder %s73, %s87
      %p89 = scmp.eq.s32.totalorder %s21, 0
      %p90 = por %p88, %p89
      %s92 = sadd.s32 %s91, 1
      %p95 = scmp.eq.s32.totalorder %s15, 1
      %p96 = scmp.ne.s32.totalorder %s91, %s93
      %p97 = scmp.eq.s32.totalorder %s15, 0
      %p98 = por %p96, %p97
      %p99 = scmp.ne.s32.totalorder %s91, %s93
      %p100 = scmp.eq.s32.totalorder %s20, 1
      %p101 = por %p99, %p100
      %p102 = scmp.ne.s32.totalorder %s93, %s94
      %p103 = scmp.eq.s32.totalorder %s20, 0
      %p104 = por %p102, %p103
      %p105 = scmp.ne.s32.totalorder %s93, %s94
      %p106 = scmp.eq.s32.totalorder %s21, 1
      %p107 = por %p105, %p106
      %p109 = scmp.ne.s32.totalorder %s94, %s108
      %p110 = scmp.eq.s32.totalorder %s21, 0
      %p111 = por %p109, %p110
      %s113 = sadd.s32 %s112, 1
      %p116 = scmp.eq.s32.totalorder %s15, 1
      %p117 = scmp.ne.s32.totalorder %s112, %s114
      %p118 = scmp.eq.s32.totalorder %s15, 0
      %p119 = por %p117, %p118
      %p120 = scmp.ne.s32.totalorder %s112, %s114
      %p121 = scmp.eq.s32.totalorder %s20, 1
      %p122 = por %p120, %p121
      %p123 = scmp.ne.s32.totalorder %s114, %s115
      %p124 = scmp.eq.s32.totalorder %s20, 0
      %p125 = por %p123, %p124
      %p126 = scmp.ne.s32.totalorder %s114, %s115
      %p127 = scmp.eq.s32.totalorder %s21, 1
      %p128 = por %p126, %p127
      %p130 = scmp.ne.s32.totalorder %s115, %s129
      %p131 = scmp.eq.s32.totalorder %s21, 0
      %p132 = por %p130, %p131
      %s134 = sadd.s32 %s133, 1
      %p137 = scmp.eq.s32.totalorder %s15, 1
      %p138 = scmp.ne.s32.totalorder %s133, %s135
      %p139 = scmp.eq.s32.totalorder %s15, 0
      %p140 = por %p138, %p139
      %p141 = scmp.ne.s32.totalorder %s133, %s135
      %p142 = scmp.eq.s32.totalorder %s20, 1
      %p143 = por %p141, %p142
      %p144 = scmp.ne.s32.totalorder %s135, %s136
      %p145 = scmp.eq.s32.totalorder %s20, 0
      %p146 = por %p144, %p145
      %p147 = scmp.ne.s32.totalorder %s135, %s136
      %p148 = scmp.eq.s32.totalorder %s21, 1
      %p149 = por %p147, %p148
      %p151 = scmp.ne.s32.totalorder %s136, %s150
      %p152 = scmp.eq.s32.totalorder %s21, 0
      %p153 = por %p151, %p152
      %s154 = ssub.s32 %s15, %s22
      %p155 = scmp.eq.s32.totalorder %s154, 0
      %s157 = sadd.s32 %s156, 1
      %s158 = scalar_select %p155, %s156, %s157
      %p161 = pneg %p155
      %p162 = scmp.eq.s32.totalorder %s15, 1
      %p163 = por %p161, %p162
      %p164 = scmp.ne.s32.totalorder %s156, %s159
      %p165 = scmp.eq.s32.totalorder %s15, 0
      %p166 = por %p164, %p165
      %p167 = scmp.ne.s32.totalorder %s156, %s159
      %p168 = scmp.eq.s32.totalorder %s20, 1
      %p169 = por %p167, %p168
      %p170 = scmp.ne.s32.totalorder %s159, %s160
      %p171 = scmp.eq.s32.totalorder %s20, 0
      %p172 = por %p170, %p171
      %p173 = scmp.ne.s32.totalorder %s159, %s160
      %p174 = scmp.eq.s32.totalorder %s21, 1
      %p175 = por %p173, %p174
      %p177 = scmp.ne.s32.totalorder %s160, %s176
      %p178 = scmp.eq.s32.totalorder %s21, 0
      %p179 = por %p177, %p178
      %p180 = scmp.le.s32.totalorder 1, %s15
      %p181 = scmp.lt.s32.totalorder %s15, 3
      %p182 = pnand %p180, %p181
      %p183 = pneg %p182
      // Predicated region
      $region9: #{tpu_custom_call.1} parent=5 // pred_check
        _
      $region10: #{tpu_custom_call.1} parent=5 // pred_check_branch
        %185 = sbr.rel (%p182) target = $region12
      $region11: #{tpu_custom_call.1} parent=5 // pred_region
        %s186 = ssub.s32 %s15, 1
        // Predicated region
        $region13: #{tpu_custom_call.1} parent=11 // pred_check
          %p187 = pneg %p62
        $region14: #{tpu_custom_call.1} parent=11 // pred_check_branch
          %189 = sbr.rel (%p187) target = $region16
        $region15: #{tpu_custom_call.1} parent=11 // pred_region
          _
        $region16: #{tpu_custom_call.1} parent=11 // pred_fallthru
          _
        // Predicated region
        $region17: #{tpu_custom_call.1} parent=11 // pred_check
          %p190 = pneg %p83
        $region18: #{tpu_custom_call.1} parent=11 // pred_check_branch
          %192 = sbr.rel (%p190) target = $region20
        $region19: #{tpu_custom_call.1} parent=11 // pred_region
          _
        $region20: #{tpu_custom_call.1} parent=11 // pred_fallthru
          _
        // Predicated region
        $region21: #{tpu_custom_call.1} parent=11 // pred_check
          %p193 = pneg %p104
        $region22: #{tpu_custom_call.1} parent=11 // pred_check_branch
          %195 = sbr.rel (%p193) target = $region24
        $region23: #{tpu_custom_call.1} parent=11 // pred_region
          _
        $region24: #{tpu_custom_call.1} parent=11 // pred_fallthru
          _
        // Predicated region
        $region25: #{tpu_custom_call.1} parent=11 // pred_check
          %p196 = pneg %p125
        $region26: #{tpu_custom_call.1} parent=11 // pred_check_branch
          %198 = sbr.rel (%p196) target = $region28
        $region27: #{tpu_custom_call.1} parent=11 // pred_region
          _
        $region28: #{tpu_custom_call.1} parent=11 // pred_fallthru
          _
        // Predicated region
        $region29: #{tpu_custom_call.1} parent=11 // pred_check
          %p199 = pneg %p146
        $region30: #{tpu_custom_call.1} parent=11 // pred_check_branch
          %201 = sbr.rel (%p199) target = $region32
        $region31: #{tpu_custom_call.1} parent=11 // pred_region
          _
        $region32: #{tpu_custom_call.1} parent=11 // pred_fallthru
          _
      $region12: #{tpu_custom_call.1} parent=5 // pred_fallthru
        _
      %p202 = scmp.lt.s32.totalorder %s15, 2
      // Predicated region
      $region33: #{tpu_custom_call.1} parent=5 // pred_check
        %p203 = pneg %p202
      $region34: #{tpu_custom_call.1} parent=5 // pred_check_branch
        %205 = sbr.rel (%p203) target = $region36
      $region35: #{tpu_custom_call.1} parent=5 // pred_region
        // Predicated region
        $region37: #{tpu_custom_call.1} parent=35 // pred_check
          %p206 = pneg %p35
        $region38: #{tpu_custom_call.1} parent=35 // pred_check_branch
          %208 = sbr.rel (%p206) target = $region40
        $region39: #{tpu_custom_call.1} parent=35 // pred_region
          %p209 = scmp.lt.s32.totalorder %s15, 1
          %s210 = scalar_select %p209, %s15, 1
          %s211 = smul.addr %s210, 16
          %s212 = smul.addr %s211, 8
          %s213 = scalar_lea.vmem %s0, %s212
        $region40: #{tpu_custom_call.1} parent=35 // pred_fallthru
          _
      $region36: #{tpu_custom_call.1} parent=5 // pred_fallthru
        _
      %p214 = scmp.le.s32.totalorder 1, %s15
      %p215 = scmp.lt.s32.totalorder %s15, 3
      %p216 = pnand %p214, %p215
      %p217 = pneg %p216
      // Predicated region
      $region41: #{tpu_custom_call.1} parent=5 // pred_check
        _
      $region42: #{tpu_custom_call.1} parent=5 // pred_check_branch
        %219 = sbr.rel (%p216) target = $region44
      $region43: #{tpu_custom_call.1} parent=5 // pred_region
        %s220 = ssub.s32 %s15, 1
        %p221 = scmp.lt.s32.totalorder %s20, 1
        %s222 = scalar_select %p221, %s20, 1
        %s223 = smul.addr %s222, 16
        %s224 = smul.addr %s223, 8
        %s225 = scalar_lea.vmem %s0, %s224
        %p226 = pneg %p41
        %p227 = pneg %p38
        %p228 = pneg %p62
        %p229 = pneg %p59
        %p230 = pneg %p83
        %p231 = pneg %p80
        %p232 = pneg %p104
        %p233 = pneg %p101
        %p234 = pneg %p125
        %p235 = pneg %p122
        %p236 = pneg %p146
        %p237 = pneg %p143
        %p238 = pneg %p172
        %p239 = pneg %p169
        %s240 = sand.u32 %s159, 1
        %s241 = scalar_lea.sflag [#allocation3], %s240
        %s242 = sand.u32 %s159, 1
        %s243 = smul.addr %s242, 128
        %s244 = scalar_lea.vmem [#allocation2], %s243
        %p245 = scmp.lt.s32.totalorder %s20, 1
        %s246 = scalar_select %p245, %s20, 1
        %s247 = smul.addr %s246, 16
        %s248 = smul.addr %s247, 8
        %s249 = scalar_lea.vmem %s0, %s248
        %v250 = vld [vmem:[%s249] sm:$0xff]
        %v251 = vld [vmem:[%s249 + $0x8] sm:$0xff]
        %v252 = vld [vmem:[%s249 + $0x10] sm:$0xff]
        %v253 = vld [vmem:[%s249 + $0x18] sm:$0xff]
        %v254 = vld [vmem:[%s249 + $0x20] sm:$0xff]
        %v255 = vld [vmem:[%s249 + $0x28] sm:$0xff]
        %v256 = vld [vmem:[%s249 + $0x30] sm:$0xff]
        %v257 = vld [vmem:[%s249 + $0x38] sm:$0xff]
        %v258 = vld [vmem:[%s249 + $0x40] sm:$0xff]
        %v259 = vld [vmem:[%s249 + $0x48] sm:$0xff]
        %v260 = vld [vmem:[%s249 + $0x50] sm:$0xff]
        %v261 = vld [vmem:[%s249 + $0x58] sm:$0xff]
        %v262 = vld [vmem:[%s249 + $0x60] sm:$0xff]
        %v263 = vld [vmem:[%s249 + $0x68] sm:$0xff]
        %v264 = vld [vmem:[%s249 + $0x70] sm:$0xff]
        %v265 = vld [vmem:[%s249 + $0x78] sm:$0xff]
        %v266 = vld [vmem:[%s1] sm:$0xff]
        %v267 = vld [vmem:[%s1 + $0x8] sm:$0xff]
        %v268 = vld [vmem:[%s1 + $0x10] sm:$0xff]
        %v269 = vld [vmem:[%s1 + $0x18] sm:$0xff]
        %v270 = vld [vmem:[%s1 + $0x20] sm:$0xff]
        %v271 = vld [vmem:[%s1 + $0x28] sm:$0xff]
        %v272 = vld [vmem:[%s1 + $0x30] sm:$0xff]
        %v273 = vld [vmem:[%s1 + $0x38] sm:$0xff]
        %v274 = vld [vmem:[%s1 + $0x40] sm:$0xff]
        %v275 = vld [vmem:[%s1 + $0x48] sm:$0xff]
        %v276 = vld [vmem:[%s1 + $0x50] sm:$0xff]
        %v277 = vld [vmem:[%s1 + $0x58] sm:$0xff]
        %v278 = vld [vmem:[%s1 + $0x60] sm:$0xff]
        %v279 = vld [vmem:[%s1 + $0x68] sm:$0xff]
        %v280 = vld [vmem:[%s1 + $0x70] sm:$0xff]
        %v281 = vld [vmem:[%s1 + $0x78] sm:$0xff]
        %282 = vmatpush.msra.mxu0 %v281
        %283 = vmatpush.msra.mxu0 %v280
        %284 = vmatpush.msra.mxu0 %v279
        %285 = vmatpush.msra.mxu0 %v278
        %286 = vmatpush.msra.mxu0 %v277
        %287 = vmatpush.msra.mxu0 %v276
        %288 = vmatpush.msra.mxu0 %v275
        %289 = vmatpush.msra.mxu0 %v274
        %290 = vmatpush.msra.mxu0 %v273
        %291 = vmatpush.msra.mxu0 %v272
        %292 = vmatpush.msra.mxu0 %v271
        %293 = vmatpush.msra.mxu0 %v270
        %294 = vmatpush.msra.mxu0 %v269
        %295 = vmatpush.msra.mxu0 %v268
        %296 = vmatpush.msra.mxu0 %v267
        %297 = vmatpush.msra.mxu0 %v266
        %298 = vmatmul.f32.gmra.mxu0 %v250
        %v299 = vpop.f32.mrf.mxu0
        %v300 = vadd.f32 0.0, %v299
        %301 = vmatmul.f32.gmra.mxu0 %v251
        %v302 = vpop.f32.mrf.mxu0
        %v303 = vadd.f32 0.0, %v302
        %304 = vmatmul.f32.gmra.mxu0 %v252
        %v305 = vpop.f32.mrf.mxu0
        %v306 = vadd.f32 0.0, %v305
        %307 = vmatmul.f32.gmra.mxu0 %v253
        %v308 = vpop.f32.mrf.mxu0
        %v309 = vadd.f32 0.0, %v308
        %310 = vmatmul.f32.gmra.mxu0 %v254
        %v311 = vpop.f32.mrf.mxu0
        %v312 = vadd.f32 0.0, %v311
        %313 = vmatmul.f32.gmra.mxu0 %v255
        %v314 = vpop.f32.mrf.mxu0
        %v315 = vadd.f32 0.0, %v314
        %316 = vmatmul.f32.gmra.mxu0 %v256
        %v317 = vpop.f32.mrf.mxu0
        %v318 = vadd.f32 0.0, %v317
        %319 = vmatmul.f32.gmra.mxu0 %v257
        %v320 = vpop.f32.mrf.mxu0
        %v321 = vadd.f32 0.0, %v320
        %322 = vmatmul.f32.gmra.mxu0 %v258
        %v323 = vpop.f32.mrf.mxu0
        %v324 = vadd.f32 0.0, %v323
        %325 = vmatmul.f32.gmra.mxu0 %v259
        %v326 = vpop.f32.mrf.mxu0
        %v327 = vadd.f32 0.0, %v326
        %328 = vmatmul.f32.gmra.mxu0 %v260
        %v329 = vpop.f32.mrf.mxu0
        %v330 = vadd.f32 0.0, %v329
        %331 = vmatmul.f32.gmra.mxu0 %v261
        %v332 = vpop.f32.mrf.mxu0
        %v333 = vadd.f32 0.0, %v332
        %334 = vmatmul.f32.gmra.mxu0 %v262
        %v335 = vpop.f32.mrf.mxu0
        %v336 = vadd.f32 0.0, %v335
        %337 = vmatmul.f32.gmra.mxu0 %v263
        %v338 = vpop.f32.mrf.mxu0
        %v339 = vadd.f32 0.0, %v338
        %340 = vmatmul.f32.gmra.mxu0 %v264
        %v341 = vpop.f32.mrf.mxu0
        %v342 = vadd.f32 0.0, %v341
        %343 = vmatmul.f32.gmra.mxu0 %v265
        %v344 = vpop.f32.mrf.mxu0
        %v345 = vadd.f32 0.0, %v344
        %346 = vdwg.mxu0
        %v347 = vmul.f32 %v300, 0.17677669
        %v348 = vmul.f32 %v303, 0.17677669
        %v349 = vmul.f32 %v306, 0.17677669
        %v350 = vmul.f32 %v309, 0.17677669
        %v351 = vmul.f32 %v312, 0.17677669
        %v352 = vmul.f32 %v315, 0.17677669
        %v353 = vmul.f32 %v318, 0.17677669
        %v354 = vmul.f32 %v321, 0.17677669
        %v355 = vmul.f32 %v324, 0.17677669
        %v356 = vmul.f32 %v327, 0.17677669
        %v357 = vmul.f32 %v330, 0.17677669
        %v358 = vmul.f32 %v333, 0.17677669
        %v359 = vmul.f32 %v336, 0.17677669
        %v360 = vmul.f32 %v339, 0.17677669
        %v361 = vmul.f32 %v342, 0.17677669
        %v362 = vmul.f32 %v345, 0.17677669
        %v363 = vld [vmem:[%s2] sm:$0xff]
        %v364 = vld [vmem:[%s2 + $0x8] sm:$0xff]
        %v365 = vld [vmem:[%s2 + $0x10] sm:$0xff]
        %v366 = vld [vmem:[%s2 + $0x18] sm:$0xff]
        %v367 = vld [vmem:[%s2 + $0x20] sm:$0xff]
        %v368 = vld [vmem:[%s2 + $0x28] sm:$0xff]
        %v369 = vld [vmem:[%s2 + $0x30] sm:$0xff]
        %v370 = vld [vmem:[%s2 + $0x38] sm:$0xff]
        %v371 = vld [vmem:[%s2 + $0x40] sm:$0xff]
        %v372 = vld [vmem:[%s2 + $0x48] sm:$0xff]
        %v373 = vld [vmem:[%s2 + $0x50] sm:$0xff]
        %v374 = vld [vmem:[%s2 + $0x58] sm:$0xff]
        %v375 = vld [vmem:[%s2 + $0x60] sm:$0xff]
        %v376 = vld [vmem:[%s2 + $0x68] sm:$0xff]
        %v377 = vld [vmem:[%s2 + $0x70] sm:$0xff]
        %v378 = vld [vmem:[%s2 + $0x78] sm:$0xff]
        %379 = vmatpush.msra.mxu0 %v378
        %380 = vmatpush.msra.mxu0 %v377
        %381 = vmatpush.msra.mxu0 %v376
        %382 = vmatpush.msra.mxu0 %v375
        %383 = vmatpush.msra.mxu0 %v374
        %384 = vmatpush.msra.mxu0 %v373
        %385 = vmatpush.msra.mxu0 %v372
        %386 = vmatpush.msra.mxu0 %v371
        %387 = vmatpush.msra.mxu0 %v370
        %388 = vmatpush.msra.mxu0 %v369
        %389 = vmatpush.msra.mxu0 %v368
        %390 = vmatpush.msra.mxu0 %v367
        %391 = vmatpush.msra.mxu0 %v366
        %392 = vmatpush.msra.mxu0 %v365
        %393 = vmatpush.msra.mxu0 %v364
        %394 = vmatpush.msra.mxu0 %v363
        %395 = vmatmul.f32.gmra.mxu0 %v250
        %v396 = vpop.f32.mrf.mxu0
        %v397 = vadd.f32 0.0, %v396
        %398 = vmatmul.f32.gmra.mxu0 %v251
        %v399 = vpop.f32.mrf.mxu0
        %v400 = vadd.f32 0.0, %v399
        %401 = vmatmul.f32.gmra.mxu0 %v252
        %v402 = vpop.f32.mrf.mxu0
        %v403 = vadd.f32 0.0, %v402
        %404 = vmatmul.f32.gmra.mxu0 %v253
        %v405 = vpop.f32.mrf.mxu0
        %v406 = vadd.f32 0.0, %v405
        %407 = vmatmul.f32.gmra.mxu0 %v254
        %v408 = vpop.f32.mrf.mxu0
        %v409 = vadd.f32 0.0, %v408
        %410 = vmatmul.f32.gmra.mxu0 %v255
        %v411 = vpop.f32.mrf.mxu0
        %v412 = vadd.f32 0.0, %v411
        %413 = vmatmul.f32.gmra.mxu0 %v256
        %v414 = vpop.f32.mrf.mxu0
        %v415 = vadd.f32 0.0, %v414
        %416 = vmatmul.f32.gmra.mxu0 %v257
        %v417 = vpop.f32.mrf.mxu0
        %v418 = vadd.f32 0.0, %v417
        %419 = vmatmul.f32.gmra.mxu0 %v258
        %v420 = vpop.f32.mrf.mxu0
        %v421 = vadd.f32 0.0, %v420
        %422 = vmatmul.f32.gmra.mxu0 %v259
        %v423 = vpop.f32.mrf.mxu0
        %v424 = vadd.f32 0.0, %v423
        %425 = vmatmul.f32.gmra.mxu0 %v260
        %v426 = vpop.f32.mrf.mxu0
        %v427 = vadd.f32 0.0, %v426
        %428 = vmatmul.f32.gmra.mxu0 %v261
        %v429 = vpop.f32.mrf.mxu0
        %v430 = vadd.f32 0.0, %v429
        %431 = vmatmul.f32.gmra.mxu0 %v262
        %v432 = vpop.f32.mrf.mxu0
        %v433 = vadd.f32 0.0, %v432
        %434 = vmatmul.f32.gmra.mxu0 %v263
        %v435 = vpop.f32.mrf.mxu0
        %v436 = vadd.f32 0.0, %v435
        %437 = vmatmul.f32.gmra.mxu0 %v264
        %v438 = vpop.f32.mrf.mxu0
        %v439 = vadd.f32 0.0, %v438
        %440 = vmatmul.f32.gmra.mxu0 %v265
        %v441 = vpop.f32.mrf.mxu0
        %v442 = vadd.f32 0.0, %v441
        %443 = vdwg.mxu0
        %v444 = vld [vmem:[%s3] sm:$0xff]
        %v445 = vld [vmem:[%s3 + $0x8] sm:$0xff]
        %v446 = vld [vmem:[%s3 + $0x10] sm:$0xff]
        %v447 = vld [vmem:[%s3 + $0x18] sm:$0xff]
        %v448 = vld [vmem:[%s3 + $0x20] sm:$0xff]
        %v449 = vld [vmem:[%s3 + $0x28] sm:$0xff]
        %v450 = vld [vmem:[%s3 + $0x30] sm:$0xff]
        %v451 = vld [vmem:[%s3 + $0x38] sm:$0xff]
        %v452 = vld [vmem:[%s3 + $0x40] sm:$0xff]
        %v453 = vld [vmem:[%s3 + $0x48] sm:$0xff]
        %v454 = vld [vmem:[%s3 + $0x50] sm:$0xff]
        %v455 = vld [vmem:[%s3 + $0x58] sm:$0xff]
        %v456 = vld [vmem:[%s3 + $0x60] sm:$0xff]
        %v457 = vld [vmem:[%s3 + $0x68] sm:$0xff]
        %v458 = vld [vmem:[%s3 + $0x70] sm:$0xff]
        %v459 = vld [vmem:[%s3 + $0x78] sm:$0xff]
        %460 = vmatpush.msra.mxu0 %v459
        %461 = vmatpush.msra.mxu0 %v458
        %462 = vmatpush.msra.mxu0 %v457
        %463 = vmatpush.msra.mxu0 %v456
        %464 = vmatpush.msra.mxu0 %v455
        %465 = vmatpush.msra.mxu0 %v454
        %466 = vmatpush.msra.mxu0 %v453
        %467 = vmatpush.msra.mxu0 %v452
        %468 = vmatpush.msra.mxu0 %v451
        %469 = vmatpush.msra.mxu0 %v450
        %470 = vmatpush.msra.mxu0 %v449
        %471 = vmatpush.msra.mxu0 %v448
        %472 = vmatpush.msra.mxu0 %v447
        %473 = vmatpush.msra.mxu0 %v446
        %474 = vmatpush.msra.mxu0 %v445
        %475 = vmatpush.msra.mxu0 %v444
        %476 = vmatmul.f32.gmra.mxu0 %v250
        %v477 = vpop.f32.mrf.mxu0
        %v478 = vadd.f32 0.0, %v477
        %479 = vmatmul.f32.gmra.mxu0 %v251
        %v480 = vpop.f32.mrf.mxu0
        %v481 = vadd.f32 0.0, %v480
        %482 = vmatmul.f32.gmra.mxu0 %v252
        %v483 = vpop.f32.mrf.mxu0
        %v484 = vadd.f32 0.0, %v483
        %485 = vmatmul.f32.gmra.mxu0 %v253
        %v486 = vpop.f32.mrf.mxu0
        %v487 = vadd.f32 0.0, %v486
        %488 = vmatmul.f32.gmra.mxu0 %v254
        %v489 = vpop.f32.mrf.mxu0
        %v490 = vadd.f32 0.0, %v489
        %491 = vmatmul.f32.gmra.mxu0 %v255
        %v492 = vpop.f32.mrf.mxu0
        %v493 = vadd.f32 0.0, %v492
        %494 = vmatmul.f32.gmra.mxu0 %v256
        %v495 = vpop.f32.mrf.mxu0
        %v496 = vadd.f32 0.0, %v495
        %497 = vmatmul.f32.gmra.mxu0 %v257
        %v498 = vpop.f32.mrf.mxu0
        %v499 = vadd.f32 0.0, %v498
        %500 = vmatmul.f32.gmra.mxu0 %v258
        %v501 = vpop.f32.mrf.mxu0
        %v502 = vadd.f32 0.0, %v501
        %503 = vmatmul.f32.gmra.mxu0 %v259
        %v504 = vpop.f32.mrf.mxu0
        %v505 = vadd.f32 0.0, %v504
        %506 = vmatmul.f32.gmra.mxu0 %v260
        %v507 = vpop.f32.mrf.mxu0
        %v508 = vadd.f32 0.0, %v507
        %509 = vmatmul.f32.gmra.mxu0 %v261
        %v510 = vpop.f32.mrf.mxu0
        %v511 = vadd.f32 0.0, %v510
        %512 = vmatmul.f32.gmra.mxu0 %v262
        %v513 = vpop.f32.mrf.mxu0
        %v514 = vadd.f32 0.0, %v513
        %515 = vmatmul.f32.gmra.mxu0 %v263
        %v516 = vpop.f32.mrf.mxu0
        %v517 = vadd.f32 0.0, %v516
        %518 = vmatmul.f32.gmra.mxu0 %v264
        %v519 = vpop.f32.mrf.mxu0
        %v520 = vadd.f32 0.0, %v519
        %521 = vmatmul.f32.gmra.mxu0 %v265
        %v522 = vpop.f32.mrf.mxu0
        %v523 = vadd.f32 0.0, %v522
        %524 = vdwg.mxu0
        %vm525 = vcmask 261120
        %v527 = vsel %vm525, %v347, 0
        %v530 = vsel %vm525, %v348, 0
        %v533 = vsel %vm525, %v349, 0
        %v536 = vsel %vm525, %v350, 0
        %v539 = vsel %vm525, %v351, 0
        %v542 = vsel %vm525, %v352, 0
        %v545 = vsel %vm525, %v353, 0
        %v548 = vsel %vm525, %v354, 0
        %v551 = vsel %vm525, %v355, 0
        %v554 = vsel %vm525, %v356, 0
        %v557 = vsel %vm525, %v357, 0
        %v560 = vsel %vm525, %v358, 0
        %v563 = vsel %vm525, %v359, 0
        %v566 = vsel %vm525, %v360, 0
        %v569 = vsel %vm525, %v361, 0
        %v572 = vsel %vm525, %v362, 0
        %v575 = vsel %vm525, %v397, 0
        %v578 = vsel %vm525, %v400, 0
        %v581 = vsel %vm525, %v403, 0
        %v584 = vsel %vm525, %v406, 0
        %v587 = vsel %vm525, %v409, 0
        %v590 = vsel %vm525, %v412, 0
        %v593 = vsel %vm525, %v415, 0
        %v596 = vsel %vm525, %v418, 0
        %v599 = vsel %vm525, %v421, 0
        %v602 = vsel %vm525, %v424, 0
        %v605 = vsel %vm525, %v427, 0
        %v608 = vsel %vm525, %v430, 0
        %v611 = vsel %vm525, %v433, 0
        %v614 = vsel %vm525, %v436, 0
        %v617 = vsel %vm525, %v439, 0
        %v620 = vsel %vm525, %v442, 0
        %622 = vmatpush.xpose.msra.mxu0 %v620
        %623 = vmatpush.xpose.msra.mxu0 %v617
        %624 = vmatpush.xpose.msra.mxu0 %v614
        %625 = vmatpush.xpose.msra.mxu0 %v611
        %626 = vmatpush.xpose.msra.mxu0 %v608
        %627 = vmatpush.xpose.msra.mxu0 %v605
        %628 = vmatpush.xpose.msra.mxu0 %v602
        %629 = vmatpush.xpose.msra.mxu0 %v599
        %630 = vmatpush.xpose.msra.mxu0 %v596
        %631 = vmatpush.xpose.msra.mxu0 %v593
        %632 = vmatpush.xpose.msra.mxu0 %v590
        %633 = vmatpush.xpose.msra.mxu0 %v587
        %634 = vmatpush.xpose.msra.mxu0 %v584
        %635 = vmatpush.xpose.msra.mxu0 %v581
        %636 = vmatpush.xpose.msra.mxu0 %v578
        %637 = vmatpush.xpose.msra.mxu0 %v575
        %638 = vmatmul.f32.gmra.mxu0 %v527
        %v639 = vpop.f32.mrf.mxu0
        %v640 = vadd.f32 0.0, %v639
        %641 = vmatmul.f32.gmra.mxu0 %v530
        %v642 = vpop.f32.mrf.mxu0
        %v643 = vadd.f32 0.0, %v642
        %644 = vmatmul.f32.gmra.mxu0 %v533
        %v645 = vpop.f32.mrf.mxu0
        %v646 = vadd.f32 0.0, %v645
        %647 = vmatmul.f32.gmra.mxu0 %v536
        %v648 = vpop.f32.mrf.mxu0
        %v649 = vadd.f32 0.0, %v648
        %650 = vmatmul.f32.gmra.mxu0 %v539
        %v651 = vpop.f32.mrf.mxu0
        %v652 = vadd.f32 0.0, %v651
        %653 = vmatmul.f32.gmra.mxu0 %v542
        %v654 = vpop.f32.mrf.mxu0
        %v655 = vadd.f32 0.0, %v654
        %656 = vmatmul.f32.gmra.mxu0 %v545
        %v657 = vpop.f32.mrf.mxu0
        %v658 = vadd.f32 0.0, %v657
        %659 = vmatmul.f32.gmra.mxu0 %v548
        %v660 = vpop.f32.mrf.mxu0
        %v661 = vadd.f32 0.0, %v660
        %662 = vmatmul.f32.gmra.mxu0 %v551
        %v663 = vpop.f32.mrf.mxu0
        %v664 = vadd.f32 0.0, %v663
        %665 = vmatmul.f32.gmra.mxu0 %v554
        %v666 = vpop.f32.mrf.mxu0
        %v667 = vadd.f32 0.0, %v666
        %668 = vmatmul.f32.gmra.mxu0 %v557
        %v669 = vpop.f32.mrf.mxu0
        %v670 = vadd.f32 0.0, %v669
        %671 = vmatmul.f32.gmra.mxu0 %v560
        %v672 = vpop.f32.mrf.mxu0
        %v673 = vadd.f32 0.0, %v672
        %674 = vmatmul.f32.gmra.mxu0 %v563
        %v675 = vpop.f32.mrf.mxu0
        %v676 = vadd.f32 0.0, %v675
        %677 = vmatmul.f32.gmra.mxu0 %v566
        %v678 = vpop.f32.mrf.mxu0
        %v679 = vadd.f32 0.0, %v678
        %680 = vmatmul.f32.gmra.mxu0 %v569
        %v681 = vpop.f32.mrf.mxu0
        %v682 = vadd.f32 0.0, %v681
        %683 = vmatmul.f32.gmra.mxu0 %v572
        %v684 = vpop.f32.mrf.mxu0
        %v685 = vadd.f32 0.0, %v684
        %686 = vdwg.mxu0
        %687 = vmax.xlane.f32.xlu0 %v640
        %v688 = vpop.xlane.xlu0 %687
        %689 = vmax.xlane.f32.xlu0 %v643
        %v690 = vpop.xlane.xlu0 %689
        %691 = vmax.xlane.f32.xlu0 %v646
        %v692 = vpop.xlane.xlu0 %691
        %693 = vmax.xlane.f32.xlu0 %v649
        %v694 = vpop.xlane.xlu0 %693
        %695 = vmax.xlane.f32.xlu0 %v652
        %v696 = vpop.xlane.xlu0 %695
        %697 = vmax.xlane.f32.xlu0 %v655
        %v698 = vpop.xlane.xlu0 %697
        %699 = vmax.xlane.f32.xlu0 %v658
        %v700 = vpop.xlane.xlu0 %699
        %701 = vmax.xlane.f32.xlu0 %v661
        %v702 = vpop.xlane.xlu0 %701
        %703 = vmax.xlane.f32.xlu0 %v664
        %v704 = vpop.xlane.xlu0 %703
        %705 = vmax.xlane.f32.xlu0 %v667
        %v706 = vpop.xlane.xlu0 %705
        %707 = vmax.xlane.f32.xlu0 %v670
        %v708 = vpop.xlane.xlu0 %707
        %709 = vmax.xlane.f32.xlu0 %v673
        %v710 = vpop.xlane.xlu0 %709
        %711 = vmax.xlane.f32.xlu0 %v676
        %v712 = vpop.xlane.xlu0 %711
        %713 = vmax.xlane.f32.xlu0 %v679
        %v714 = vpop.xlane.xlu0 %713
        %715 = vmax.xlane.f32.xlu0 %v682
        %v716 = vpop.xlane.xlu0 %715
        %717 = vmax.xlane.f32.xlu0 %v685
        %v718 = vpop.xlane.xlu0 %717
        %v719 = vsub.f32 %v640, %v688
        %v720 = vsub.f32 %v643, %v690
        %v721 = vsub.f32 %v646, %v692
        %v722 = vsub.f32 %v649, %v694
        %v723 = vsub.f32 %v652, %v696
        %v724 = vsub.f32 %v655, %v698
        %v725 = vsub.f32 %v658, %v700
        %v726 = vsub.f32 %v661, %v702
        %v727 = vsub.f32 %v664, %v704
        %v728 = vsub.f32 %v667, %v706
        %v729 = vsub.f32 %v670, %v708
        %v730 = vsub.f32 %v673, %v710
        %v731 = vsub.f32 %v676, %v712
        %v732 = vsub.f32 %v679, %v714
        %v733 = vsub.f32 %v682, %v716
        %v734 = vsub.f32 %v685, %v718
        %v735 = vmul.f32 %v719, 1.442695
        %v736 = vpow.pop %v735
        %v737 = vmul.f32 %v720, 1.442695
        %v738 = vpow.pop %v737
        %v739 = vmul.f32 %v721, 1.442695
        %v740 = vpow.pop %v739
        %v741 = vmul.f32 %v722, 1.442695
        %v742 = vpow.pop %v741
        %v743 = vmul.f32 %v723, 1.442695
        %v744 = vpow.pop %v743
        %v745 = vmul.f32 %v724, 1.442695
        %v746 = vpow.pop %v745
        %v747 = vmul.f32 %v725, 1.442695
        %v748 = vpow.pop %v747
        %v749 = vmul.f32 %v726, 1.442695
        %v750 = vpow.pop %v749
        %v751 = vmul.f32 %v727, 1.442695
        %v752 = vpow.pop %v751
        %v753 = vmul.f32 %v728, 1.442695
        %v754 = vpow.pop %v753
        %v755 = vmul.f32 %v729, 1.442695
        %v756 = vpow.pop %v755
        %v757 = vmul.f32 %v730, 1.442695
        %v758 = vpow.pop %v757
        %v759 = vmul.f32 %v731, 1.442695
        %v760 = vpow.pop %v759
        %v761 = vmul.f32 %v732, 1.442695
        %v762 = vpow.pop %v761
        %v763 = vmul.f32 %v733, 1.442695
        %v764 = vpow.pop %v763
        %v765 = vmul.f32 %v734, 1.442695
        %v766 = vpow.pop %v765
        %767 = vadd.xlane.f32.xlu0 %v736
        %v768 = vpop.xlane.xlu0 %767
        %769 = vadd.xlane.f32.xlu0 %v738
        %v770 = vpop.xlane.xlu0 %769
        %771 = vadd.xlane.f32.xlu0 %v740
        %v772 = vpop.xlane.xlu0 %771
        %773 = vadd.xlane.f32.xlu0 %v742
        %v774 = vpop.xlane.xlu0 %773
        %775 = vadd.xlane.f32.xlu0 %v744
        %v776 = vpop.xlane.xlu0 %775
        %777 = vadd.xlane.f32.xlu0 %v746
        %v778 = vpop.xlane.xlu0 %777
        %779 = vadd.xlane.f32.xlu0 %v748
        %v780 = vpop.xlane.xlu0 %779
        %781 = vadd.xlane.f32.xlu0 %v750
        %v782 = vpop.xlane.xlu0 %781
        %783 = vadd.xlane.f32.xlu0 %v752
        %v784 = vpop.xlane.xlu0 %783
        %785 = vadd.xlane.f32.xlu0 %v754
        %v786 = vpop.xlane.xlu0 %785
        %787 = vadd.xlane.f32.xlu0 %v756
        %v788 = vpop.xlane.xlu0 %787
        %789 = vadd.xlane.f32.xlu0 %v758
        %v790 = vpop.xlane.xlu0 %789
        %791 = vadd.xlane.f32.xlu0 %v760
        %v792 = vpop.xlane.xlu0 %791
        %793 = vadd.xlane.f32.xlu0 %v762
        %v794 = vpop.xlane.xlu0 %793
        %795 = vadd.xlane.f32.xlu0 %v764
        %v796 = vpop.xlane.xlu0 %795
        %797 = vadd.xlane.f32.xlu0 %v766
        %v798 = vpop.xlane.xlu0 %797
        %v799 = vrcp.pop %v768
        %v800 = vmul.f32 %v768, %v799
        %v801 = vsub.f32 1.0, %v800
        %v802 = vmul.f32 %v799, %v801
        %v803 = vadd.f32 %v799, %v802
        %vm804 = vweird.f32 %v768
        %vm805 = vweird.f32 %v799
        %vm806 = vmor %vm804, %vm805
        %v807 = vsel %vm806, %v799, %v803
        %v808 = vand.u32 2147483647, %v768
        %vm809 = vcmp.eq.f32.partialorder %v808, 8.507059e+37
        %v810 = vand.u32 %v768, 2147483648
        %v811 = vor.u32 1.1754944e-38, %v810
        %v812 = vsel %vm809, %v811, %v807
        %v813 = vmul.f32 %v736, %v812
        %v814 = vrcp.pop %v770
        %v815 = vmul.f32 %v770, %v814
        %v816 = vsub.f32 1.0, %v815
        %v817 = vmul.f32 %v814, %v816
        %v818 = vadd.f32 %v814, %v817
        %vm819 = vweird.f32 %v770
        %vm820 = vweird.f32 %v814
        %vm821 = vmor %vm819, %vm820
        %v822 = vsel %vm821, %v814, %v818
        %v823 = vand.u32 2147483647, %v770
        %vm824 = vcmp.eq.f32.partialorder %v823, 8.507059e+37
        %v825 = vand.u32 %v770, 2147483648
        %v826 = vor.u32 1.1754944e-38, %v825
        %v827 = vsel %vm824, %v826, %v822
        %v828 = vmul.f32 %v738, %v827
        %v829 = vrcp.pop %v772
        %v830 = vmul.f32 %v772, %v829
        %v831 = vsub.f32 1.0, %v830
        %v832 = vmul.f32 %v829, %v831
        %v833 = vadd.f32 %v829, %v832
        %vm834 = vweird.f32 %v772
        %vm835 = vweird.f32 %v829
        %vm836 = vmor %vm834, %vm835
        %v837 = vsel %vm836, %v829, %v833
        %v838 = vand.u32 2147483647, %v772
        %vm839 = vcmp.eq.f32.partialorder %v838, 8.507059e+37
        %v840 = vand.u32 %v772, 2147483648
        %v841 = vor.u32 1.1754944e-38, %v840
        %v842 = vsel %vm839, %v841, %v837
        %v843 = vmul.f32 %v740, %v842
        %v844 = vrcp.pop %v774
        %v845 = vmul.f32 %v774, %v844
        %v846 = vsub.f32 1.0, %v845
        %v847 = vmul.f32 %v844, %v846
        %v848 = vadd.f32 %v844, %v847
        %vm849 = vweird.f32 %v774
        %vm850 = vweird.f32 %v844
        %vm851 = vmor %vm849, %vm850
        %v852 = vsel %vm851, %v844, %v848
        %v853 = vand.u32 2147483647, %v774
        %vm854 = vcmp.eq.f32.partialorder %v853, 8.507059e+37
        %v855 = vand.u32 %v774, 2147483648
        %v856 = vor.u32 1.1754944e-38, %v855
        %v857 = vsel %vm854, %v856, %v852
        %v858 = vmul.f32 %v742, %v857
        %v859 = vrcp.pop %v776
        %v860 = vmul.f32 %v776, %v859
        %v861 = vsub.f32 1.0, %v860
        %v862 = vmul.f32 %v859, %v861
        %v863 = vadd.f32 %v859, %v862
        %vm864 = vweird.f32 %v776
        %vm865 = vweird.f32 %v859
        %vm866 = vmor %vm864, %vm865
        %v867 = vsel %vm866, %v859, %v863
        %v868 = vand.u32 2147483647, %v776
        %vm869 = vcmp.eq.f32.partialorder %v868, 8.507059e+37
        %v870 = vand.u32 %v776, 2147483648
        %v871 = vor.u32 1.1754944e-38, %v870
        %v872 = vsel %vm869, %v871, %v867
        %v873 = vmul.f32 %v744, %v872
        %v874 = vrcp.pop %v778
        %v875 = vmul.f32 %v778, %v874
        %v876 = vsub.f32 1.0, %v875
        %v877 = vmul.f32 %v874, %v876
        %v878 = vadd.f32 %v874, %v877
        %vm879 = vweird.f32 %v778
        %vm880 = vweird.f32 %v874
        %vm881 = vmor %vm879, %vm880
        %v882 = vsel %vm881, %v874, %v878
        %v883 = vand.u32 2147483647, %v778
        %vm884 = vcmp.eq.f32.partialorder %v883, 8.507059e+37
        %v885 = vand.u32 %v778, 2147483648
        %v886 = vor.u32 1.1754944e-38, %v885
        %v887 = vsel %vm884, %v886, %v882
        %v888 = vmul.f32 %v746, %v887
        %v889 = vrcp.pop %v780
        %v890 = vmul.f32 %v780, %v889
        %v891 = vsub.f32 1.0, %v890
        %v892 = vmul.f32 %v889, %v891
        %v893 = vadd.f32 %v889, %v892
        %vm894 = vweird.f32 %v780
        %vm895 = vweird.f32 %v889
        %vm896 = vmor %vm894, %vm895
        %v897 = vsel %vm896, %v889, %v893
        %v898 = vand.u32 2147483647, %v780
        %vm899 = vcmp.eq.f32.partialorder %v898, 8.507059e+37
        %v900 = vand.u32 %v780, 2147483648
        %v901 = vor.u32 1.1754944e-38, %v900
        %v902 = vsel %vm899, %v901, %v897
        %v903 = vmul.f32 %v748, %v902
        %v904 = vrcp.pop %v782
        %v905 = vmul.f32 %v782, %v904
        %v906 = vsub.f32 1.0, %v905
        %v907 = vmul.f32 %v904, %v906
        %v908 = vadd.f32 %v904, %v907
        %vm909 = vweird.f32 %v782
        %vm910 = vweird.f32 %v904
        %vm911 = vmor %vm909, %vm910
        %v912 = vsel %vm911, %v904, %v908
        %v913 = vand.u32 2147483647, %v782
        %vm914 = vcmp.eq.f32.partialorder %v913, 8.507059e+37
        %v915 = vand.u32 %v782, 2147483648
        %v916 = vor.u32 1.1754944e-38, %v915
        %v917 = vsel %vm914, %v916, %v912
        %v918 = vmul.f32 %v750, %v917
        %v919 = vrcp.pop %v784
        %v920 = vmul.f32 %v784, %v919
        %v921 = vsub.f32 1.0, %v920
        %v922 = vmul.f32 %v919, %v921
        %v923 = vadd.f32 %v919, %v922
        %vm924 = vweird.f32 %v784
        %vm925 = vweird.f32 %v919
        %vm926 = vmor %vm924, %vm925
        %v927 = vsel %vm926, %v919, %v923
        %v928 = vand.u32 2147483647, %v784
        %vm929 = vcmp.eq.f32.partialorder %v928, 8.507059e+37
        %v930 = vand.u32 %v784, 2147483648
        %v931 = vor.u32 1.1754944e-38, %v930
        %v932 = vsel %vm929, %v931, %v927
        %v933 = vmul.f32 %v752, %v932
        %v934 = vrcp.pop %v786
        %v935 = vmul.f32 %v786, %v934
        %v936 = vsub.f32 1.0, %v935
        %v937 = vmul.f32 %v934, %v936
        %v938 = vadd.f32 %v934, %v937
        %vm939 = vweird.f32 %v786
        %vm940 = vweird.f32 %v934
        %vm941 = vmor %vm939, %vm940
        %v942 = vsel %vm941, %v934, %v938
        %v943 = vand.u32 2147483647, %v786
        %vm944 = vcmp.eq.f32.partialorder %v943, 8.507059e+37
        %v945 = vand.u32 %v786, 2147483648
        %v946 = vor.u32 1.1754944e-38, %v945
        %v947 = vsel %vm944, %v946, %v942
        %v948 = vmul.f32 %v754, %v947
        %v949 = vrcp.pop %v788
        %v950 = vmul.f32 %v788, %v949
        %v951 = vsub.f32 1.0, %v950
        %v952 = vmul.f32 %v949, %v951
        %v953 = vadd.f32 %v949, %v952
        %vm954 = vweird.f32 %v788
        %vm955 = vweird.f32 %v949
        %vm956 = vmor %vm954, %vm955
        %v957 = vsel %vm956, %v949, %v953
        %v958 = vand.u32 2147483647, %v788
        %vm959 = vcmp.eq.f32.partialorder %v958, 8.507059e+37
        %v960 = vand.u32 %v788, 2147483648
        %v961 = vor.u32 1.1754944e-38, %v960
        %v962 = vsel %vm959, %v961, %v957
        %v963 = vmul.f32 %v756, %v962
        %v964 = vrcp.pop %v790
        %v965 = vmul.f32 %v790, %v964
        %v966 = vsub.f32 1.0, %v965
        %v967 = vmul.f32 %v964, %v966
        %v968 = vadd.f32 %v964, %v967
        %vm969 = vweird.f32 %v790
        %vm970 = vweird.f32 %v964
        %vm971 = vmor %vm969, %vm970
        %v972 = vsel %vm971, %v964, %v968
        %v973 = vand.u32 2147483647, %v790
        %vm974 = vcmp.eq.f32.partialorder %v973, 8.507059e+37
        %v975 = vand.u32 %v790, 2147483648
        %v976 = vor.u32 1.1754944e-38, %v975
        %v977 = vsel %vm974, %v976, %v972
        %v978 = vmul.f32 %v758, %v977
        %v979 = vrcp.pop %v792
        %v980 = vmul.f32 %v792, %v979
        %v981 = vsub.f32 1.0, %v980
        %v982 = vmul.f32 %v979, %v981
        %v983 = vadd.f32 %v979, %v982
        %vm984 = vweird.f32 %v792
        %vm985 = vweird.f32 %v979
        %vm986 = vmor %vm984, %vm985
        %v987 = vsel %vm986, %v979, %v983
        %v988 = vand.u32 2147483647, %v792
        %vm989 = vcmp.eq.f32.partialorder %v988, 8.507059e+37
        %v990 = vand.u32 %v792, 2147483648
        %v991 = vor.u32 1.1754944e-38, %v990
        %v992 = vsel %vm989, %v991, %v987
        %v993 = vmul.f32 %v760, %v992
        %v994 = vrcp.pop %v794
        %v995 = vmul.f32 %v794, %v994
        %v996 = vsub.f32 1.0, %v995
        %v997 = vmul.f32 %v994, %v996
        %v998 = vadd.f32 %v994, %v997
        %vm999 = vweird.f32 %v794
        %vm1000 = vweird.f32 %v994
        %vm1001 = vmor %vm999, %vm1000
        %v1002 = vsel %vm1001, %v994, %v998
        %v1003 = vand.u32 2147483647, %v794
        %vm1004 = vcmp.eq.f32.partialorder %v1003, 8.507059e+37
        %v1005 = vand.u32 %v794, 2147483648
        %v1006 = vor.u32 1.1754944e-38, %v1005
        %v1007 = vsel %vm1004, %v1006, %v1002
        %v1008 = vmul.f32 %v762, %v1007
        %v1009 = vrcp.pop %v796
        %v1010 = vmul.f32 %v796, %v1009
        %v1011 = vsub.f32 1.0, %v1010
        %v1012 = vmul.f32 %v1009, %v1011
        %v1013 = vadd.f32 %v1009, %v1012
        %vm1014 = vweird.f32 %v796
        %vm1015 = vweird.f32 %v1009
        %vm1016 = vmor %vm1014, %vm1015
        %v1017 = vsel %vm1016, %v1009, %v1013
        %v1018 = vand.u32 2147483647, %v796
        %vm1019 = vcmp.eq.f32.partialorder %v1018, 8.507059e+37
        %v1020 = vand.u32 %v796, 2147483648
        %v1021 = vor.u32 1.1754944e-38, %v1020
        %v1022 = vsel %vm1019, %v1021, %v1017
        %v1023 = vmul.f32 %v764, %v1022
        %v1024 = vrcp.pop %v798
        %v1025 = vmul.f32 %v798, %v1024
        %v1026 = vsub.f32 1.0, %v1025
        %v1027 = vmul.f32 %v1024, %v1026
        %v1028 = vadd.f32 %v1024, %v1027
        %vm1029 = vweird.f32 %v798
        %vm1030 = vweird.f32 %v1024
        %vm1031 = vmor %vm1029, %vm1030
        %v1032 = vsel %vm1031, %v1024, %v1028
        %v1033 = vand.u32 2147483647, %v798
        %vm1034 = vcmp.eq.f32.partialorder %v1033, 8.507059e+37
        %v1035 = vand.u32 %v798, 2147483648
        %v1036 = vor.u32 1.1754944e-38, %v1035
        %v1037 = vsel %vm1034, %v1036, %v1032
        %v1038 = vmul.f32 %v766, %v1037
        %1039 = vmatpush.msra.mxu0 %v523
        %1040 = vmatpush.msra.mxu0 %v520
        %1041 = vmatpush.msra.mxu0 %v517
        %1042 = vmatpush.msra.mxu0 %v514
        %1043 = vmatpush.msra.mxu0 %v511
        %1044 = vmatpush.msra.mxu0 %v508
        %1045 = vmatpush.msra.mxu0 %v505
        %1046 = vmatpush.msra.mxu0 %v502
        %1047 = vmatpush.msra.mxu0 %v499
        %1048 = vmatpush.msra.mxu0 %v496
        %1049 = vmatpush.msra.mxu0 %v493
        %1050 = vmatpush.msra.mxu0 %v490
        %1051 = vmatpush.msra.mxu0 %v487
        %1052 = vmatpush.msra.mxu0 %v484
        %1053 = vmatpush.msra.mxu0 %v481
        %1054 = vmatpush.msra.mxu0 %v478
        %1055 = vmatmul.f32.gmra.mxu0 %v813
        %v1056 = vpop.f32.mrf.mxu0
        %v1057 = vadd.f32 0.0, %v1056
        %1058 = vmatmul.f32.gmra.mxu0 %v828
        %v1059 = vpop.f32.mrf.mxu0
        %v1060 = vadd.f32 0.0, %v1059
        %1061 = vmatmul.f32.gmra.mxu0 %v843
        %v1062 = vpop.f32.mrf.mxu0
        %v1063 = vadd.f32 0.0, %v1062
        %1064 = vmatmul.f32.gmra.mxu0 %v858
        %v1065 = vpop.f32.mrf.mxu0
        %v1066 = vadd.f32 0.0, %v1065
        %1067 = vmatmul.f32.gmra.mxu0 %v873
        %v1068 = vpop.f32.mrf.mxu0
        %v1069 = vadd.f32 0.0, %v1068
        %1070 = vmatmul.f32.gmra.mxu0 %v888
        %v1071 = vpop.f32.mrf.mxu0
        %v1072 = vadd.f32 0.0, %v1071
        %1073 = vmatmul.f32.gmra.mxu0 %v903
        %v1074 = vpop.f32.mrf.mxu0
        %v1075 = vadd.f32 0.0, %v1074
        %1076 = vmatmul.f32.gmra.mxu0 %v918
        %v1077 = vpop.f32.mrf.mxu0
        %v1078 = vadd.f32 0.0, %v1077
        %1079 = vmatmul.f32.gmra.mxu0 %v933
        %v1080 = vpop.f32.mrf.mxu0
        %v1081 = vadd.f32 0.0, %v1080
        %1082 = vmatmul.f32.gmra.mxu0 %v948
        %v1083 = vpop.f32.mrf.mxu0
        %v1084 = vadd.f32 0.0, %v1083
        %1085 = vmatmul.f32.gmra.mxu0 %v963
        %v1086 = vpop.f32.mrf.mxu0
        %v1087 = vadd.f32 0.0, %v1086
        %1088 = vmatmul.f32.gmra.mxu0 %v978
        %v1089 = vpop.f32.mrf.mxu0
        %v1090 = vadd.f32 0.0, %v1089
        %1091 = vmatmul.f32.gmra.mxu0 %v993
        %v1092 = vpop.f32.mrf.mxu0
        %v1093 = vadd.f32 0.0, %v1092
        %1094 = vmatmul.f32.gmra.mxu0 %v1008
        %v1095 = vpop.f32.mrf.mxu0
        %v1096 = vadd.f32 0.0, %v1095
        %1097 = vmatmul.f32.gmra.mxu0 %v1023
        %v1098 = vpop.f32.mrf.mxu0
        %v1099 = vadd.f32 0.0, %v1098
        %1100 = vmatmul.f32.gmra.mxu0 %v1038
        %v1101 = vpop.f32.mrf.mxu0
        %v1102 = vadd.f32 0.0, %v1101
        %1103 = vdwg.mxu0
        %v1104 = vld [vmem:[%s4] sm:$0xff]
        %v1105 = vld [vmem:[%s4 + $0x8] sm:$0xff]
        %v1106 = vld [vmem:[%s4 + $0x10] sm:$0xff]
        %v1107 = vld [vmem:[%s4 + $0x18] sm:$0xff]
        %s1108 = scalar_lea.vmem %s1, 128
        %v1109 = vld [vmem:[%s1108] sm:$0xff]
        %v1110 = vld [vmem:[%s1108 + $0x8] sm:$0xff]
        %v1111 = vld [vmem:[%s1108 + $0x10] sm:$0xff]
        %v1112 = vld [vmem:[%s1108 + $0x18] sm:$0xff]
        %v1113 = vld [vmem:[%s1108 + $0x20] sm:$0xff]
        %v1114 = vld [vmem:[%s1108 + $0x28] sm:$0xff]
        %v1115 = vld [vmem:[%s1108 + $0x30] sm:$0xff]
        %v1116 = vld [vmem:[%s1108 + $0x38] sm:$0xff]
        %v1117 = vld [vmem:[%s1108 + $0x40] sm:$0xff]
        %v1118 = vld [vmem:[%s1108 + $0x48] sm:$0xff]
        %v1119 = vld [vmem:[%s1108 + $0x50] sm:$0xff]
        %v1120 = vld [vmem:[%s1108 + $0x58] sm:$0xff]
        %v1121 = vld [vmem:[%s1108 + $0x60] sm:$0xff]
        %v1122 = vld [vmem:[%s1108 + $0x68] sm:$0xff]
        %v1123 = vld [vmem:[%s1108 + $0x70] sm:$0xff]
        %v1124 = vld [vmem:[%s1108 + $0x78] sm:$0xff]
        %1125 = vmatpush.msra.mxu0 %v1124
        %1126 = vmatpush.msra.mxu0 %v1123
        %1127 = vmatpush.msra.mxu0 %v1122
        %1128 = vmatpush.msra.mxu0 %v1121
        %1129 = vmatpush.msra.mxu0 %v1120
        %1130 = vmatpush.msra.mxu0 %v1119
        %1131 = vmatpush.msra.mxu0 %v1118
        %1132 = vmatpush.msra.mxu0 %v1117
        %1133 = vmatpush.msra.mxu0 %v1116
        %1134 = vmatpush.msra.mxu0 %v1115
        %1135 = vmatpush.msra.mxu0 %v1114
        %1136 = vmatpush.msra.mxu0 %v1113
        %1137 = vmatpush.msra.mxu0 %v1112
        %1138 = vmatpush.msra.mxu0 %v1111
        %1139 = vmatpush.msra.mxu0 %v1110
        %1140 = vmatpush.msra.mxu0 %v1109
        %1141 = vmatmul.f32.gmra.mxu0 %v250
        %v1142 = vpop.f32.mrf.mxu0
        %v1143 = vadd.f32 0.0, %v1142
        %1144 = vmatmul.f32.gmra.mxu0 %v251
        %v1145 = vpop.f32.mrf.mxu0
        %v1146 = vadd.f32 0.0, %v1145
        %1147 = vmatmul.f32.gmra.mxu0 %v252
        %v1148 = vpop.f32.mrf.mxu0
        %v1149 = vadd.f32 0.0, %v1148
        %1150 = vmatmul.f32.gmra.mxu0 %v253
        %v1151 = vpop.f32.mrf.mxu0
        %v1152 = vadd.f32 0.0, %v1151
        %1153 = vmatmul.f32.gmra.mxu0 %v254
        %v1154 = vpop.f32.mrf.mxu0
        %v1155 = vadd.f32 0.0, %v1154
        %1156 = vmatmul.f32.gmra.mxu0 %v255
        %v1157 = vpop.f32.mrf.mxu0
        %v1158 = vadd.f32 0.0, %v1157
        %1159 = vmatmul.f32.gmra.mxu0 %v256
        %v1160 = vpop.f32.mrf.mxu0
        %v1161 = vadd.f32 0.0, %v1160
        %1162 = vmatmul.f32.gmra.mxu0 %v257
        %v1163 = vpop.f32.mrf.mxu0
        %v1164 = vadd.f32 0.0, %v1163
        %1165 = vmatmul.f32.gmra.mxu0 %v258
        %v1166 = vpop.f32.mrf.mxu0
        %v1167 = vadd.f32 0.0, %v1166
        %1168 = vmatmul.f32.gmra.mxu0 %v259
        %v1169 = vpop.f32.mrf.mxu0
        %v1170 = vadd.f32 0.0, %v1169
        %1171 = vmatmul.f32.gmra.mxu0 %v260
        %v1172 = vpop.f32.mrf.mxu0
        %v1173 = vadd.f32 0.0, %v1172
        %1174 = vmatmul.f32.gmra.mxu0 %v261
        %v1175 = vpop.f32.mrf.mxu0
        %v1176 = vadd.f32 0.0, %v1175
        %1177 = vmatmul.f32.gmra.mxu0 %v262
        %v1178 = vpop.f32.mrf.mxu0
        %v1179 = vadd.f32 0.0, %v1178
        %1180 = vmatmul.f32.gmra.mxu0 %v263
        %v1181 = vpop.f32.mrf.mxu0
        %v1182 = vadd.f32 0.0, %v1181
        %1183 = vmatmul.f32.gmra.mxu0 %v264
        %v1184 = vpop.f32.mrf.mxu0
        %v1185 = vadd.f32 0.0, %v1184
        %1186 = vmatmul.f32.gmra.mxu0 %v265
        %v1187 = vpop.f32.mrf.mxu0
        %v1188 = vadd.f32 0.0, %v1187
        %1189 = vdwg.mxu0
        %v1190 = vmul.f32 %v1143, 0.17677669
        %v1191 = vmul.f32 %v1146, 0.17677669
        %v1192 = vmul.f32 %v1149, 0.17677669
        %v1193 = vmul.f32 %v1152, 0.17677669
        %v1194 = vmul.f32 %v1155, 0.17677669
        %v1195 = vmul.f32 %v1158, 0.17677669
        %v1196 = vmul.f32 %v1161, 0.17677669
        %v1197 = vmul.f32 %v1164, 0.17677669
        %v1198 = vmul.f32 %v1167, 0.17677669
        %v1199 = vmul.f32 %v1170, 0.17677669
        %v1200 = vmul.f32 %v1173, 0.17677669
        %v1201 = vmul.f32 %v1176, 0.17677669
        %v1202 = vmul.f32 %v1179, 0.17677669
        %v1203 = vmul.f32 %v1182, 0.17677669
        %v1204 = vmul.f32 %v1185, 0.17677669
        %v1205 = vmul.f32 %v1188, 0.17677669
        %s1206 = scalar_lea.vmem %s2, 128
        %v1207 = vld [vmem:[%s1206] sm:$0xff]
        %v1208 = vld [vmem:[%s1206 + $0x8] sm:$0xff]
        %v1209 = vld [vmem:[%s1206 + $0x10] sm:$0xff]
        %v1210 = vld [vmem:[%s1206 + $0x18] sm:$0xff]
        %v1211 = vld [vmem:[%s1206 + $0x20] sm:$0xff]
        %v1212 = vld [vmem:[%s1206 + $0x28] sm:$0xff]
        %v1213 = vld [vmem:[%s1206 + $0x30] sm:$0xff]
        %v1214 = vld [vmem:[%s1206 + $0x38] sm:$0xff]
        %v1215 = vld [vmem:[%s1206 + $0x40] sm:$0xff]
        %v1216 = vld [vmem:[%s1206 + $0x48] sm:$0xff]
        %v1217 = vld [vmem:[%s1206 + $0x50] sm:$0xff]
        %v1218 = vld [vmem:[%s1206 + $0x58] sm:$0xff]
        %v1219 = vld [vmem:[%s1206 + $0x60] sm:$0xff]
        %v1220 = vld [vmem:[%s1206 + $0x68] sm:$0xff]
        %v1221 = vld [vmem:[%s1206 + $0x70] sm:$0xff]
        %v1222 = vld [vmem:[%s1206 + $0x78] sm:$0xff]
        %1223 = vmatpush.msra.mxu0 %v1222
        %1224 = vmatpush.msra.mxu0 %v1221
        %1225 = vmatpush.msra.mxu0 %v1220
        %1226 = vmatpush.msra.mxu0 %v1219
        %1227 = vmatpush.msra.mxu0 %v1218
        %1228 = vmatpush.msra.mxu0 %v1217
        %1229 = vmatpush.msra.mxu0 %v1216
        %1230 = vmatpush.msra.mxu0 %v1215
        %1231 = vmatpush.msra.mxu0 %v1214
        %1232 = vmatpush.msra.mxu0 %v1213
        %1233 = vmatpush.msra.mxu0 %v1212
        %1234 = vmatpush.msra.mxu0 %v1211
        %1235 = vmatpush.msra.mxu0 %v1210
        %1236 = vmatpush.msra.mxu0 %v1209
        %1237 = vmatpush.msra.mxu0 %v1208
        %1238 = vmatpush.msra.mxu0 %v1207
        %1239 = vmatmul.f32.gmra.mxu0 %v250
        %v1240 = vpop.f32.mrf.mxu0
        %v1241 = vadd.f32 0.0, %v1240
        %1242 = vmatmul.f32.gmra.mxu0 %v251
        %v1243 = vpop.f32.mrf.mxu0
        %v1244 = vadd.f32 0.0, %v1243
        %1245 = vmatmul.f32.gmra.mxu0 %v252
        %v1246 = vpop.f32.mrf.mxu0
        %v1247 = vadd.f32 0.0, %v1246
        %1248 = vmatmul.f32.gmra.mxu0 %v253
        %v1249 = vpop.f32.mrf.mxu0
        %v1250 = vadd.f32 0.0, %v1249
        %1251 = vmatmul.f32.gmra.mxu0 %v254
        %v1252 = vpop.f32.mrf.mxu0
        %v1253 = vadd.f32 0.0, %v1252
        %1254 = vmatmul.f32.gmra.mxu0 %v255
        %v1255 = vpop.f32.mrf.mxu0
        %v1256 = vadd.f32 0.0, %v1255
        %1257 = vmatmul.f32.gmra.mxu0 %v256
        %v1258 = vpop.f32.mrf.mxu0
        %v1259 = vadd.f32 0.0, %v1258
        %1260 = vmatmul.f32.gmra.mxu0 %v257
        %v1261 = vpop.f32.mrf.mxu0
        %v1262 = vadd.f32 0.0, %v1261
        %1263 = vmatmul.f32.gmra.mxu0 %v258
        %v1264 = vpop.f32.mrf.mxu0
        %v1265 = vadd.f32 0.0, %v1264
        %1266 = vmatmul.f32.gmra.mxu0 %v259
        %v1267 = vpop.f32.mrf.mxu0
        %v1268 = vadd.f32 0.0, %v1267
        %1269 = vmatmul.f32.gmra.mxu0 %v260
        %v1270 = vpop.f32.mrf.mxu0
        %v1271 = vadd.f32 0.0, %v1270
        %1272 = vmatmul.f32.gmra.mxu0 %v261
        %v1273 = vpop.f32.mrf.mxu0
        %v1274 = vadd.f32 0.0, %v1273
        %1275 = vmatmul.f32.gmra.mxu0 %v262
        %v1276 = vpop.f32.mrf.mxu0
        %v1277 = vadd.f32 0.0, %v1276
        %1278 = vmatmul.f32.gmra.mxu0 %v263
        %v1279 = vpop.f32.mrf.mxu0
        %v1280 = vadd.f32 0.0, %v1279
        %1281 = vmatmul.f32.gmra.mxu0 %v264
        %v1282 = vpop.f32.mrf.mxu0
        %v1283 = vadd.f32 0.0, %v1282
        %1284 = vmatmul.f32.gmra.mxu0 %v265
        %v1285 = vpop.f32.mrf.mxu0
        %v1286 = vadd.f32 0.0, %v1285
        %1287 = vdwg.mxu0
        %s1288 = scalar_lea.vmem %s3, 128
        %v1289 = vld [vmem:[%s1288] sm:$0xff]
        %v1290 = vld [vmem:[%s1288 + $0x8] sm:$0xff]
        %v1291 = vld [vmem:[%s1288 + $0x10] sm:$0xff]
        %v1292 = vld [vmem:[%s1288 + $0x18] sm:$0xff]
        %v1293 = vld [vmem:[%s1288 + $0x20] sm:$0xff]
        %v1294 = vld [vmem:[%s1288 + $0x28] sm:$0xff]
        %v1295 = vld [vmem:[%s1288 + $0x30] sm:$0xff]
        %v1296 = vld [vmem:[%s1288 + $0x38] sm:$0xff]
        %v1297 = vld [vmem:[%s1288 + $0x40] sm:$0xff]
        %v1298 = vld [vmem:[%s1288 + $0x48] sm:$0xff]
        %v1299 = vld [vmem:[%s1288 + $0x50] sm:$0xff]
        %v1300 = vld [vmem:[%s1288 + $0x58] sm:$0xff]
        %v1301 = vld [vmem:[%s1288 + $0x60] sm:$0xff]
        %v1302 = vld [vmem:[%s1288 + $0x68] sm:$0xff]
        %v1303 = vld [vmem:[%s1288 + $0x70] sm:$0xff]
        %v1304 = vld [vmem:[%s1288 + $0x78] sm:$0xff]
        %1305 = vmatpush.msra.mxu0 %v1304
        %1306 = vmatpush.msra.mxu0 %v1303
        %1307 = vmatpush.msra.mxu0 %v1302
        %1308 = vmatpush.msra.mxu0 %v1301
        %1309 = vmatpush.msra.mxu0 %v1300
        %1310 = vmatpush.msra.mxu0 %v1299
        %1311 = vmatpush.msra.mxu0 %v1298
        %1312 = vmatpush.msra.mxu0 %v1297
        %1313 = vmatpush.msra.mxu0 %v1296
        %1314 = vmatpush.msra.mxu0 %v1295
        %1315 = vmatpush.msra.mxu0 %v1294
        %1316 = vmatpush.msra.mxu0 %v1293
        %1317 = vmatpush.msra.mxu0 %v1292
        %1318 = vmatpush.msra.mxu0 %v1291
        %1319 = vmatpush.msra.mxu0 %v1290
        %1320 = vmatpush.msra.mxu0 %v1289
        %1321 = vmatmul.f32.gmra.mxu0 %v250
        %v1322 = vpop.f32.mrf.mxu0
        %v1323 = vadd.f32 0.0, %v1322
        %1324 = vmatmul.f32.gmra.mxu0 %v251
        %v1325 = vpop.f32.mrf.mxu0
        %v1326 = vadd.f32 0.0, %v1325
        %1327 = vmatmul.f32.gmra.mxu0 %v252
        %v1328 = vpop.f32.mrf.mxu0
        %v1329 = vadd.f32 0.0, %v1328
        %1330 = vmatmul.f32.gmra.mxu0 %v253
        %v1331 = vpop.f32.mrf.mxu0
        %v1332 = vadd.f32 0.0, %v1331
        %1333 = vmatmul.f32.gmra.mxu0 %v254
        %v1334 = vpop.f32.mrf.mxu0
        %v1335 = vadd.f32 0.0, %v1334
        %1336 = vmatmul.f32.gmra.mxu0 %v255
        %v1337 = vpop.f32.mrf.mxu0
        %v1338 = vadd.f32 0.0, %v1337
        %1339 = vmatmul.f32.gmra.mxu0 %v256
        %v1340 = vpop.f32.mrf.mxu0
        %v1341 = vadd.f32 0.0, %v1340
        %1342 = vmatmul.f32.gmra.mxu0 %v257
        %v1343 = vpop.f32.mrf.mxu0
        %v1344 = vadd.f32 0.0, %v1343
        %1345 = vmatmul.f32.gmra.mxu0 %v258
        %v1346 = vpop.f32.mrf.mxu0
        %v1347 = vadd.f32 0.0, %v1346
        %1348 = vmatmul.f32.gmra.mxu0 %v259
        %v1349 = vpop.f32.mrf.mxu0
        %v1350 = vadd.f32 0.0, %v1349
        %1351 = vmatmul.f32.gmra.mxu0 %v260
        %v1352 = vpop.f32.mrf.mxu0
        %v1353 = vadd.f32 0.0, %v1352
        %1354 = vmatmul.f32.gmra.mxu0 %v261
        %v1355 = vpop.f32.mrf.mxu0
        %v1356 = vadd.f32 0.0, %v1355
        %1357 = vmatmul.f32.gmra.mxu0 %v262
        %v1358 = vpop.f32.mrf.mxu0
        %v1359 = vadd.f32 0.0, %v1358
        %1360 = vmatmul.f32.gmra.mxu0 %v263
        %v1361 = vpop.f32.mrf.mxu0
        %v1362 = vadd.f32 0.0, %v1361
        %1363 = vmatmul.f32.gmra.mxu0 %v264
        %v1364 = vpop.f32.mrf.mxu0
        %v1365 = vadd.f32 0.0, %v1364
        %1366 = vmatmul.f32.gmra.mxu0 %v265
        %v1367 = vpop.f32.mrf.mxu0
        %v1368 = vadd.f32 0.0, %v1367
        %1369 = vdwg.mxu0
        %v1371 = vsel %vm525, %v1190, 0
        %v1374 = vsel %vm525, %v1191, 0
        %v1377 = vsel %vm525, %v1192, 0
        %v1380 = vsel %vm525, %v1193, 0
        %v1383 = vsel %vm525, %v1194, 0
        %v1386 = vsel %vm525, %v1195, 0
        %v1389 = vsel %vm525, %v1196, 0
        %v1392 = vsel %vm525, %v1197, 0
        %v1395 = vsel %vm525, %v1198, 0
        %v1398 = vsel %vm525, %v1199, 0
        %v1401 = vsel %vm525, %v1200, 0
        %v1404 = vsel %vm525, %v1201, 0
        %v1407 = vsel %vm525, %v1202, 0
        %v1410 = vsel %vm525, %v1203, 0
        %v1413 = vsel %vm525, %v1204, 0
        %v1416 = vsel %vm525, %v1205, 0
        %v1419 = vsel %vm525, %v1241, 0
        %v1422 = vsel %vm525, %v1244, 0
        %v1425 = vsel %vm525, %v1247, 0
        %v1428 = vsel %vm525, %v1250, 0
        %v1431 = vsel %vm525, %v1253, 0
        %v1434 = vsel %vm525, %v1256, 0
        %v1437 = vsel %vm525, %v1259, 0
        %v1440 = vsel %vm525, %v1262, 0
        %v1443 = vsel %vm525, %v1265, 0
        %v1446 = vsel %vm525, %v1268, 0
        %v1449 = vsel %vm525, %v1271, 0
        %v1452 = vsel %vm525, %v1274, 0
        %v1455 = vsel %vm525, %v1277, 0
        %v1458 = vsel %vm525, %v1280, 0
        %v1461 = vsel %vm525, %v1283, 0
        %v1464 = vsel %vm525, %v1286, 0
        %1466 = vmatpush.xpose.msra.mxu0 %v1464
        %1467 = vmatpush.xpose.msra.mxu0 %v1461
        %1468 = vmatpush.xpose.msra.mxu0 %v1458
        %1469 = vmatpush.xpose.msra.mxu0 %v1455
        %1470 = vmatpush.xpose.msra.mxu0 %v1452
        %1471 = vmatpush.xpose.msra.mxu0 %v1449
        %1472 = vmatpush.xpose.msra.mxu0 %v1446
        %1473 = vmatpush.xpose.msra.mxu0 %v1443
        %1474 = vmatpush.xpose.msra.mxu0 %v1440
        %1475 = vmatpush.xpose.msra.mxu0 %v1437
        %1476 = vmatpush.xpose.msra.mxu0 %v1434
        %1477 = vmatpush.xpose.msra.mxu0 %v1431
        %1478 = vmatpush.xpose.msra.mxu0 %v1428
        %1479 = vmatpush.xpose.msra.mxu0 %v1425
        %1480 = vmatpush.xpose.msra.mxu0 %v1422
        %1481 = vmatpush.xpose.msra.mxu0 %v1419
        %1482 = vmatmul.f32.gmra.mxu0 %v1371
        %v1483 = vpop.f32.mrf.mxu0
        %v1484 = vadd.f32 0.0, %v1483
        %1485 = vmatmul.f32.gmra.mxu0 %v1374
        %v1486 = vpop.f32.mrf.mxu0
        %v1487 = vadd.f32 0.0, %v1486
        %1488 = vmatmul.f32.gmra.mxu0 %v1377
        %v1489 = vpop.f32.mrf.mxu0
        %v1490 = vadd.f32 0.0, %v1489
        %1491 = vmatmul.f32.gmra.mxu0 %v1380
        %v1492 = vpop.f32.mrf.mxu0
        %v1493 = vadd.f32 0.0, %v1492
        %1494 = vmatmul.f32.gmra.mxu0 %v1383
        %v1495 = vpop.f32.mrf.mxu0
        %v1496 = vadd.f32 0.0, %v1495
        %1497 = vmatmul.f32.gmra.mxu0 %v1386
        %v1498 = vpop.f32.mrf.mxu0
        %v1499 = vadd.f32 0.0, %v1498
        %1500 = vmatmul.f32.gmra.mxu0 %v1389
        %v1501 = vpop.f32.mrf.mxu0
        %v1502 = vadd.f32 0.0, %v1501
        %1503 = vmatmul.f32.gmra.mxu0 %v1392
        %v1504 = vpop.f32.mrf.mxu0
        %v1505 = vadd.f32 0.0, %v1504
        %1506 = vmatmul.f32.gmra.mxu0 %v1395
        %v1507 = vpop.f32.mrf.mxu0
        %v1508 = vadd.f32 0.0, %v1507
        %1509 = vmatmul.f32.gmra.mxu0 %v1398
        %v1510 = vpop.f32.mrf.mxu0
        %v1511 = vadd.f32 0.0, %v1510
        %1512 = vmatmul.f32.gmra.mxu0 %v1401
        %v1513 = vpop.f32.mrf.mxu0
        %v1514 = vadd.f32 0.0, %v1513
        %1515 = vmatmul.f32.gmra.mxu0 %v1404
        %v1516 = vpop.f32.mrf.mxu0
        %v1517 = vadd.f32 0.0, %v1516
        %1518 = vmatmul.f32.gmra.mxu0 %v1407
        %v1519 = vpop.f32.mrf.mxu0
        %v1520 = vadd.f32 0.0, %v1519
        %1521 = vmatmul.f32.gmra.mxu0 %v1410
        %v1522 = vpop.f32.mrf.mxu0
        %v1523 = vadd.f32 0.0, %v1522
        %1524 = vmatmul.f32.gmra.mxu0 %v1413
        %v1525 = vpop.f32.mrf.mxu0
        %v1526 = vadd.f32 0.0, %v1525
        %1527 = vmatmul.f32.gmra.mxu0 %v1416
        %v1528 = vpop.f32.mrf.mxu0
        %v1529 = vadd.f32 0.0, %v1528
        %1530 = vdwg.mxu0
        %1531 = vmax.xlane.f32.xlu0 %v1484
        %v1532 = vpop.xlane.xlu0 %1531
        %1533 = vmax.xlane.f32.xlu0 %v1487
        %v1534 = vpop.xlane.xlu0 %1533
        %1535 = vmax.xlane.f32.xlu0 %v1490
        %v1536 = vpop.xlane.xlu0 %1535
        %1537 = vmax.xlane.f32.xlu0 %v1493
        %v1538 = vpop.xlane.xlu0 %1537
        %1539 = vmax.xlane.f32.xlu0 %v1496
        %v1540 = vpop.xlane.xlu0 %1539
        %1541 = vmax.xlane.f32.xlu0 %v1499
        %v1542 = vpop.xlane.xlu0 %1541
        %1543 = vmax.xlane.f32.xlu0 %v1502
        %v1544 = vpop.xlane.xlu0 %1543
        %1545 = vmax.xlane.f32.xlu0 %v1505
        %v1546 = vpop.xlane.xlu0 %1545
        %1547 = vmax.xlane.f32.xlu0 %v1508
        %v1548 = vpop.xlane.xlu0 %1547
        %1549 = vmax.xlane.f32.xlu0 %v1511
        %v1550 = vpop.xlane.xlu0 %1549
        %1551 = vmax.xlane.f32.xlu0 %v1514
        %v1552 = vpop.xlane.xlu0 %1551
        %1553 = vmax.xlane.f32.xlu0 %v1517
        %v1554 = vpop.xlane.xlu0 %1553
        %1555 = vmax.xlane.f32.xlu0 %v1520
        %v1556 = vpop.xlane.xlu0 %1555
        %1557 = vmax.xlane.f32.xlu0 %v1523
        %v1558 = vpop.xlane.xlu0 %1557
        %1559 = vmax.xlane.f32.xlu0 %v1526
        %v1560 = vpop.xlane.xlu0 %1559
        %1561 = vmax.xlane.f32.xlu0 %v1529
        %v1562 = vpop.xlane.xlu0 %1561
        %v1563 = vsub.f32 %v1484, %v1532
        %v1564 = vsub.f32 %v1487, %v1534
        %v1565 = vsub.f32 %v1490, %v1536
        %v1566 = vsub.f32 %v1493, %v1538
        %v1567 = vsub.f32 %v1496, %v1540
        %v1568 = vsub.f32 %v1499, %v1542
        %v1569 = vsub.f32 %v1502, %v1544
        %v1570 = vsub.f32 %v1505, %v1546
        %v1571 = vsub.f32 %v1508, %v1548
        %v1572 = vsub.f32 %v1511, %v1550
        %v1573 = vsub.f32 %v1514, %v1552
        %v1574 = vsub.f32 %v1517, %v1554
        %v1575 = vsub.f32 %v1520, %v1556
        %v1576 = vsub.f32 %v1523, %v1558
        %v1577 = vsub.f32 %v1526, %v1560
        %v1578 = vsub.f32 %v1529, %v1562
        %v1579 = vmul.f32 %v1563, 1.442695
        %v1580 = vpow.pop %v1579
        %v1581 = vmul.f32 %v1564, 1.442695
        %v1582 = vpow.pop %v1581
        %v1583 = vmul.f32 %v1565, 1.442695
        %v1584 = vpow.pop %v1583
        %v1585 = vmul.f32 %v1566, 1.442695
        %v1586 = vpow.pop %v1585
        %v1587 = vmul.f32 %v1567, 1.442695
        %v1588 = vpow.pop %v1587
        %v1589 = vmul.f32 %v1568, 1.442695
        %v1590 = vpow.pop %v1589
        %v1591 = vmul.f32 %v1569, 1.442695
        %v1592 = vpow.pop %v1591
        %v1593 = vmul.f32 %v1570, 1.442695
        %v1594 = vpow.pop %v1593
        %v1595 = vmul.f32 %v1571, 1.442695
        %v1596 = vpow.pop %v1595
        %v1597 = vmul.f32 %v1572, 1.442695
        %v1598 = vpow.pop %v1597
        %v1599 = vmul.f32 %v1573, 1.442695
        %v1600 = vpow.pop %v1599
        %v1601 = vmul.f32 %v1574, 1.442695
        %v1602 = vpow.pop %v1601
        %v1603 = vmul.f32 %v1575, 1.442695
        %v1604 = vpow.pop %v1603
        %v1605 = vmul.f32 %v1576, 1.442695
        %v1606 = vpow.pop %v1605
        %v1607 = vmul.f32 %v1577, 1.442695
        %v1608 = vpow.pop %v1607
        %v1609 = vmul.f32 %v1578, 1.442695
        %v1610 = vpow.pop %v1609
        %1611 = vadd.xlane.f32.xlu0 %v1580
        %v1612 = vpop.xlane.xlu0 %1611
        %1613 = vadd.xlane.f32.xlu0 %v1582
        %v1614 = vpop.xlane.xlu0 %1613
        %1615 = vadd.xlane.f32.xlu0 %v1584
        %v1616 = vpop.xlane.xlu0 %1615
        %1617 = vadd.xlane.f32.xlu0 %v1586
        %v1618 = vpop.xlane.xlu0 %1617
        %1619 = vadd.xlane.f32.xlu0 %v1588
        %v1620 = vpop.xlane.xlu0 %1619
        %1621 = vadd.xlane.f32.xlu0 %v1590
        %v1622 = vpop.xlane.xlu0 %1621
        %1623 = vadd.xlane.f32.xlu0 %v1592
        %v1624 = vpop.xlane.xlu0 %1623
        %1625 = vadd.xlane.f32.xlu0 %v1594
        %v1626 = vpop.xlane.xlu0 %1625
        %1627 = vadd.xlane.f32.xlu0 %v1596
        %v1628 = vpop.xlane.xlu0 %1627
        %1629 = vadd.xlane.f32.xlu0 %v1598
        %v1630 = vpop.xlane.xlu0 %1629
        %1631 = vadd.xlane.f32.xlu0 %v1600
        %v1632 = vpop.xlane.xlu0 %1631
        %1633 = vadd.xlane.f32.xlu0 %v1602
        %v1634 = vpop.xlane.xlu0 %1633
        %1635 = vadd.xlane.f32.xlu0 %v1604
        %v1636 = vpop.xlane.xlu0 %1635
        %1637 = vadd.xlane.f32.xlu0 %v1606
        %v1638 = vpop.xlane.xlu0 %1637
        %1639 = vadd.xlane.f32.xlu0 %v1608
        %v1640 = vpop.xlane.xlu0 %1639
        %1641 = vadd.xlane.f32.xlu0 %v1610
        %v1642 = vpop.xlane.xlu0 %1641
        %v1643 = vrcp.pop %v1612
        %v1644 = vmul.f32 %v1612, %v1643
        %v1645 = vsub.f32 1.0, %v1644
        %v1646 = vmul.f32 %v1643, %v1645
        %v1647 = vadd.f32 %v1643, %v1646
        %vm1648 = vweird.f32 %v1612
        %vm1649 = vweird.f32 %v1643
        %vm1650 = vmor %vm1648, %vm1649
        %v1651 = vsel %vm1650, %v1643, %v1647
        %v1652 = vand.u32 2147483647, %v1612
        %vm1653 = vcmp.eq.f32.partialorder %v1652, 8.507059e+37
        %v1654 = vand.u32 %v1612, 2147483648
        %v1655 = vor.u32 1.1754944e-38, %v1654
        %v1656 = vsel %vm1653, %v1655, %v1651
        %v1657 = vmul.f32 %v1580, %v1656
        %v1658 = vrcp.pop %v1614
        %v1659 = vmul.f32 %v1614, %v1658
        %v1660 = vsub.f32 1.0, %v1659
        %v1661 = vmul.f32 %v1658, %v1660
        %v1662 = vadd.f32 %v1658, %v1661
        %vm1663 = vweird.f32 %v1614
        %vm1664 = vweird.f32 %v1658
        %vm1665 = vmor %vm1663, %vm1664
        %v1666 = vsel %vm1665, %v1658, %v1662
        %v1667 = vand.u32 2147483647, %v1614
        %vm1668 = vcmp.eq.f32.partialorder %v1667, 8.507059e+37
        %v1669 = vand.u32 %v1614, 2147483648
        %v1670 = vor.u32 1.1754944e-38, %v1669
        %v1671 = vsel %vm1668, %v1670, %v1666
        %v1672 = vmul.f32 %v1582, %v1671
        %v1673 = vrcp.pop %v1616
        %v1674 = vmul.f32 %v1616, %v1673
        %v1675 = vsub.f32 1.0, %v1674
        %v1676 = vmul.f32 %v1673, %v1675
        %v1677 = vadd.f32 %v1673, %v1676
        %vm1678 = vweird.f32 %v1616
        %vm1679 = vweird.f32 %v1673
        %vm1680 = vmor %vm1678, %vm1679
        %v1681 = vsel %vm1680, %v1673, %v1677
        %v1682 = vand.u32 2147483647, %v1616
        %vm1683 = vcmp.eq.f32.partialorder %v1682, 8.507059e+37
        %v1684 = vand.u32 %v1616, 2147483648
        %v1685 = vor.u32 1.1754944e-38, %v1684
        %v1686 = vsel %vm1683, %v1685, %v1681
        %v1687 = vmul.f32 %v1584, %v1686
        %v1688 = vrcp.pop %v1618
        %v1689 = vmul.f32 %v1618, %v1688
        %v1690 = vsub.f32 1.0, %v1689
        %v1691 = vmul.f32 %v1688, %v1690
        %v1692 = vadd.f32 %v1688, %v1691
        %vm1693 = vweird.f32 %v1618
        %vm1694 = vweird.f32 %v1688
        %vm1695 = vmor %vm1693, %vm1694
        %v1696 = vsel %vm1695, %v1688, %v1692
        %v1697 = vand.u32 2147483647, %v1618
        %vm1698 = vcmp.eq.f32.partialorder %v1697, 8.507059e+37
        %v1699 = vand.u32 %v1618, 2147483648
        %v1700 = vor.u32 1.1754944e-38, %v1699
        %v1701 = vsel %vm1698, %v1700, %v1696
        %v1702 = vmul.f32 %v1586, %v1701
        %v1703 = vrcp.pop %v1620
        %v1704 = vmul.f32 %v1620, %v1703
        %v1705 = vsub.f32 1.0, %v1704
        %v1706 = vmul.f32 %v1703, %v1705
        %v1707 = vadd.f32 %v1703, %v1706
        %vm1708 = vweird.f32 %v1620
        %vm1709 = vweird.f32 %v1703
        %vm1710 = vmor %vm1708, %vm1709
        %v1711 = vsel %vm1710, %v1703, %v1707
        %v1712 = vand.u32 2147483647, %v1620
        %vm1713 = vcmp.eq.f32.partialorder %v1712, 8.507059e+37
        %v1714 = vand.u32 %v1620, 2147483648
        %v1715 = vor.u32 1.1754944e-38, %v1714
        %v1716 = vsel %vm1713, %v1715, %v1711
        %v1717 = vmul.f32 %v1588, %v1716
        %v1718 = vrcp.pop %v1622
        %v1719 = vmul.f32 %v1622, %v1718
        %v1720 = vsub.f32 1.0, %v1719
        %v1721 = vmul.f32 %v1718, %v1720
        %v1722 = vadd.f32 %v1718, %v1721
        %vm1723 = vweird.f32 %v1622
        %vm1724 = vweird.f32 %v1718
        %vm1725 = vmor %vm1723, %vm1724
        %v1726 = vsel %vm1725, %v1718, %v1722
        %v1727 = vand.u32 2147483647, %v1622
        %vm1728 = vcmp.eq.f32.partialorder %v1727, 8.507059e+37
        %v1729 = vand.u32 %v1622, 2147483648
        %v1730 = vor.u32 1.1754944e-38, %v1729
        %v1731 = vsel %vm1728, %v1730, %v1726
        %v1732 = vmul.f32 %v1590, %v1731
        %v1733 = vrcp.pop %v1624
        %v1734 = vmul.f32 %v1624, %v1733
        %v1735 = vsub.f32 1.0, %v1734
        %v1736 = vmul.f32 %v1733, %v1735
        %v1737 = vadd.f32 %v1733, %v1736
        %vm1738 = vweird.f32 %v1624
        %vm1739 = vweird.f32 %v1733
        %vm1740 = vmor %vm1738, %vm1739
        %v1741 = vsel %vm1740, %v1733, %v1737
        %v1742 = vand.u32 2147483647, %v1624
        %vm1743 = vcmp.eq.f32.partialorder %v1742, 8.507059e+37
        %v1744 = vand.u32 %v1624, 2147483648
        %v1745 = vor.u32 1.1754944e-38, %v1744
        %v1746 = vsel %vm1743, %v1745, %v1741
        %v1747 = vmul.f32 %v1592, %v1746
        %v1748 = vrcp.pop %v1626
        %v1749 = vmul.f32 %v1626, %v1748
        %v1750 = vsub.f32 1.0, %v1749
        %v1751 = vmul.f32 %v1748, %v1750
        %v1752 = vadd.f32 %v1748, %v1751
        %vm1753 = vweird.f32 %v1626
        %vm1754 = vweird.f32 %v1748
        %vm1755 = vmor %vm1753, %vm1754
        %v1756 = vsel %vm1755, %v1748, %v1752
        %v1757 = vand.u32 2147483647, %v1626
        %vm1758 = vcmp.eq.f32.partialorder %v1757, 8.507059e+37
        %v1759 = vand.u32 %v1626, 2147483648
        %v1760 = vor.u32 1.1754944e-38, %v1759
        %v1761 = vsel %vm1758, %v1760, %v1756
        %v1762 = vmul.f32 %v1594, %v1761
        %v1763 = vrcp.pop %v1628
        %v1764 = vmul.f32 %v1628, %v1763
        %v1765 = vsub.f32 1.0, %v1764
        %v1766 = vmul.f32 %v1763, %v1765
        %v1767 = vadd.f32 %v1763, %v1766
        %vm1768 = vweird.f32 %v1628
        %vm1769 = vweird.f32 %v1763
        %vm1770 = vmor %vm1768, %vm1769
        %v1771 = vsel %vm1770, %v1763, %v1767
        %v1772 = vand.u32 2147483647, %v1628
        %vm1773 = vcmp.eq.f32.partialorder %v1772, 8.507059e+37
        %v1774 = vand.u32 %v1628, 2147483648
        %v1775 = vor.u32 1.1754944e-38, %v1774
        %v1776 = vsel %vm1773, %v1775, %v1771
        %v1777 = vmul.f32 %v1596, %v1776
        %v1778 = vrcp.pop %v1630
        %v1779 = vmul.f32 %v1630, %v1778
        %v1780 = vsub.f32 1.0, %v1779
        %v1781 = vmul.f32 %v1778, %v1780
        %v1782 = vadd.f32 %v1778, %v1781
        %vm1783 = vweird.f32 %v1630
        %vm1784 = vweird.f32 %v1778
        %vm1785 = vmor %vm1783, %vm1784
        %v1786 = vsel %vm1785, %v1778, %v1782
        %v1787 = vand.u32 2147483647, %v1630
        %vm1788 = vcmp.eq.f32.partialorder %v1787, 8.507059e+37
        %v1789 = vand.u32 %v1630, 2147483648
        %v1790 = vor.u32 1.1754944e-38, %v1789
        %v1791 = vsel %vm1788, %v1790, %v1786
        %v1792 = vmul.f32 %v1598, %v1791
        %v1793 = vrcp.pop %v1632
        %v1794 = vmul.f32 %v1632, %v1793
        %v1795 = vsub.f32 1.0, %v1794
        %v1796 = vmul.f32 %v1793, %v1795
        %v1797 = vadd.f32 %v1793, %v1796
        %vm1798 = vweird.f32 %v1632
        %vm1799 = vweird.f32 %v1793
        %vm1800 = vmor %vm1798, %vm1799
        %v1801 = vsel %vm1800, %v1793, %v1797
        %v1802 = vand.u32 2147483647, %v1632
        %vm1803 = vcmp.eq.f32.partialorder %v1802, 8.507059e+37
        %v1804 = vand.u32 %v1632, 2147483648
        %v1805 = vor.u32 1.1754944e-38, %v1804
        %v1806 = vsel %vm1803, %v1805, %v1801
        %v1807 = vmul.f32 %v1600, %v1806
        %v1808 = vrcp.pop %v1634
        %v1809 = vmul.f32 %v1634, %v1808
        %v1810 = vsub.f32 1.0, %v1809
        %v1811 = vmul.f32 %v1808, %v1810
        %v1812 = vadd.f32 %v1808, %v1811
        %vm1813 = vweird.f32 %v1634
        %vm1814 = vweird.f32 %v1808
        %vm1815 = vmor %vm1813, %vm1814
        %v1816 = vsel %vm1815, %v1808, %v1812
        %v1817 = vand.u32 2147483647, %v1634
        %vm1818 = vcmp.eq.f32.partialorder %v1817, 8.507059e+37
        %v1819 = vand.u32 %v1634, 2147483648
        %v1820 = vor.u32 1.1754944e-38, %v1819
        %v1821 = vsel %vm1818, %v1820, %v1816
        %v1822 = vmul.f32 %v1602, %v1821
        %v1823 = vrcp.pop %v1636
        %v1824 = vmul.f32 %v1636, %v1823
        %v1825 = vsub.f32 1.0, %v1824
        %v1826 = vmul.f32 %v1823, %v1825
        %v1827 = vadd.f32 %v1823, %v1826
        %vm1828 = vweird.f32 %v1636
        %vm1829 = vweird.f32 %v1823
        %vm1830 = vmor %vm1828, %vm1829
        %v1831 = vsel %vm1830, %v1823, %v1827
        %v1832 = vand.u32 2147483647, %v1636
        %vm1833 = vcmp.eq.f32.partialorder %v1832, 8.507059e+37
        %v1834 = vand.u32 %v1636, 2147483648
        %v1835 = vor.u32 1.1754944e-38, %v1834
        %v1836 = vsel %vm1833, %v1835, %v1831
        %v1837 = vmul.f32 %v1604, %v1836
        %v1838 = vrcp.pop %v1638
        %v1839 = vmul.f32 %v1638, %v1838
        %v1840 = vsub.f32 1.0, %v1839
        %v1841 = vmul.f32 %v1838, %v1840
        %v1842 = vadd.f32 %v1838, %v1841
        %vm1843 = vweird.f32 %v1638
        %vm1844 = vweird.f32 %v1838
        %vm1845 = vmor %vm1843, %vm1844
        %v1846 = vsel %vm1845, %v1838, %v1842
        %v1847 = vand.u32 2147483647, %v1638
        %vm1848 = vcmp.eq.f32.partialorder %v1847, 8.507059e+37
        %v1849 = vand.u32 %v1638, 2147483648
        %v1850 = vor.u32 1.1754944e-38, %v1849
        %v1851 = vsel %vm1848, %v1850, %v1846
        %v1852 = vmul.f32 %v1606, %v1851
        %v1853 = vrcp.pop %v1640
        %v1854 = vmul.f32 %v1640, %v1853
        %v1855 = vsub.f32 1.0, %v1854
        %v1856 = vmul.f32 %v1853, %v1855
        %v1857 = vadd.f32 %v1853, %v1856
        %vm1858 = vweird.f32 %v1640
        %vm1859 = vweird.f32 %v1853
        %vm1860 = vmor %vm1858, %vm1859
        %v1861 = vsel %vm1860, %v1853, %v1857
        %v1862 = vand.u32 2147483647, %v1640
        %vm1863 = vcmp.eq.f32.partialorder %v1862, 8.507059e+37
        %v1864 = vand.u32 %v1640, 2147483648
        %v1865 = vor.u32 1.1754944e-38, %v1864
        %v1866 = vsel %vm1863, %v1865, %v1861
        %v1867 = vmul.f32 %v1608, %v1866
        %v1868 = vrcp.pop %v1642
        %v1869 = vmul.f32 %v1642, %v1868
        %v1870 = vsub.f32 1.0, %v1869
        %v1871 = vmul.f32 %v1868, %v1870
        %v1872 = vadd.f32 %v1868, %v1871
        %vm1873 = vweird.f32 %v1642
        %vm1874 = vweird.f32 %v1868
        %vm1875 = vmor %vm1873, %vm1874
        %v1876 = vsel %vm1875, %v1868, %v1872
        %v1877 = vand.u32 2147483647, %v1642
        %vm1878 = vcmp.eq.f32.partialorder %v1877, 8.507059e+37
        %v1879 = vand.u32 %v1642, 2147483648
        %v1880 = vor.u32 1.1754944e-38, %v1879
        %v1881 = vsel %vm1878, %v1880, %v1876
        %v1882 = vmul.f32 %v1610, %v1881
        %1883 = vmatpush.msra.mxu0 %v1368
        %1884 = vmatpush.msra.mxu0 %v1365
        %1885 = vmatpush.msra.mxu0 %v1362
        %1886 = vmatpush.msra.mxu0 %v1359
        %1887 = vmatpush.msra.mxu0 %v1356
        %1888 = vmatpush.msra.mxu0 %v1353
        %1889 = vmatpush.msra.mxu0 %v1350
        %1890 = vmatpush.msra.mxu0 %v1347
        %1891 = vmatpush.msra.mxu0 %v1344
        %1892 = vmatpush.msra.mxu0 %v1341
        %1893 = vmatpush.msra.mxu0 %v1338
        %1894 = vmatpush.msra.mxu0 %v1335
        %1895 = vmatpush.msra.mxu0 %v1332
        %1896 = vmatpush.msra.mxu0 %v1329
        %1897 = vmatpush.msra.mxu0 %v1326
        %1898 = vmatpush.msra.mxu0 %v1323
        %1899 = vmatmul.f32.gmra.mxu0 %v1657
        %v1900 = vpop.f32.mrf.mxu0
        %v1901 = vadd.f32 0.0, %v1900
        %1902 = vmatmul.f32.gmra.mxu0 %v1672
        %v1903 = vpop.f32.mrf.mxu0
        %v1904 = vadd.f32 0.0, %v1903
        %1905 = vmatmul.f32.gmra.mxu0 %v1687
        %v1906 = vpop.f32.mrf.mxu0
        %v1907 = vadd.f32 0.0, %v1906
        %1908 = vmatmul.f32.gmra.mxu0 %v1702
        %v1909 = vpop.f32.mrf.mxu0
        %v1910 = vadd.f32 0.0, %v1909
        %1911 = vmatmul.f32.gmra.mxu0 %v1717
        %v1912 = vpop.f32.mrf.mxu0
        %v1913 = vadd.f32 0.0, %v1912
        %1914 = vmatmul.f32.gmra.mxu0 %v1732
        %v1915 = vpop.f32.mrf.mxu0
        %v1916 = vadd.f32 0.0, %v1915
        %1917 = vmatmul.f32.gmra.mxu0 %v1747
        %v1918 = vpop.f32.mrf.mxu0
        %v1919 = vadd.f32 0.0, %v1918
        %1920 = vmatmul.f32.gmra.mxu0 %v1762
        %v1921 = vpop.f32.mrf.mxu0
        %v1922 = vadd.f32 0.0, %v1921
        %1923 = vmatmul.f32.gmra.mxu0 %v1777
        %v1924 = vpop.f32.mrf.mxu0
        %v1925 = vadd.f32 0.0, %v1924
        %1926 = vmatmul.f32.gmra.mxu0 %v1792
        %v1927 = vpop.f32.mrf.mxu0
        %v1928 = vadd.f32 0.0, %v1927
        %1929 = vmatmul.f32.gmra.mxu0 %v1807
        %v1930 = vpop.f32.mrf.mxu0
        %v1931 = vadd.f32 0.0, %v1930
        %1932 = vmatmul.f32.gmra.mxu0 %v1822
        %v1933 = vpop.f32.mrf.mxu0
        %v1934 = vadd.f32 0.0, %v1933
        %1935 = vmatmul.f32.gmra.mxu0 %v1837
        %v1936 = vpop.f32.mrf.mxu0
        %v1937 = vadd.f32 0.0, %v1936
        %1938 = vmatmul.f32.gmra.mxu0 %v1852
        %v1939 = vpop.f32.mrf.mxu0
        %v1940 = vadd.f32 0.0, %v1939
        %1941 = vmatmul.f32.gmra.mxu0 %v1867
        %v1942 = vpop.f32.mrf.mxu0
        %v1943 = vadd.f32 0.0, %v1942
        %1944 = vmatmul.f32.gmra.mxu0 %v1882
        %v1945 = vpop.f32.mrf.mxu0
        %v1946 = vadd.f32 0.0, %v1945
        %1947 = vdwg.mxu0
        %s1948 = scalar_lea.vmem %s4, 32
        %v1949 = vld [vmem:[%s1948] sm:$0xff]
        %v1950 = vld [vmem:[%s1948 + $0x8] sm:$0xff]
        %v1951 = vld [vmem:[%s1948 + $0x10] sm:$0xff]
        %v1952 = vld [vmem:[%s1948 + $0x18] sm:$0xff]
        %v1954 = vsel %vm525, %v1901, 0
        %v1957 = vsel %vm525, %v1904, 0
        %v1960 = vsel %vm525, %v1907, 0
        %v1963 = vsel %vm525, %v1910, 0
        %v1966 = vsel %vm525, %v1913, 0
        %v1969 = vsel %vm525, %v1916, 0
        %v1972 = vsel %vm525, %v1919, 0
        %v1975 = vsel %vm525, %v1922, 0
        %v1978 = vsel %vm525, %v1925, 0
        %v1981 = vsel %vm525, %v1928, 0
        %v1984 = vsel %vm525, %v1931, 0
        %v1987 = vsel %vm525, %v1934, 0
        %v1990 = vsel %vm525, %v1937, 0
        %v1993 = vsel %vm525, %v1940, 0
        %v1996 = vsel %vm525, %v1943, 0
        %v1999 = vsel %vm525, %v1946, 0
        %2001 = vmatpush.msra.mxu0 0.0
        %2002 = vmatpush.msra.mxu0 0.0
        %2003 = vmatpush.msra.mxu0 0.0
        %2004 = vmatpush.msra.mxu0 0.0
        %2005 = vmatpush.msra.mxu0 0.0
        %2006 = vmatpush.msra.mxu0 0.0
        %2007 = vmatpush.msra.mxu0 0.0
        %2008 = vmatpush.msra.mxu0 0.0
        %2009 = vmatpush.msra.mxu0 0.0
        %2010 = vmatpush.msra.mxu0 0.0
        %2011 = vmatpush.msra.mxu0 0.0
        %2012 = vmatpush.msra.mxu0 0.0
        %2013 = vmatpush.msra.mxu0 %v1952
        %2014 = vmatpush.msra.mxu0 %v1951
        %2015 = vmatpush.msra.mxu0 %v1950
        %2016 = vmatpush.msra.mxu0 %v1949
        %2017 = vmatmul.f32.gmra.mxu0 %v1954
        %v2018 = vpop.f32.mrf.mxu0
        %v2019 = vadd.f32 0.0, %v2018
        %2020 = vmatmul.f32.gmra.mxu0 %v1957
        %v2021 = vpop.f32.mrf.mxu0
        %v2022 = vadd.f32 0.0, %v2021
        %2023 = vmatmul.f32.gmra.mxu0 %v1960
        %v2024 = vpop.f32.mrf.mxu0
        %v2025 = vadd.f32 0.0, %v2024
        %2026 = vmatmul.f32.gmra.mxu0 %v1963
        %v2027 = vpop.f32.mrf.mxu0
        %v2028 = vadd.f32 0.0, %v2027
        %2029 = vmatmul.f32.gmra.mxu0 %v1966
        %v2030 = vpop.f32.mrf.mxu0
        %v2031 = vadd.f32 0.0, %v2030
        %2032 = vmatmul.f32.gmra.mxu0 %v1969
        %v2033 = vpop.f32.mrf.mxu0
        %v2034 = vadd.f32 0.0, %v2033
        %2035 = vmatmul.f32.gmra.mxu0 %v1972
        %v2036 = vpop.f32.mrf.mxu0
        %v2037 = vadd.f32 0.0, %v2036
        %2038 = vmatmul.f32.gmra.mxu0 %v1975
        %v2039 = vpop.f32.mrf.mxu0
        %v2040 = vadd.f32 0.0, %v2039
        %2041 = vmatmul.f32.gmra.mxu0 %v1978
        %v2042 = vpop.f32.mrf.mxu0
        %v2043 = vadd.f32 0.0, %v2042
        %2044 = vmatmul.f32.gmra.mxu0 %v1981
        %v2045 = vpop.f32.mrf.mxu0
        %v2046 = vadd.f32 0.0, %v2045
        %2047 = vmatmul.f32.gmra.mxu0 %v1984
        %v2048 = vpop.f32.mrf.mxu0
        %v2049 = vadd.f32 0.0, %v2048
        %2050 = vmatmul.f32.gmra.mxu0 %v1987
        %v2051 = vpop.f32.mrf.mxu0
        %v2052 = vadd.f32 0.0, %v2051
        %2053 = vmatmul.f32.gmra.mxu0 %v1990
        %v2054 = vpop.f32.mrf.mxu0
        %v2055 = vadd.f32 0.0, %v2054
        %2056 = vmatmul.f32.gmra.mxu0 %v1993
        %v2057 = vpop.f32.mrf.mxu0
        %v2058 = vadd.f32 0.0, %v2057
        %2059 = vmatmul.f32.gmra.mxu0 %v1996
        %v2060 = vpop.f32.mrf.mxu0
        %v2061 = vadd.f32 0.0, %v2060
        %2062 = vmatmul.f32.gmra.mxu0 %v1999
        %v2063 = vpop.f32.mrf.mxu0
        %v2064 = vadd.f32 0.0, %v2063
        %2065 = vdwg.mxu0
        %v2067 = vsel %vm525, %v1057, 0
        %v2070 = vsel %vm525, %v1060, 0
        %v2073 = vsel %vm525, %v1063, 0
        %v2076 = vsel %vm525, %v1066, 0
        %v2079 = vsel %vm525, %v1069, 0
        %v2082 = vsel %vm525, %v1072, 0
        %v2085 = vsel %vm525, %v1075, 0
        %v2088 = vsel %vm525, %v1078, 0
        %v2091 = vsel %vm525, %v1081, 0
        %v2094 = vsel %vm525, %v1084, 0
        %v2097 = vsel %vm525, %v1087, 0
        %v2100 = vsel %vm525, %v1090, 0
        %v2103 = vsel %vm525, %v1093, 0
        %v2106 = vsel %vm525, %v1096, 0
        %v2109 = vsel %vm525, %v1099, 0
        %v2112 = vsel %vm525, %v1102, 0
        %2114 = vmatpush.msra.mxu0 0.0
        %2115 = vmatpush.msra.mxu0 0.0
        %2116 = vmatpush.msra.mxu0 0.0
        %2117 = vmatpush.msra.mxu0 0.0
        %2118 = vmatpush.msra.mxu0 0.0
        %2119 = vmatpush.msra.mxu0 0.0
        %2120 = vmatpush.msra.mxu0 0.0
        %2121 = vmatpush.msra.mxu0 0.0
        %2122 = vmatpush.msra.mxu0 0.0
        %2123 = vmatpush.msra.mxu0 0.0
        %2124 = vmatpush.msra.mxu0 0.0
        %2125 = vmatpush.msra.mxu0 0.0
        %2126 = vmatpush.msra.mxu0 %v1107
        %2127 = vmatpush.msra.mxu0 %v1106
        %2128 = vmatpush.msra.mxu0 %v1105
        %2129 = vmatpush.msra.mxu0 %v1104
        %2130 = vmatmul.f32.gmra.mxu0 %v2067
        %v2131 = vpop.f32.mrf.mxu0
        %v2132 = vadd.f32 %v2019, %v2131
        %2133 = vmatmul.f32.gmra.mxu0 %v2070
        %v2134 = vpop.f32.mrf.mxu0
        %v2135 = vadd.f32 %v2022, %v2134
        %2136 = vmatmul.f32.gmra.mxu0 %v2073
        %v2137 = vpop.f32.mrf.mxu0
        %v2138 = vadd.f32 %v2025, %v2137
        %2139 = vmatmul.f32.gmra.mxu0 %v2076
        %v2140 = vpop.f32.mrf.mxu0
        %v2141 = vadd.f32 %v2028, %v2140
        %2142 = vmatmul.f32.gmra.mxu0 %v2079
        %v2143 = vpop.f32.mrf.mxu0
        %v2144 = vadd.f32 %v2031, %v2143
        %2145 = vmatmul.f32.gmra.mxu0 %v2082
        %v2146 = vpop.f32.mrf.mxu0
        %v2147 = vadd.f32 %v2034, %v2146
        %2148 = vmatmul.f32.gmra.mxu0 %v2085
        %v2149 = vpop.f32.mrf.mxu0
        %v2150 = vadd.f32 %v2037, %v2149
        %2151 = vmatmul.f32.gmra.mxu0 %v2088
        %v2152 = vpop.f32.mrf.mxu0
        %v2153 = vadd.f32 %v2040, %v2152
        %2154 = vmatmul.f32.gmra.mxu0 %v2091
        %v2155 = vpop.f32.mrf.mxu0
        %v2156 = vadd.f32 %v2043, %v2155
        %2157 = vmatmul.f32.gmra.mxu0 %v2094
        %v2158 = vpop.f32.mrf.mxu0
        %v2159 = vadd.f32 %v2046, %v2158
        %2160 = vmatmul.f32.gmra.mxu0 %v2097
        %v2161 = vpop.f32.mrf.mxu0
        %v2162 = vadd.f32 %v2049, %v2161
        %2163 = vmatmul.f32.gmra.mxu0 %v2100
        %v2164 = vpop.f32.mrf.mxu0
        %v2165 = vadd.f32 %v2052, %v2164
        %2166 = vmatmul.f32.gmra.mxu0 %v2103
        %v2167 = vpop.f32.mrf.mxu0
        %v2168 = vadd.f32 %v2055, %v2167
        %2169 = vmatmul.f32.gmra.mxu0 %v2106
        %v2170 = vpop.f32.mrf.mxu0
        %v2171 = vadd.f32 %v2058, %v2170
        %2172 = vmatmul.f32.gmra.mxu0 %v2109
        %v2173 = vpop.f32.mrf.mxu0
        %v2174 = vadd.f32 %v2061, %v2173
        %2175 = vmatmul.f32.gmra.mxu0 %v2112
        %v2176 = vpop.f32.mrf.mxu0
        %v2177 = vadd.f32 %v2064, %v2176
        %2178 = vdwg.mxu0
        %s2179 = scalar_lea.vmem %s1, 256
        %v2180 = vld [vmem:[%s2179] sm:$0xff]
        %v2181 = vld [vmem:[%s2179 + $0x8] sm:$0xff]
        %v2182 = vld [vmem:[%s2179 + $0x10] sm:$0xff]
        %v2183 = vld [vmem:[%s2179 + $0x18] sm:$0xff]
        %v2184 = vld [vmem:[%s2179 + $0x20] sm:$0xff]
        %v2185 = vld [vmem:[%s2179 + $0x28] sm:$0xff]
        %v2186 = vld [vmem:[%s2179 + $0x30] sm:$0xff]
        %v2187 = vld [vmem:[%s2179 + $0x38] sm:$0xff]
        %v2188 = vld [vmem:[%s2179 + $0x40] sm:$0xff]
        %v2189 = vld [vmem:[%s2179 + $0x48] sm:$0xff]
        %v2190 = vld [vmem:[%s2179 + $0x50] sm:$0xff]
        %v2191 = vld [vmem:[%s2179 + $0x58] sm:$0xff]
        %v2192 = vld [vmem:[%s2179 + $0x60] sm:$0xff]
        %v2193 = vld [vmem:[%s2179 + $0x68] sm:$0xff]
        %v2194 = vld [vmem:[%s2179 + $0x70] sm:$0xff]
        %v2195 = vld [vmem:[%s2179 + $0x78] sm:$0xff]
        %2196 = vmatpush.msra.mxu0 %v2195
        %2197 = vmatpush.msra.mxu0 %v2194
        %2198 = vmatpush.msra.mxu0 %v2193
        %2199 = vmatpush.msra.mxu0 %v2192
        %2200 = vmatpush.msra.mxu0 %v2191
        %2201 = vmatpush.msra.mxu0 %v2190
        %2202 = vmatpush.msra.mxu0 %v2189
        %2203 = vmatpush.msra.mxu0 %v2188
        %2204 = vmatpush.msra.mxu0 %v2187
        %2205 = vmatpush.msra.mxu0 %v2186
        %2206 = vmatpush.msra.mxu0 %v2185
        %2207 = vmatpush.msra.mxu0 %v2184
        %2208 = vmatpush.msra.mxu0 %v2183
        %2209 = vmatpush.msra.mxu0 %v2182
        %2210 = vmatpush.msra.mxu0 %v2181
        %2211 = vmatpush.msra.mxu0 %v2180
        %2212 = vmatmul.f32.gmra.mxu0 %v250
        %v2213 = vpop.f32.mrf.mxu0
        %v2214 = vadd.f32 0.0, %v2213
        %2215 = vmatmul.f32.gmra.mxu0 %v251
        %v2216 = vpop.f32.mrf.mxu0
        %v2217 = vadd.f32 0.0, %v2216
        %2218 = vmatmul.f32.gmra.mxu0 %v252
        %v2219 = vpop.f32.mrf.mxu0
        %v2220 = vadd.f32 0.0, %v2219
        %2221 = vmatmul.f32.gmra.mxu0 %v253
        %v2222 = vpop.f32.mrf.mxu0
        %v2223 = vadd.f32 0.0, %v2222
        %2224 = vmatmul.f32.gmra.mxu0 %v254
        %v2225 = vpop.f32.mrf.mxu0
        %v2226 = vadd.f32 0.0, %v2225
        %2227 = vmatmul.f32.gmra.mxu0 %v255
        %v2228 = vpop.f32.mrf.mxu0
        %v2229 = vadd.f32 0.0, %v2228
        %2230 = vmatmul.f32.gmra.mxu0 %v256
        %v2231 = vpop.f32.mrf.mxu0
        %v2232 = vadd.f32 0.0, %v2231
        %2233 = vmatmul.f32.gmra.mxu0 %v257
        %v2234 = vpop.f32.mrf.mxu0
        %v2235 = vadd.f32 0.0, %v2234
        %2236 = vmatmul.f32.gmra.mxu0 %v258
        %v2237 = vpop.f32.mrf.mxu0
        %v2238 = vadd.f32 0.0, %v2237
        %2239 = vmatmul.f32.gmra.mxu0 %v259
        %v2240 = vpop.f32.mrf.mxu0
        %v2241 = vadd.f32 0.0, %v2240
        %2242 = vmatmul.f32.gmra.mxu0 %v260
        %v2243 = vpop.f32.mrf.mxu0
        %v2244 = vadd.f32 0.0, %v2243
        %2245 = vmatmul.f32.gmra.mxu0 %v261
        %v2246 = vpop.f32.mrf.mxu0
        %v2247 = vadd.f32 0.0, %v2246
        %2248 = vmatmul.f32.gmra.mxu0 %v262
        %v2249 = vpop.f32.mrf.mxu0
        %v2250 = vadd.f32 0.0, %v2249
        %2251 = vmatmul.f32.gmra.mxu0 %v263
        %v2252 = vpop.f32.mrf.mxu0
        %v2253 = vadd.f32 0.0, %v2252
        %2254 = vmatmul.f32.gmra.mxu0 %v264
        %v2255 = vpop.f32.mrf.mxu0
        %v2256 = vadd.f32 0.0, %v2255
        %2257 = vmatmul.f32.gmra.mxu0 %v265
        %v2258 = vpop.f32.mrf.mxu0
        %v2259 = vadd.f32 0.0, %v2258
        %2260 = vdwg.mxu0
        %v2261 = vmul.f32 %v2214, 0.17677669
        %v2262 = vmul.f32 %v2217, 0.17677669
        %v2263 = vmul.f32 %v2220, 0.17677669
        %v2264 = vmul.f32 %v2223, 0.17677669
        %v2265 = vmul.f32 %v2226, 0.17677669
        %v2266 = vmul.f32 %v2229, 0.17677669
        %v2267 = vmul.f32 %v2232, 0.17677669
        %v2268 = vmul.f32 %v2235, 0.17677669
        %v2269 = vmul.f32 %v2238, 0.17677669
        %v2270 = vmul.f32 %v2241, 0.17677669
        %v2271 = vmul.f32 %v2244, 0.17677669
        %v2272 = vmul.f32 %v2247, 0.17677669
        %v2273 = vmul.f32 %v2250, 0.17677669
        %v2274 = vmul.f32 %v2253, 0.17677669
        %v2275 = vmul.f32 %v2256, 0.17677669
        %v2276 = vmul.f32 %v2259, 0.17677669
        %s2277 = scalar_lea.vmem %s2, 256
        %v2278 = vld [vmem:[%s2277] sm:$0xff]
        %v2279 = vld [vmem:[%s2277 + $0x8] sm:$0xff]
        %v2280 = vld [vmem:[%s2277 + $0x10] sm:$0xff]
        %v2281 = vld [vmem:[%s2277 + $0x18] sm:$0xff]
        %v2282 = vld [vmem:[%s2277 + $0x20] sm:$0xff]
        %v2283 = vld [vmem:[%s2277 + $0x28] sm:$0xff]
        %v2284 = vld [vmem:[%s2277 + $0x30] sm:$0xff]
        %v2285 = vld [vmem:[%s2277 + $0x38] sm:$0xff]
        %v2286 = vld [vmem:[%s2277 + $0x40] sm:$0xff]
        %v2287 = vld [vmem:[%s2277 + $0x48] sm:$0xff]
        %v2288 = vld [vmem:[%s2277 + $0x50] sm:$0xff]
        %v2289 = vld [vmem:[%s2277 + $0x58] sm:$0xff]
        %v2290 = vld [vmem:[%s2277 + $0x60] sm:$0xff]
        %v2291 = vld [vmem:[%s2277 + $0x68] sm:$0xff]
        %v2292 = vld [vmem:[%s2277 + $0x70] sm:$0xff]
        %v2293 = vld [vmem:[%s2277 + $0x78] sm:$0xff]
        %2294 = vmatpush.msra.mxu0 %v2293
        %2295 = vmatpush.msra.mxu0 %v2292
        %2296 = vmatpush.msra.mxu0 %v2291
        %2297 = vmatpush.msra.mxu0 %v2290
        %2298 = vmatpush.msra.mxu0 %v2289
        %2299 = vmatpush.msra.mxu0 %v2288
        %2300 = vmatpush.msra.mxu0 %v2287
        %2301 = vmatpush.msra.mxu0 %v2286
        %2302 = vmatpush.msra.mxu0 %v2285
        %2303 = vmatpush.msra.mxu0 %v2284
        %2304 = vmatpush.msra.mxu0 %v2283
        %2305 = vmatpush.msra.mxu0 %v2282
        %2306 = vmatpush.msra.mxu0 %v2281
        %2307 = vmatpush.msra.mxu0 %v2280
        %2308 = vmatpush.msra.mxu0 %v2279
        %2309 = vmatpush.msra.mxu0 %v2278
        %2310 = vmatmul.f32.gmra.mxu0 %v250
        %v2311 = vpop.f32.mrf.mxu0
        %v2312 = vadd.f32 0.0, %v2311
        %2313 = vmatmul.f32.gmra.mxu0 %v251
        %v2314 = vpop.f32.mrf.mxu0
        %v2315 = vadd.f32 0.0, %v2314
        %2316 = vmatmul.f32.gmra.mxu0 %v252
        %v2317 = vpop.f32.mrf.mxu0
        %v2318 = vadd.f32 0.0, %v2317
        %2319 = vmatmul.f32.gmra.mxu0 %v253
        %v2320 = vpop.f32.mrf.mxu0
        %v2321 = vadd.f32 0.0, %v2320
        %2322 = vmatmul.f32.gmra.mxu0 %v254
        %v2323 = vpop.f32.mrf.mxu0
        %v2324 = vadd.f32 0.0, %v2323
        %2325 = vmatmul.f32.gmra.mxu0 %v255
        %v2326 = vpop.f32.mrf.mxu0
        %v2327 = vadd.f32 0.0, %v2326
        %2328 = vmatmul.f32.gmra.mxu0 %v256
        %v2329 = vpop.f32.mrf.mxu0
        %v2330 = vadd.f32 0.0, %v2329
        %2331 = vmatmul.f32.gmra.mxu0 %v257
        %v2332 = vpop.f32.mrf.mxu0
        %v2333 = vadd.f32 0.0, %v2332
        %2334 = vmatmul.f32.gmra.mxu0 %v258
        %v2335 = vpop.f32.mrf.mxu0
        %v2336 = vadd.f32 0.0, %v2335
        %2337 = vmatmul.f32.gmra.mxu0 %v259
        %v2338 = vpop.f32.mrf.mxu0
        %v2339 = vadd.f32 0.0, %v2338
        %2340 = vmatmul.f32.gmra.mxu0 %v260
        %v2341 = vpop.f32.mrf.mxu0
        %v2342 = vadd.f32 0.0, %v2341
        %2343 = vmatmul.f32.gmra.mxu0 %v261
        %v2344 = vpop.f32.mrf.mxu0
        %v2345 = vadd.f32 0.0, %v2344
        %2346 = vmatmul.f32.gmra.mxu0 %v262
        %v2347 = vpop.f32.mrf.mxu0
        %v2348 = vadd.f32 0.0, %v2347
        %2349 = vmatmul.f32.gmra.mxu0 %v263
        %v2350 = vpop.f32.mrf.mxu0
        %v2351 = vadd.f32 0.0, %v2350
        %2352 = vmatmul.f32.gmra.mxu0 %v264
        %v2353 = vpop.f32.mrf.mxu0
        %v2354 = vadd.f32 0.0, %v2353
        %2355 = vmatmul.f32.gmra.mxu0 %v265
        %v2356 = vpop.f32.mrf.mxu0
        %v2357 = vadd.f32 0.0, %v2356
        %2358 = vdwg.mxu0
        %s2359 = scalar_lea.vmem %s3, 256
        %v2360 = vld [vmem:[%s2359] sm:$0xff]
        %v2361 = vld [vmem:[%s2359 + $0x8] sm:$0xff]
        %v2362 = vld [vmem:[%s2359 + $0x10] sm:$0xff]
        %v2363 = vld [vmem:[%s2359 + $0x18] sm:$0xff]
        %v2364 = vld [vmem:[%s2359 + $0x20] sm:$0xff]
        %v2365 = vld [vmem:[%s2359 + $0x28] sm:$0xff]
        %v2366 = vld [vmem:[%s2359 + $0x30] sm:$0xff]
        %v2367 = vld [vmem:[%s2359 + $0x38] sm:$0xff]
        %v2368 = vld [vmem:[%s2359 + $0x40] sm:$0xff]
        %v2369 = vld [vmem:[%s2359 + $0x48] sm:$0xff]
        %v2370 = vld [vmem:[%s2359 + $0x50] sm:$0xff]
        %v2371 = vld [vmem:[%s2359 + $0x58] sm:$0xff]
        %v2372 = vld [vmem:[%s2359 + $0x60] sm:$0xff]
        %v2373 = vld [vmem:[%s2359 + $0x68] sm:$0xff]
        %v2374 = vld [vmem:[%s2359 + $0x70] sm:$0xff]
        %v2375 = vld [vmem:[%s2359 + $0x78] sm:$0xff]
        %2376 = vmatpush.msra.mxu0 %v2375
        %2377 = vmatpush.msra.mxu0 %v2374
        %2378 = vmatpush.msra.mxu0 %v2373
        %2379 = vmatpush.msra.mxu0 %v2372
        %2380 = vmatpush.msra.mxu0 %v2371
        %2381 = vmatpush.msra.mxu0 %v2370
        %2382 = vmatpush.msra.mxu0 %v2369
        %2383 = vmatpush.msra.mxu0 %v2368
        %2384 = vmatpush.msra.mxu0 %v2367
        %2385 = vmatpush.msra.mxu0 %v2366
        %2386 = vmatpush.msra.mxu0 %v2365
        %2387 = vmatpush.msra.mxu0 %v2364
        %2388 = vmatpush.msra.mxu0 %v2363
        %2389 = vmatpush.msra.mxu0 %v2362
        %2390 = vmatpush.msra.mxu0 %v2361
        %2391 = vmatpush.msra.mxu0 %v2360
        %2392 = vmatmul.f32.gmra.mxu0 %v250
        %v2393 = vpop.f32.mrf.mxu0
        %v2394 = vadd.f32 0.0, %v2393
        %2395 = vmatmul.f32.gmra.mxu0 %v251
        %v2396 = vpop.f32.mrf.mxu0
        %v2397 = vadd.f32 0.0, %v2396
        %2398 = vmatmul.f32.gmra.mxu0 %v252
        %v2399 = vpop.f32.mrf.mxu0
        %v2400 = vadd.f32 0.0, %v2399
        %2401 = vmatmul.f32.gmra.mxu0 %v253
        %v2402 = vpop.f32.mrf.mxu0
        %v2403 = vadd.f32 0.0, %v2402
        %2404 = vmatmul.f32.gmra.mxu0 %v254
        %v2405 = vpop.f32.mrf.mxu0
        %v2406 = vadd.f32 0.0, %v2405
        %2407 = vmatmul.f32.gmra.mxu0 %v255
        %v2408 = vpop.f32.mrf.mxu0
        %v2409 = vadd.f32 0.0, %v2408
        %2410 = vmatmul.f32.gmra.mxu0 %v256
        %v2411 = vpop.f32.mrf.mxu0
        %v2412 = vadd.f32 0.0, %v2411
        %2413 = vmatmul.f32.gmra.mxu0 %v257
        %v2414 = vpop.f32.mrf.mxu0
        %v2415 = vadd.f32 0.0, %v2414
        %2416 = vmatmul.f32.gmra.mxu0 %v258
        %v2417 = vpop.f32.mrf.mxu0
        %v2418 = vadd.f32 0.0, %v2417
        %2419 = vmatmul.f32.gmra.mxu0 %v259
        %v2420 = vpop.f32.mrf.mxu0
        %v2421 = vadd.f32 0.0, %v2420
        %2422 = vmatmul.f32.gmra.mxu0 %v260
        %v2423 = vpop.f32.mrf.mxu0
        %v2424 = vadd.f32 0.0, %v2423
        %2425 = vmatmul.f32.gmra.mxu0 %v261
        %v2426 = vpop.f32.mrf.mxu0
        %v2427 = vadd.f32 0.0, %v2426
        %2428 = vmatmul.f32.gmra.mxu0 %v262
        %v2429 = vpop.f32.mrf.mxu0
        %v2430 = vadd.f32 0.0, %v2429
        %2431 = vmatmul.f32.gmra.mxu0 %v263
        %v2432 = vpop.f32.mrf.mxu0
        %v2433 = vadd.f32 0.0, %v2432
        %2434 = vmatmul.f32.gmra.mxu0 %v264
        %v2435 = vpop.f32.mrf.mxu0
        %v2436 = vadd.f32 0.0, %v2435
        %2437 = vmatmul.f32.gmra.mxu0 %v265
        %v2438 = vpop.f32.mrf.mxu0
        %v2439 = vadd.f32 0.0, %v2438
        %2440 = vdwg.mxu0
        %v2442 = vsel %vm525, %v2261, 0
        %v2445 = vsel %vm525, %v2262, 0
        %v2448 = vsel %vm525, %v2263, 0
        %v2451 = vsel %vm525, %v2264, 0
        %v2454 = vsel %vm525, %v2265, 0
        %v2457 = vsel %vm525, %v2266, 0
        %v2460 = vsel %vm525, %v2267, 0
        %v2463 = vsel %vm525, %v2268, 0
        %v2466 = vsel %vm525, %v2269, 0
        %v2469 = vsel %vm525, %v2270, 0
        %v2472 = vsel %vm525, %v2271, 0
        %v2475 = vsel %vm525, %v2272, 0
        %v2478 = vsel %vm525, %v2273, 0
        %v2481 = vsel %vm525, %v2274, 0
        %v2484 = vsel %vm525, %v2275, 0
        %v2487 = vsel %vm525, %v2276, 0
        %v2490 = vsel %vm525, %v2312, 0
        %v2493 = vsel %vm525, %v2315, 0
        %v2496 = vsel %vm525, %v2318, 0
        %v2499 = vsel %vm525, %v2321, 0
        %v2502 = vsel %vm525, %v2324, 0
        %v2505 = vsel %vm525, %v2327, 0
        %v2508 = vsel %vm525, %v2330, 0
        %v2511 = vsel %vm525, %v2333, 0
        %v2514 = vsel %vm525, %v2336, 0
        %v2517 = vsel %vm525, %v2339, 0
        %v2520 = vsel %vm525, %v2342, 0
        %v2523 = vsel %vm525, %v2345, 0
        %v2526 = vsel %vm525, %v2348, 0
        %v2529 = vsel %vm525, %v2351, 0
        %v2532 = vsel %vm525, %v2354, 0
        %v2535 = vsel %vm525, %v2357, 0
        %2537 = vmatpush.xpose.msra.mxu0 %v2535
        %2538 = vmatpush.xpose.msra.mxu0 %v2532
        %2539 = vmatpush.xpose.msra.mxu0 %v2529
        %2540 = vmatpush.xpose.msra.mxu0 %v2526
        %2541 = vmatpush.xpose.msra.mxu0 %v2523
        %2542 = vmatpush.xpose.msra.mxu0 %v2520
        %2543 = vmatpush.xpose.msra.mxu0 %v2517
        %2544 = vmatpush.xpose.msra.mxu0 %v2514
        %2545 = vmatpush.xpose.msra.mxu0 %v2511
        %2546 = vmatpush.xpose.msra.mxu0 %v2508
        %2547 = vmatpush.xpose.msra.mxu0 %v2505
        %2548 = vmatpush.xpose.msra.mxu0 %v2502
        %2549 = vmatpush.xpose.msra.mxu0 %v2499
        %2550 = vmatpush.xpose.msra.mxu0 %v2496
        %2551 = vmatpush.xpose.msra.mxu0 %v2493
        %2552 = vmatpush.xpose.msra.mxu0 %v2490
        %2553 = vmatmul.f32.gmra.mxu0 %v2442
        %v2554 = vpop.f32.mrf.mxu0
        %v2555 = vadd.f32 0.0, %v2554
        %2556 = vmatmul.f32.gmra.mxu0 %v2445
        %v2557 = vpop.f32.mrf.mxu0
        %v2558 = vadd.f32 0.0, %v2557
        %2559 = vmatmul.f32.gmra.mxu0 %v2448
        %v2560 = vpop.f32.mrf.mxu0
        %v2561 = vadd.f32 0.0, %v2560
        %2562 = vmatmul.f32.gmra.mxu0 %v2451
        %v2563 = vpop.f32.mrf.mxu0
        %v2564 = vadd.f32 0.0, %v2563
        %2565 = vmatmul.f32.gmra.mxu0 %v2454
        %v2566 = vpop.f32.mrf.mxu0
        %v2567 = vadd.f32 0.0, %v2566
        %2568 = vmatmul.f32.gmra.mxu0 %v2457
        %v2569 = vpop.f32.mrf.mxu0
        %v2570 = vadd.f32 0.0, %v2569
        %2571 = vmatmul.f32.gmra.mxu0 %v2460
        %v2572 = vpop.f32.mrf.mxu0
        %v2573 = vadd.f32 0.0, %v2572
        %2574 = vmatmul.f32.gmra.mxu0 %v2463
        %v2575 = vpop.f32.mrf.mxu0
        %v2576 = vadd.f32 0.0, %v2575
        %2577 = vmatmul.f32.gmra.mxu0 %v2466
        %v2578 = vpop.f32.mrf.mxu0
        %v2579 = vadd.f32 0.0, %v2578
        %2580 = vmatmul.f32.gmra.mxu0 %v2469
        %v2581 = vpop.f32.mrf.mxu0
        %v2582 = vadd.f32 0.0, %v2581
        %2583 = vmatmul.f32.gmra.mxu0 %v2472
        %v2584 = vpop.f32.mrf.mxu0
        %v2585 = vadd.f32 0.0, %v2584
        %2586 = vmatmul.f32.gmra.mxu0 %v2475
        %v2587 = vpop.f32.mrf.mxu0
        %v2588 = vadd.f32 0.0, %v2587
        %2589 = vmatmul.f32.gmra.mxu0 %v2478
        %v2590 = vpop.f32.mrf.mxu0
        %v2591 = vadd.f32 0.0, %v2590
        %2592 = vmatmul.f32.gmra.mxu0 %v2481
        %v2593 = vpop.f32.mrf.mxu0
        %v2594 = vadd.f32 0.0, %v2593
        %2595 = vmatmul.f32.gmra.mxu0 %v2484
        %v2596 = vpop.f32.mrf.mxu0
        %v2597 = vadd.f32 0.0, %v2596
        %2598 = vmatmul.f32.gmra.mxu0 %v2487
        %v2599 = vpop.f32.mrf.mxu0
        %v2600 = vadd.f32 0.0, %v2599
        %2601 = vdwg.mxu0
        %2602 = vmax.xlane.f32.xlu0 %v2555
        %v2603 = vpop.xlane.xlu0 %2602
        %2604 = vmax.xlane.f32.xlu0 %v2558
        %v2605 = vpop.xlane.xlu0 %2604
        %2606 = vmax.xlane.f32.xlu0 %v2561
        %v2607 = vpop.xlane.xlu0 %2606
        %2608 = vmax.xlane.f32.xlu0 %v2564
        %v2609 = vpop.xlane.xlu0 %2608
        %2610 = vmax.xlane.f32.xlu0 %v2567
        %v2611 = vpop.xlane.xlu0 %2610
        %2612 = vmax.xlane.f32.xlu0 %v2570
        %v2613 = vpop.xlane.xlu0 %2612
        %2614 = vmax.xlane.f32.xlu0 %v2573
        %v2615 = vpop.xlane.xlu0 %2614
        %2616 = vmax.xlane.f32.xlu0 %v2576
        %v2617 = vpop.xlane.xlu0 %2616
        %2618 = vmax.xlane.f32.xlu0 %v2579
        %v2619 = vpop.xlane.xlu0 %2618
        %2620 = vmax.xlane.f32.xlu0 %v2582
        %v2621 = vpop.xlane.xlu0 %2620
        %2622 = vmax.xlane.f32.xlu0 %v2585
        %v2623 = vpop.xlane.xlu0 %2622
        %2624 = vmax.xlane.f32.xlu0 %v2588
        %v2625 = vpop.xlane.xlu0 %2624
        %2626 = vmax.xlane.f32.xlu0 %v2591
        %v2627 = vpop.xlane.xlu0 %2626
        %2628 = vmax.xlane.f32.xlu0 %v2594
        %v2629 = vpop.xlane.xlu0 %2628
        %2630 = vmax.xlane.f32.xlu0 %v2597
        %v2631 = vpop.xlane.xlu0 %2630
        %2632 = vmax.xlane.f32.xlu0 %v2600
        %v2633 = vpop.xlane.xlu0 %2632
        %v2634 = vsub.f32 %v2555, %v2603
        %v2635 = vsub.f32 %v2558, %v2605
        %v2636 = vsub.f32 %v2561, %v2607
        %v2637 = vsub.f32 %v2564, %v2609
        %v2638 = vsub.f32 %v2567, %v2611
        %v2639 = vsub.f32 %v2570, %v2613
        %v2640 = vsub.f32 %v2573, %v2615
        %v2641 = vsub.f32 %v2576, %v2617
        %v2642 = vsub.f32 %v2579, %v2619
        %v2643 = vsub.f32 %v2582, %v2621
        %v2644 = vsub.f32 %v2585, %v2623
        %v2645 = vsub.f32 %v2588, %v2625
        %v2646 = vsub.f32 %v2591, %v2627
        %v2647 = vsub.f32 %v2594, %v2629
        %v2648 = vsub.f32 %v2597, %v2631
        %v2649 = vsub.f32 %v2600, %v2633
        %v2650 = vmul.f32 %v2634, 1.442695
        %v2651 = vpow.pop %v2650
        %v2652 = vmul.f32 %v2635, 1.442695
        %v2653 = vpow.pop %v2652
        %v2654 = vmul.f32 %v2636, 1.442695
        %v2655 = vpow.pop %v2654
        %v2656 = vmul.f32 %v2637, 1.442695
        %v2657 = vpow.pop %v2656
        %v2658 = vmul.f32 %v2638, 1.442695
        %v2659 = vpow.pop %v2658
        %v2660 = vmul.f32 %v2639, 1.442695
        %v2661 = vpow.pop %v2660
        %v2662 = vmul.f32 %v2640, 1.442695
        %v2663 = vpow.pop %v2662
        %v2664 = vmul.f32 %v2641, 1.442695
        %v2665 = vpow.pop %v2664
        %v2666 = vmul.f32 %v2642, 1.442695
        %v2667 = vpow.pop %v2666
        %v2668 = vmul.f32 %v2643, 1.442695
        %v2669 = vpow.pop %v2668
        %v2670 = vmul.f32 %v2644, 1.442695
        %v2671 = vpow.pop %v2670
        %v2672 = vmul.f32 %v2645, 1.442695
        %v2673 = vpow.pop %v2672
        %v2674 = vmul.f32 %v2646, 1.442695
        %v2675 = vpow.pop %v2674
        %v2676 = vmul.f32 %v2647, 1.442695
        %v2677 = vpow.pop %v2676
        %v2678 = vmul.f32 %v2648, 1.442695
        %v2679 = vpow.pop %v2678
        %v2680 = vmul.f32 %v2649, 1.442695
        %v2681 = vpow.pop %v2680
        %2682 = vadd.xlane.f32.xlu0 %v2651
        %v2683 = vpop.xlane.xlu0 %2682
        %2684 = vadd.xlane.f32.xlu0 %v2653
        %v2685 = vpop.xlane.xlu0 %2684
        %2686 = vadd.xlane.f32.xlu0 %v2655
        %v2687 = vpop.xlane.xlu0 %2686
        %2688 = vadd.xlane.f32.xlu0 %v2657
        %v2689 = vpop.xlane.xlu0 %2688
        %2690 = vadd.xlane.f32.xlu0 %v2659
        %v2691 = vpop.xlane.xlu0 %2690
        %2692 = vadd.xlane.f32.xlu0 %v2661
        %v2693 = vpop.xlane.xlu0 %2692
        %2694 = vadd.xlane.f32.xlu0 %v2663
        %v2695 = vpop.xlane.xlu0 %2694
        %2696 = vadd.xlane.f32.xlu0 %v2665
        %v2697 = vpop.xlane.xlu0 %2696
        %2698 = vadd.xlane.f32.xlu0 %v2667
        %v2699 = vpop.xlane.xlu0 %2698
        %2700 = vadd.xlane.f32.xlu0 %v2669
        %v2701 = vpop.xlane.xlu0 %2700
        %2702 = vadd.xlane.f32.xlu0 %v2671
        %v2703 = vpop.xlane.xlu0 %2702
        %2704 = vadd.xlane.f32.xlu0 %v2673
        %v2705 = vpop.xlane.xlu0 %2704
        %2706 = vadd.xlane.f32.xlu0 %v2675
        %v2707 = vpop.xlane.xlu0 %2706
        %2708 = vadd.xlane.f32.xlu0 %v2677
        %v2709 = vpop.xlane.xlu0 %2708
        %2710 = vadd.xlane.f32.xlu0 %v2679
        %v2711 = vpop.xlane.xlu0 %2710
        %2712 = vadd.xlane.f32.xlu0 %v2681
        %v2713 = vpop.xlane.xlu0 %2712
        %v2714 = vrcp.pop %v2683
        %v2715 = vmul.f32 %v2683, %v2714
        %v2716 = vsub.f32 1.0, %v2715
        %v2717 = vmul.f32 %v2714, %v2716
        %v2718 = vadd.f32 %v2714, %v2717
        %vm2719 = vweird.f32 %v2683
        %vm2720 = vweird.f32 %v2714
        %vm2721 = vmor %vm2719, %vm2720
        %v2722 = vsel %vm2721, %v2714, %v2718
        %v2723 = vand.u32 2147483647, %v2683
        %vm2724 = vcmp.eq.f32.partialorder %v2723, 8.507059e+37
        %v2725 = vand.u32 %v2683, 2147483648
        %v2726 = vor.u32 1.1754944e-38, %v2725
        %v2727 = vsel %vm2724, %v2726, %v2722
        %v2728 = vmul.f32 %v2651, %v2727
        %v2729 = vrcp.pop %v2685
        %v2730 = vmul.f32 %v2685, %v2729
        %v2731 = vsub.f32 1.0, %v2730
        %v2732 = vmul.f32 %v2729, %v2731
        %v2733 = vadd.f32 %v2729, %v2732
        %vm2734 = vweird.f32 %v2685
        %vm2735 = vweird.f32 %v2729
        %vm2736 = vmor %vm2734, %vm2735
        %v2737 = vsel %vm2736, %v2729, %v2733
        %v2738 = vand.u32 2147483647, %v2685
        %vm2739 = vcmp.eq.f32.partialorder %v2738, 8.507059e+37
        %v2740 = vand.u32 %v2685, 2147483648
        %v2741 = vor.u32 1.1754944e-38, %v2740
        %v2742 = vsel %vm2739, %v2741, %v2737
        %v2743 = vmul.f32 %v2653, %v2742
        %v2744 = vrcp.pop %v2687
        %v2745 = vmul.f32 %v2687, %v2744
        %v2746 = vsub.f32 1.0, %v2745
        %v2747 = vmul.f32 %v2744, %v2746
        %v2748 = vadd.f32 %v2744, %v2747
        %vm2749 = vweird.f32 %v2687
        %vm2750 = vweird.f32 %v2744
        %vm2751 = vmor %vm2749, %vm2750
        %v2752 = vsel %vm2751, %v2744, %v2748
        %v2753 = vand.u32 2147483647, %v2687
        %vm2754 = vcmp.eq.f32.partialorder %v2753, 8.507059e+37
        %v2755 = vand.u32 %v2687, 2147483648
        %v2756 = vor.u32 1.1754944e-38, %v2755
        %v2757 = vsel %vm2754, %v2756, %v2752
        %v2758 = vmul.f32 %v2655, %v2757
        %v2759 = vrcp.pop %v2689
        %v2760 = vmul.f32 %v2689, %v2759
        %v2761 = vsub.f32 1.0, %v2760
        %v2762 = vmul.f32 %v2759, %v2761
        %v2763 = vadd.f32 %v2759, %v2762
        %vm2764 = vweird.f32 %v2689
        %vm2765 = vweird.f32 %v2759
        %vm2766 = vmor %vm2764, %vm2765
        %v2767 = vsel %vm2766, %v2759, %v2763
        %v2768 = vand.u32 2147483647, %v2689
        %vm2769 = vcmp.eq.f32.partialorder %v2768, 8.507059e+37
        %v2770 = vand.u32 %v2689, 2147483648
        %v2771 = vor.u32 1.1754944e-38, %v2770
        %v2772 = vsel %vm2769, %v2771, %v2767
        %v2773 = vmul.f32 %v2657, %v2772
        %v2774 = vrcp.pop %v2691
        %v2775 = vmul.f32 %v2691, %v2774
        %v2776 = vsub.f32 1.0, %v2775
        %v2777 = vmul.f32 %v2774, %v2776
        %v2778 = vadd.f32 %v2774, %v2777
        %vm2779 = vweird.f32 %v2691
        %vm2780 = vweird.f32 %v2774
        %vm2781 = vmor %vm2779, %vm2780
        %v2782 = vsel %vm2781, %v2774, %v2778
        %v2783 = vand.u32 2147483647, %v2691
        %vm2784 = vcmp.eq.f32.partialorder %v2783, 8.507059e+37
        %v2785 = vand.u32 %v2691, 2147483648
        %v2786 = vor.u32 1.1754944e-38, %v2785
        %v2787 = vsel %vm2784, %v2786, %v2782
        %v2788 = vmul.f32 %v2659, %v2787
        %v2789 = vrcp.pop %v2693
        %v2790 = vmul.f32 %v2693, %v2789
        %v2791 = vsub.f32 1.0, %v2790
        %v2792 = vmul.f32 %v2789, %v2791
        %v2793 = vadd.f32 %v2789, %v2792
        %vm2794 = vweird.f32 %v2693
        %vm2795 = vweird.f32 %v2789
        %vm2796 = vmor %vm2794, %vm2795
        %v2797 = vsel %vm2796, %v2789, %v2793
        %v2798 = vand.u32 2147483647, %v2693
        %vm2799 = vcmp.eq.f32.partialorder %v2798, 8.507059e+37
        %v2800 = vand.u32 %v2693, 2147483648
        %v2801 = vor.u32 1.1754944e-38, %v2800
        %v2802 = vsel %vm2799, %v2801, %v2797
        %v2803 = vmul.f32 %v2661, %v2802
        %v2804 = vrcp.pop %v2695
        %v2805 = vmul.f32 %v2695, %v2804
        %v2806 = vsub.f32 1.0, %v2805
        %v2807 = vmul.f32 %v2804, %v2806
        %v2808 = vadd.f32 %v2804, %v2807
        %vm2809 = vweird.f32 %v2695
        %vm2810 = vweird.f32 %v2804
        %vm2811 = vmor %vm2809, %vm2810
        %v2812 = vsel %vm2811, %v2804, %v2808
        %v2813 = vand.u32 2147483647, %v2695
        %vm2814 = vcmp.eq.f32.partialorder %v2813, 8.507059e+37
        %v2815 = vand.u32 %v2695, 2147483648
        %v2816 = vor.u32 1.1754944e-38, %v2815
        %v2817 = vsel %vm2814, %v2816, %v2812
        %v2818 = vmul.f32 %v2663, %v2817
        %v2819 = vrcp.pop %v2697
        %v2820 = vmul.f32 %v2697, %v2819
        %v2821 = vsub.f32 1.0, %v2820
        %v2822 = vmul.f32 %v2819, %v2821
        %v2823 = vadd.f32 %v2819, %v2822
        %vm2824 = vweird.f32 %v2697
        %vm2825 = vweird.f32 %v2819
        %vm2826 = vmor %vm2824, %vm2825
        %v2827 = vsel %vm2826, %v2819, %v2823
        %v2828 = vand.u32 2147483647, %v2697
        %vm2829 = vcmp.eq.f32.partialorder %v2828, 8.507059e+37
        %v2830 = vand.u32 %v2697, 2147483648
        %v2831 = vor.u32 1.1754944e-38, %v2830
        %v2832 = vsel %vm2829, %v2831, %v2827
        %v2833 = vmul.f32 %v2665, %v2832
        %v2834 = vrcp.pop %v2699
        %v2835 = vmul.f32 %v2699, %v2834
        %v2836 = vsub.f32 1.0, %v2835
        %v2837 = vmul.f32 %v2834, %v2836
        %v2838 = vadd.f32 %v2834, %v2837
        %vm2839 = vweird.f32 %v2699
        %vm2840 = vweird.f32 %v2834
        %vm2841 = vmor %vm2839, %vm2840
        %v2842 = vsel %vm2841, %v2834, %v2838
        %v2843 = vand.u32 2147483647, %v2699
        %vm2844 = vcmp.eq.f32.partialorder %v2843, 8.507059e+37
        %v2845 = vand.u32 %v2699, 2147483648
        %v2846 = vor.u32 1.1754944e-38, %v2845
        %v2847 = vsel %vm2844, %v2846, %v2842
        %v2848 = vmul.f32 %v2667, %v2847
        %v2849 = vrcp.pop %v2701
        %v2850 = vmul.f32 %v2701, %v2849
        %v2851 = vsub.f32 1.0, %v2850
        %v2852 = vmul.f32 %v2849, %v2851
        %v2853 = vadd.f32 %v2849, %v2852
        %vm2854 = vweird.f32 %v2701
        %vm2855 = vweird.f32 %v2849
        %vm2856 = vmor %vm2854, %vm2855
        %v2857 = vsel %vm2856, %v2849, %v2853
        %v2858 = vand.u32 2147483647, %v2701
        %vm2859 = vcmp.eq.f32.partialorder %v2858, 8.507059e+37
        %v2860 = vand.u32 %v2701, 2147483648
        %v2861 = vor.u32 1.1754944e-38, %v2860
        %v2862 = vsel %vm2859, %v2861, %v2857
        %v2863 = vmul.f32 %v2669, %v2862
        %v2864 = vrcp.pop %v2703
        %v2865 = vmul.f32 %v2703, %v2864
        %v2866 = vsub.f32 1.0, %v2865
        %v2867 = vmul.f32 %v2864, %v2866
        %v2868 = vadd.f32 %v2864, %v2867
        %vm2869 = vweird.f32 %v2703
        %vm2870 = vweird.f32 %v2864
        %vm2871 = vmor %vm2869, %vm2870
        %v2872 = vsel %vm2871, %v2864, %v2868
        %v2873 = vand.u32 2147483647, %v2703
        %vm2874 = vcmp.eq.f32.partialorder %v2873, 8.507059e+37
        %v2875 = vand.u32 %v2703, 2147483648
        %v2876 = vor.u32 1.1754944e-38, %v2875
        %v2877 = vsel %vm2874, %v2876, %v2872
        %v2878 = vmul.f32 %v2671, %v2877
        %v2879 = vrcp.pop %v2705
        %v2880 = vmul.f32 %v2705, %v2879
        %v2881 = vsub.f32 1.0, %v2880
        %v2882 = vmul.f32 %v2879, %v2881
        %v2883 = vadd.f32 %v2879, %v2882
        %vm2884 = vweird.f32 %v2705
        %vm2885 = vweird.f32 %v2879
        %vm2886 = vmor %vm2884, %vm2885
        %v2887 = vsel %vm2886, %v2879, %v2883
        %v2888 = vand.u32 2147483647, %v2705
        %vm2889 = vcmp.eq.f32.partialorder %v2888, 8.507059e+37
        %v2890 = vand.u32 %v2705, 2147483648
        %v2891 = vor.u32 1.1754944e-38, %v2890
        %v2892 = vsel %vm2889, %v2891, %v2887
        %v2893 = vmul.f32 %v2673, %v2892
        %v2894 = vrcp.pop %v2707
        %v2895 = vmul.f32 %v2707, %v2894
        %v2896 = vsub.f32 1.0, %v2895
        %v2897 = vmul.f32 %v2894, %v2896
        %v2898 = vadd.f32 %v2894, %v2897
        %vm2899 = vweird.f32 %v2707
        %vm2900 = vweird.f32 %v2894
        %vm2901 = vmor %vm2899, %vm2900
        %v2902 = vsel %vm2901, %v2894, %v2898
        %v2903 = vand.u32 2147483647, %v2707
        %vm2904 = vcmp.eq.f32.partialorder %v2903, 8.507059e+37
        %v2905 = vand.u32 %v2707, 2147483648
        %v2906 = vor.u32 1.1754944e-38, %v2905
        %v2907 = vsel %vm2904, %v2906, %v2902
        %v2908 = vmul.f32 %v2675, %v2907
        %v2909 = vrcp.pop %v2709
        %v2910 = vmul.f32 %v2709, %v2909
        %v2911 = vsub.f32 1.0, %v2910
        %v2912 = vmul.f32 %v2909, %v2911
        %v2913 = vadd.f32 %v2909, %v2912
        %vm2914 = vweird.f32 %v2709
        %vm2915 = vweird.f32 %v2909
        %vm2916 = vmor %vm2914, %vm2915
        %v2917 = vsel %vm2916, %v2909, %v2913
        %v2918 = vand.u32 2147483647, %v2709
        %vm2919 = vcmp.eq.f32.partialorder %v2918, 8.507059e+37
        %v2920 = vand.u32 %v2709, 2147483648
        %v2921 = vor.u32 1.1754944e-38, %v2920
        %v2922 = vsel %vm2919, %v2921, %v2917
        %v2923 = vmul.f32 %v2677, %v2922
        %v2924 = vrcp.pop %v2711
        %v2925 = vmul.f32 %v2711, %v2924
        %v2926 = vsub.f32 1.0, %v2925
        %v2927 = vmul.f32 %v2924, %v2926
        %v2928 = vadd.f32 %v2924, %v2927
        %vm2929 = vweird.f32 %v2711
        %vm2930 = vweird.f32 %v2924
        %vm2931 = vmor %vm2929, %vm2930
        %v2932 = vsel %vm2931, %v2924, %v2928
        %v2933 = vand.u32 2147483647, %v2711
        %vm2934 = vcmp.eq.f32.partialorder %v2933, 8.507059e+37
        %v2935 = vand.u32 %v2711, 2147483648
        %v2936 = vor.u32 1.1754944e-38, %v2935
        %v2937 = vsel %vm2934, %v2936, %v2932
        %v2938 = vmul.f32 %v2679, %v2937
        %v2939 = vrcp.pop %v2713
        %v2940 = vmul.f32 %v2713, %v2939
        %v2941 = vsub.f32 1.0, %v2940
        %v2942 = vmul.f32 %v2939, %v2941
        %v2943 = vadd.f32 %v2939, %v2942
        %vm2944 = vweird.f32 %v2713
        %vm2945 = vweird.f32 %v2939
        %vm2946 = vmor %vm2944, %vm2945
        %v2947 = vsel %vm2946, %v2939, %v2943
        %v2948 = vand.u32 2147483647, %v2713
        %vm2949 = vcmp.eq.f32.partialorder %v2948, 8.507059e+37
        %v2950 = vand.u32 %v2713, 2147483648
        %v2951 = vor.u32 1.1754944e-38, %v2950
        %v2952 = vsel %vm2949, %v2951, %v2947
        %v2953 = vmul.f32 %v2681, %v2952
        %2954 = vmatpush.msra.mxu0 %v2439
        %2955 = vmatpush.msra.mxu0 %v2436
        %2956 = vmatpush.msra.mxu0 %v2433
        %2957 = vmatpush.msra.mxu0 %v2430
        %2958 = vmatpush.msra.mxu0 %v2427
        %2959 = vmatpush.msra.mxu0 %v2424
        %2960 = vmatpush.msra.mxu0 %v2421
        %2961 = vmatpush.msra.mxu0 %v2418
        %2962 = vmatpush.msra.mxu0 %v2415
        %2963 = vmatpush.msra.mxu0 %v2412
        %2964 = vmatpush.msra.mxu0 %v2409
        %2965 = vmatpush.msra.mxu0 %v2406
        %2966 = vmatpush.msra.mxu0 %v2403
        %2967 = vmatpush.msra.mxu0 %v2400
        %2968 = vmatpush.msra.mxu0 %v2397
        %2969 = vmatpush.msra.mxu0 %v2394
        %2970 = vmatmul.f32.gmra.mxu0 %v2728
        %v2971 = vpop.f32.mrf.mxu0
        %v2972 = vadd.f32 0.0, %v2971
        %2973 = vmatmul.f32.gmra.mxu0 %v2743
        %v2974 = vpop.f32.mrf.mxu0
        %v2975 = vadd.f32 0.0, %v2974
        %2976 = vmatmul.f32.gmra.mxu0 %v2758
        %v2977 = vpop.f32.mrf.mxu0
        %v2978 = vadd.f32 0.0, %v2977
        %2979 = vmatmul.f32.gmra.mxu0 %v2773
        %v2980 = vpop.f32.mrf.mxu0
        %v2981 = vadd.f32 0.0, %v2980
        %2982 = vmatmul.f32.gmra.mxu0 %v2788
        %v2983 = vpop.f32.mrf.mxu0
        %v2984 = vadd.f32 0.0, %v2983
        %2985 = vmatmul.f32.gmra.mxu0 %v2803
        %v2986 = vpop.f32.mrf.mxu0
        %v2987 = vadd.f32 0.0, %v2986
        %2988 = vmatmul.f32.gmra.mxu0 %v2818
        %v2989 = vpop.f32.mrf.mxu0
        %v2990 = vadd.f32 0.0, %v2989
        %2991 = vmatmul.f32.gmra.mxu0 %v2833
        %v2992 = vpop.f32.mrf.mxu0
        %v2993 = vadd.f32 0.0, %v2992
        %2994 = vmatmul.f32.gmra.mxu0 %v2848
        %v2995 = vpop.f32.mrf.mxu0
        %v2996 = vadd.f32 0.0, %v2995
        %2997 = vmatmul.f32.gmra.mxu0 %v2863
        %v2998 = vpop.f32.mrf.mxu0
        %v2999 = vadd.f32 0.0, %v2998
        %3000 = vmatmul.f32.gmra.mxu0 %v2878
        %v3001 = vpop.f32.mrf.mxu0
        %v3002 = vadd.f32 0.0, %v3001
        %3003 = vmatmul.f32.gmra.mxu0 %v2893
        %v3004 = vpop.f32.mrf.mxu0
        %v3005 = vadd.f32 0.0, %v3004
        %3006 = vmatmul.f32.gmra.mxu0 %v2908
        %v3007 = vpop.f32.mrf.mxu0
        %v3008 = vadd.f32 0.0, %v3007
        %3009 = vmatmul.f32.gmra.mxu0 %v2923
        %v3010 = vpop.f32.mrf.mxu0
        %v3011 = vadd.f32 0.0, %v3010
        %3012 = vmatmul.f32.gmra.mxu0 %v2938
        %v3013 = vpop.f32.mrf.mxu0
        %v3014 = vadd.f32 0.0, %v3013
        %3015 = vmatmul.f32.gmra.mxu0 %v2953
        %v3016 = vpop.f32.mrf.mxu0
        %v3017 = vadd.f32 0.0, %v3016
        %3018 = vdwg.mxu0
        %s3019 = scalar_lea.vmem %s4, 64
        %v3020 = vld [vmem:[%s3019] sm:$0xff]
        %v3021 = vld [vmem:[%s3019 + $0x8] sm:$0xff]
        %v3022 = vld [vmem:[%s3019 + $0x10] sm:$0xff]
        %v3023 = vld [vmem:[%s3019 + $0x18] sm:$0xff]
        %v3025 = vsel %vm525, %v2972, 0
        %v3028 = vsel %vm525, %v2975, 0
        %v3031 = vsel %vm525, %v2978, 0
        %v3034 = vsel %vm525, %v2981, 0
        %v3037 = vsel %vm525, %v2984, 0
        %v3040 = vsel %vm525, %v2987, 0
        %v3043 = vsel %vm525, %v2990, 0
        %v3046 = vsel %vm525, %v2993, 0
        %v3049 = vsel %vm525, %v2996, 0
        %v3052 = vsel %vm525, %v2999, 0
        %v3055 = vsel %vm525, %v3002, 0
        %v3058 = vsel %vm525, %v3005, 0
        %v3061 = vsel %vm525, %v3008, 0
        %v3064 = vsel %vm525, %v3011, 0
        %v3067 = vsel %vm525, %v3014, 0
        %v3070 = vsel %vm525, %v3017, 0
        %3072 = vmatpush.msra.mxu0 0.0
        %3073 = vmatpush.msra.mxu0 0.0
        %3074 = vmatpush.msra.mxu0 0.0
        %3075 = vmatpush.msra.mxu0 0.0
        %3076 = vmatpush.msra.mxu0 0.0
        %3077 = vmatpush.msra.mxu0 0.0
        %3078 = vmatpush.msra.mxu0 0.0
        %3079 = vmatpush.msra.mxu0 0.0
        %3080 = vmatpush.msra.mxu0 0.0
        %3081 = vmatpush.msra.mxu0 0.0
        %3082 = vmatpush.msra.mxu0 0.0
        %3083 = vmatpush.msra.mxu0 0.0
        %3084 = vmatpush.msra.mxu0 %v3023
        %3085 = vmatpush.msra.mxu0 %v3022
        %3086 = vmatpush.msra.mxu0 %v3021
        %3087 = vmatpush.msra.mxu0 %v3020
        %3088 = vmatmul.f32.gmra.mxu0 %v3025
        %v3089 = vpop.f32.mrf.mxu0
        %v3090 = vadd.f32 0.0, %v3089
        %3091 = vmatmul.f32.gmra.mxu0 %v3028
        %v3092 = vpop.f32.mrf.mxu0
        %v3093 = vadd.f32 0.0, %v3092
        %3094 = vmatmul.f32.gmra.mxu0 %v3031
        %v3095 = vpop.f32.mrf.mxu0
        %v3096 = vadd.f32 0.0, %v3095
        %3097 = vmatmul.f32.gmra.mxu0 %v3034
        %v3098 = vpop.f32.mrf.mxu0
        %v3099 = vadd.f32 0.0, %v3098
        %3100 = vmatmul.f32.gmra.mxu0 %v3037
        %v3101 = vpop.f32.mrf.mxu0
        %v3102 = vadd.f32 0.0, %v3101
        %3103 = vmatmul.f32.gmra.mxu0 %v3040
        %v3104 = vpop.f32.mrf.mxu0
        %v3105 = vadd.f32 0.0, %v3104
        %3106 = vmatmul.f32.gmra.mxu0 %v3043
        %v3107 = vpop.f32.mrf.mxu0
        %v3108 = vadd.f32 0.0, %v3107
        %3109 = vmatmul.f32.gmra.mxu0 %v3046
        %v3110 = vpop.f32.mrf.mxu0
        %v3111 = vadd.f32 0.0, %v3110
        %3112 = vmatmul.f32.gmra.mxu0 %v3049
        %v3113 = vpop.f32.mrf.mxu0
        %v3114 = vadd.f32 0.0, %v3113
        %3115 = vmatmul.f32.gmra.mxu0 %v3052
        %v3116 = vpop.f32.mrf.mxu0
        %v3117 = vadd.f32 0.0, %v3116
        %3118 = vmatmul.f32.gmra.mxu0 %v3055
        %v3119 = vpop.f32.mrf.mxu0
        %v3120 = vadd.f32 0.0, %v3119
        %3121 = vmatmul.f32.gmra.mxu0 %v3058
        %v3122 = vpop.f32.mrf.mxu0
        %v3123 = vadd.f32 0.0, %v3122
        %3124 = vmatmul.f32.gmra.mxu0 %v3061
        %v3125 = vpop.f32.mrf.mxu0
        %v3126 = vadd.f32 0.0, %v3125
        %3127 = vmatmul.f32.gmra.mxu0 %v3064
        %v3128 = vpop.f32.mrf.mxu0
        %v3129 = vadd.f32 0.0, %v3128
        %3130 = vmatmul.f32.gmra.mxu0 %v3067
        %v3131 = vpop.f32.mrf.mxu0
        %v3132 = vadd.f32 0.0, %v3131
        %3133 = vmatmul.f32.gmra.mxu0 %v3070
        %v3134 = vpop.f32.mrf.mxu0
        %v3135 = vadd.f32 0.0, %v3134
        %3136 = vdwg.mxu0
        %v3137 = vadd.f32 %v2132, %v3090
        %v3138 = vadd.f32 %v2135, %v3093
        %v3139 = vadd.f32 %v2138, %v3096
        %v3140 = vadd.f32 %v2141, %v3099
        %v3141 = vadd.f32 %v2144, %v3102
        %v3142 = vadd.f32 %v2147, %v3105
        %v3143 = vadd.f32 %v2150, %v3108
        %v3144 = vadd.f32 %v2153, %v3111
        %v3145 = vadd.f32 %v2156, %v3114
        %v3146 = vadd.f32 %v2159, %v3117
        %v3147 = vadd.f32 %v2162, %v3120
        %v3148 = vadd.f32 %v2165, %v3123
        %v3149 = vadd.f32 %v2168, %v3126
        %v3150 = vadd.f32 %v2171, %v3129
        %v3151 = vadd.f32 %v2174, %v3132
        %v3152 = vadd.f32 %v2177, %v3135
        %s3153 = scalar_lea.vmem %s1, 384
        %v3154 = vld [vmem:[%s3153] sm:$0xff]
        %v3155 = vld [vmem:[%s3153 + $0x8] sm:$0xff]
        %v3156 = vld [vmem:[%s3153 + $0x10] sm:$0xff]
        %v3157 = vld [vmem:[%s3153 + $0x18] sm:$0xff]
        %v3158 = vld [vmem:[%s3153 + $0x20] sm:$0xff]
        %v3159 = vld [vmem:[%s3153 + $0x28] sm:$0xff]
        %v3160 = vld [vmem:[%s3153 + $0x30] sm:$0xff]
        %v3161 = vld [vmem:[%s3153 + $0x38] sm:$0xff]
        %v3162 = vld [vmem:[%s3153 + $0x40] sm:$0xff]
        %v3163 = vld [vmem:[%s3153 + $0x48] sm:$0xff]
        %v3164 = vld [vmem:[%s3153 + $0x50] sm:$0xff]
        %v3165 = vld [vmem:[%s3153 + $0x58] sm:$0xff]
        %v3166 = vld [vmem:[%s3153 + $0x60] sm:$0xff]
        %v3167 = vld [vmem:[%s3153 + $0x68] sm:$0xff]
        %v3168 = vld [vmem:[%s3153 + $0x70] sm:$0xff]
        %v3169 = vld [vmem:[%s3153 + $0x78] sm:$0xff]
        %3170 = vmatpush.msra.mxu0 %v3169
        %3171 = vmatpush.msra.mxu0 %v3168
        %3172 = vmatpush.msra.mxu0 %v3167
        %3173 = vmatpush.msra.mxu0 %v3166
        %3174 = vmatpush.msra.mxu0 %v3165
        %3175 = vmatpush.msra.mxu0 %v3164
        %3176 = vmatpush.msra.mxu0 %v3163
        %3177 = vmatpush.msra.mxu0 %v3162
        %3178 = vmatpush.msra.mxu0 %v3161
        %3179 = vmatpush.msra.mxu0 %v3160
        %3180 = vmatpush.msra.mxu0 %v3159
        %3181 = vmatpush.msra.mxu0 %v3158
        %3182 = vmatpush.msra.mxu0 %v3157
        %3183 = vmatpush.msra.mxu0 %v3156
        %3184 = vmatpush.msra.mxu0 %v3155
        %3185 = vmatpush.msra.mxu0 %v3154
        %3186 = vmatmul.f32.gmra.mxu0 %v250
        %v3187 = vpop.f32.mrf.mxu0
        %v3188 = vadd.f32 0.0, %v3187
        %3189 = vmatmul.f32.gmra.mxu0 %v251
        %v3190 = vpop.f32.mrf.mxu0
        %v3191 = vadd.f32 0.0, %v3190
        %3192 = vmatmul.f32.gmra.mxu0 %v252
        %v3193 = vpop.f32.mrf.mxu0
        %v3194 = vadd.f32 0.0, %v3193
        %3195 = vmatmul.f32.gmra.mxu0 %v253
        %v3196 = vpop.f32.mrf.mxu0
        %v3197 = vadd.f32 0.0, %v3196
        %3198 = vmatmul.f32.gmra.mxu0 %v254
        %v3199 = vpop.f32.mrf.mxu0
        %v3200 = vadd.f32 0.0, %v3199
        %3201 = vmatmul.f32.gmra.mxu0 %v255
        %v3202 = vpop.f32.mrf.mxu0
        %v3203 = vadd.f32 0.0, %v3202
        %3204 = vmatmul.f32.gmra.mxu0 %v256
        %v3205 = vpop.f32.mrf.mxu0
        %v3206 = vadd.f32 0.0, %v3205
        %3207 = vmatmul.f32.gmra.mxu0 %v257
        %v3208 = vpop.f32.mrf.mxu0
        %v3209 = vadd.f32 0.0, %v3208
        %3210 = vmatmul.f32.gmra.mxu0 %v258
        %v3211 = vpop.f32.mrf.mxu0
        %v3212 = vadd.f32 0.0, %v3211
        %3213 = vmatmul.f32.gmra.mxu0 %v259
        %v3214 = vpop.f32.mrf.mxu0
        %v3215 = vadd.f32 0.0, %v3214
        %3216 = vmatmul.f32.gmra.mxu0 %v260
        %v3217 = vpop.f32.mrf.mxu0
        %v3218 = vadd.f32 0.0, %v3217
        %3219 = vmatmul.f32.gmra.mxu0 %v261
        %v3220 = vpop.f32.mrf.mxu0
        %v3221 = vadd.f32 0.0, %v3220
        %3222 = vmatmul.f32.gmra.mxu0 %v262
        %v3223 = vpop.f32.mrf.mxu0
        %v3224 = vadd.f32 0.0, %v3223
        %3225 = vmatmul.f32.gmra.mxu0 %v263
        %v3226 = vpop.f32.mrf.mxu0
        %v3227 = vadd.f32 0.0, %v3226
        %3228 = vmatmul.f32.gmra.mxu0 %v264
        %v3229 = vpop.f32.mrf.mxu0
        %v3230 = vadd.f32 0.0, %v3229
        %3231 = vmatmul.f32.gmra.mxu0 %v265
        %v3232 = vpop.f32.mrf.mxu0
        %v3233 = vadd.f32 0.0, %v3232
        %3234 = vdwg.mxu0
        %v3235 = vmul.f32 %v3188, 0.17677669
        %v3236 = vmul.f32 %v3191, 0.17677669
        %v3237 = vmul.f32 %v3194, 0.17677669
        %v3238 = vmul.f32 %v3197, 0.17677669
        %v3239 = vmul.f32 %v3200, 0.17677669
        %v3240 = vmul.f32 %v3203, 0.17677669
        %v3241 = vmul.f32 %v3206, 0.17677669
        %v3242 = vmul.f32 %v3209, 0.17677669
        %v3243 = vmul.f32 %v3212, 0.17677669
        %v3244 = vmul.f32 %v3215, 0.17677669
        %v3245 = vmul.f32 %v3218, 0.17677669
        %v3246 = vmul.f32 %v3221, 0.17677669
        %v3247 = vmul.f32 %v3224, 0.17677669
        %v3248 = vmul.f32 %v3227, 0.17677669
        %v3249 = vmul.f32 %v3230, 0.17677669
        %v3250 = vmul.f32 %v3233, 0.17677669
        %s3251 = scalar_lea.vmem %s2, 384
        %v3252 = vld [vmem:[%s3251] sm:$0xff]
        %v3253 = vld [vmem:[%s3251 + $0x8] sm:$0xff]
        %v3254 = vld [vmem:[%s3251 + $0x10] sm:$0xff]
        %v3255 = vld [vmem:[%s3251 + $0x18] sm:$0xff]
        %v3256 = vld [vmem:[%s3251 + $0x20] sm:$0xff]
        %v3257 = vld [vmem:[%s3251 + $0x28] sm:$0xff]
        %v3258 = vld [vmem:[%s3251 + $0x30] sm:$0xff]
        %v3259 = vld [vmem:[%s3251 + $0x38] sm:$0xff]
        %v3260 = vld [vmem:[%s3251 + $0x40] sm:$0xff]
        %v3261 = vld [vmem:[%s3251 + $0x48] sm:$0xff]
        %v3262 = vld [vmem:[%s3251 + $0x50] sm:$0xff]
        %v3263 = vld [vmem:[%s3251 + $0x58] sm:$0xff]
        %v3264 = vld [vmem:[%s3251 + $0x60] sm:$0xff]
        %v3265 = vld [vmem:[%s3251 + $0x68] sm:$0xff]
        %v3266 = vld [vmem:[%s3251 + $0x70] sm:$0xff]
        %v3267 = vld [vmem:[%s3251 + $0x78] sm:$0xff]
        %3268 = vmatpush.msra.mxu0 %v3267
        %3269 = vmatpush.msra.mxu0 %v3266
        %3270 = vmatpush.msra.mxu0 %v3265
        %3271 = vmatpush.msra.mxu0 %v3264
        %3272 = vmatpush.msra.mxu0 %v3263
        %3273 = vmatpush.msra.mxu0 %v3262
        %3274 = vmatpush.msra.mxu0 %v3261
        %3275 = vmatpush.msra.mxu0 %v3260
        %3276 = vmatpush.msra.mxu0 %v3259
        %3277 = vmatpush.msra.mxu0 %v3258
        %3278 = vmatpush.msra.mxu0 %v3257
        %3279 = vmatpush.msra.mxu0 %v3256
        %3280 = vmatpush.msra.mxu0 %v3255
        %3281 = vmatpush.msra.mxu0 %v3254
        %3282 = vmatpush.msra.mxu0 %v3253
        %3283 = vmatpush.msra.mxu0 %v3252
        %3284 = vmatmul.f32.gmra.mxu0 %v250
        %v3285 = vpop.f32.mrf.mxu0
        %v3286 = vadd.f32 0.0, %v3285
        %3287 = vmatmul.f32.gmra.mxu0 %v251
        %v3288 = vpop.f32.mrf.mxu0
        %v3289 = vadd.f32 0.0, %v3288
        %3290 = vmatmul.f32.gmra.mxu0 %v252
        %v3291 = vpop.f32.mrf.mxu0
        %v3292 = vadd.f32 0.0, %v3291
        %3293 = vmatmul.f32.gmra.mxu0 %v253
        %v3294 = vpop.f32.mrf.mxu0
        %v3295 = vadd.f32 0.0, %v3294
        %3296 = vmatmul.f32.gmra.mxu0 %v254
        %v3297 = vpop.f32.mrf.mxu0
        %v3298 = vadd.f32 0.0, %v3297
        %3299 = vmatmul.f32.gmra.mxu0 %v255
        %v3300 = vpop.f32.mrf.mxu0
        %v3301 = vadd.f32 0.0, %v3300
        %3302 = vmatmul.f32.gmra.mxu0 %v256
        %v3303 = vpop.f32.mrf.mxu0
        %v3304 = vadd.f32 0.0, %v3303
        %3305 = vmatmul.f32.gmra.mxu0 %v257
        %v3306 = vpop.f32.mrf.mxu0
        %v3307 = vadd.f32 0.0, %v3306
        %3308 = vmatmul.f32.gmra.mxu0 %v258
        %v3309 = vpop.f32.mrf.mxu0
        %v3310 = vadd.f32 0.0, %v3309
        %3311 = vmatmul.f32.gmra.mxu0 %v259
        %v3312 = vpop.f32.mrf.mxu0
        %v3313 = vadd.f32 0.0, %v3312
        %3314 = vmatmul.f32.gmra.mxu0 %v260
        %v3315 = vpop.f32.mrf.mxu0
        %v3316 = vadd.f32 0.0, %v3315
        %3317 = vmatmul.f32.gmra.mxu0 %v261
        %v3318 = vpop.f32.mrf.mxu0
        %v3319 = vadd.f32 0.0, %v3318
        %3320 = vmatmul.f32.gmra.mxu0 %v262
        %v3321 = vpop.f32.mrf.mxu0
        %v3322 = vadd.f32 0.0, %v3321
        %3323 = vmatmul.f32.gmra.mxu0 %v263
        %v3324 = vpop.f32.mrf.mxu0
        %v3325 = vadd.f32 0.0, %v3324
        %3326 = vmatmul.f32.gmra.mxu0 %v264
        %v3327 = vpop.f32.mrf.mxu0
        %v3328 = vadd.f32 0.0, %v3327
        %3329 = vmatmul.f32.gmra.mxu0 %v265
        %v3330 = vpop.f32.mrf.mxu0
        %v3331 = vadd.f32 0.0, %v3330
        %3332 = vdwg.mxu0
        %s3333 = scalar_lea.vmem %s3, 384
        %v3334 = vld [vmem:[%s3333] sm:$0xff]
        %v3335 = vld [vmem:[%s3333 + $0x8] sm:$0xff]
        %v3336 = vld [vmem:[%s3333 + $0x10] sm:$0xff]
        %v3337 = vld [vmem:[%s3333 + $0x18] sm:$0xff]
        %v3338 = vld [vmem:[%s3333 + $0x20] sm:$0xff]
        %v3339 = vld [vmem:[%s3333 + $0x28] sm:$0xff]
        %v3340 = vld [vmem:[%s3333 + $0x30] sm:$0xff]
        %v3341 = vld [vmem:[%s3333 + $0x38] sm:$0xff]
        %v3342 = vld [vmem:[%s3333 + $0x40] sm:$0xff]
        %v3343 = vld [vmem:[%s3333 + $0x48] sm:$0xff]
        %v3344 = vld [vmem:[%s3333 + $0x50] sm:$0xff]
        %v3345 = vld [vmem:[%s3333 + $0x58] sm:$0xff]
        %v3346 = vld [vmem:[%s3333 + $0x60] sm:$0xff]
        %v3347 = vld [vmem:[%s3333 + $0x68] sm:$0xff]
        %v3348 = vld [vmem:[%s3333 + $0x70] sm:$0xff]
        %v3349 = vld [vmem:[%s3333 + $0x78] sm:$0xff]
        %3350 = vmatpush.msra.mxu0 %v3349
        %3351 = vmatpush.msra.mxu0 %v3348
        %3352 = vmatpush.msra.mxu0 %v3347
        %3353 = vmatpush.msra.mxu0 %v3346
        %3354 = vmatpush.msra.mxu0 %v3345
        %3355 = vmatpush.msra.mxu0 %v3344
        %3356 = vmatpush.msra.mxu0 %v3343
        %3357 = vmatpush.msra.mxu0 %v3342
        %3358 = vmatpush.msra.mxu0 %v3341
        %3359 = vmatpush.msra.mxu0 %v3340
        %3360 = vmatpush.msra.mxu0 %v3339
        %3361 = vmatpush.msra.mxu0 %v3338
        %3362 = vmatpush.msra.mxu0 %v3337
        %3363 = vmatpush.msra.mxu0 %v3336
        %3364 = vmatpush.msra.mxu0 %v3335
        %3365 = vmatpush.msra.mxu0 %v3334
        %3366 = vmatmul.f32.gmra.mxu0 %v250
        %v3367 = vpop.f32.mrf.mxu0
        %v3368 = vadd.f32 0.0, %v3367
        %3369 = vmatmul.f32.gmra.mxu0 %v251
        %v3370 = vpop.f32.mrf.mxu0
        %v3371 = vadd.f32 0.0, %v3370
        %3372 = vmatmul.f32.gmra.mxu0 %v252
        %v3373 = vpop.f32.mrf.mxu0
        %v3374 = vadd.f32 0.0, %v3373
        %3375 = vmatmul.f32.gmra.mxu0 %v253
        %v3376 = vpop.f32.mrf.mxu0
        %v3377 = vadd.f32 0.0, %v3376
        %3378 = vmatmul.f32.gmra.mxu0 %v254
        %v3379 = vpop.f32.mrf.mxu0
        %v3380 = vadd.f32 0.0, %v3379
        %3381 = vmatmul.f32.gmra.mxu0 %v255
        %v3382 = vpop.f32.mrf.mxu0
        %v3383 = vadd.f32 0.0, %v3382
        %3384 = vmatmul.f32.gmra.mxu0 %v256
        %v3385 = vpop.f32.mrf.mxu0
        %v3386 = vadd.f32 0.0, %v3385
        %3387 = vmatmul.f32.gmra.mxu0 %v257
        %v3388 = vpop.f32.mrf.mxu0
        %v3389 = vadd.f32 0.0, %v3388
        %3390 = vmatmul.f32.gmra.mxu0 %v258
        %v3391 = vpop.f32.mrf.mxu0
        %v3392 = vadd.f32 0.0, %v3391
        %3393 = vmatmul.f32.gmra.mxu0 %v259
        %v3394 = vpop.f32.mrf.mxu0
        %v3395 = vadd.f32 0.0, %v3394
        %3396 = vmatmul.f32.gmra.mxu0 %v260
        %v3397 = vpop.f32.mrf.mxu0
        %v3398 = vadd.f32 0.0, %v3397
        %3399 = vmatmul.f32.gmra.mxu0 %v261
        %v3400 = vpop.f32.mrf.mxu0
        %v3401 = vadd.f32 0.0, %v3400
        %3402 = vmatmul.f32.gmra.mxu0 %v262
        %v3403 = vpop.f32.mrf.mxu0
        %v3404 = vadd.f32 0.0, %v3403
        %3405 = vmatmul.f32.gmra.mxu0 %v263
        %v3406 = vpop.f32.mrf.mxu0
        %v3407 = vadd.f32 0.0, %v3406
        %3408 = vmatmul.f32.gmra.mxu0 %v264
        %v3409 = vpop.f32.mrf.mxu0
        %v3410 = vadd.f32 0.0, %v3409
        %3411 = vmatmul.f32.gmra.mxu0 %v265
        %v3412 = vpop.f32.mrf.mxu0
        %v3413 = vadd.f32 0.0, %v3412
        %3414 = vdwg.mxu0
        %v3416 = vsel %vm525, %v3235, 0
        %v3419 = vsel %vm525, %v3236, 0
        %v3422 = vsel %vm525, %v3237, 0
        %v3425 = vsel %vm525, %v3238, 0
        %v3428 = vsel %vm525, %v3239, 0
        %v3431 = vsel %vm525, %v3240, 0
        %v3434 = vsel %vm525, %v3241, 0
        %v3437 = vsel %vm525, %v3242, 0
        %v3440 = vsel %vm525, %v3243, 0
        %v3443 = vsel %vm525, %v3244, 0
        %v3446 = vsel %vm525, %v3245, 0
        %v3449 = vsel %vm525, %v3246, 0
        %v3452 = vsel %vm525, %v3247, 0
        %v3455 = vsel %vm525, %v3248, 0
        %v3458 = vsel %vm525, %v3249, 0
        %v3461 = vsel %vm525, %v3250, 0
        %v3464 = vsel %vm525, %v3286, 0
        %v3467 = vsel %vm525, %v3289, 0
        %v3470 = vsel %vm525, %v3292, 0
        %v3473 = vsel %vm525, %v3295, 0
        %v3476 = vsel %vm525, %v3298, 0
        %v3479 = vsel %vm525, %v3301, 0
        %v3482 = vsel %vm525, %v3304, 0
        %v3485 = vsel %vm525, %v3307, 0
        %v3488 = vsel %vm525, %v3310, 0
        %v3491 = vsel %vm525, %v3313, 0
        %v3494 = vsel %vm525, %v3316, 0
        %v3497 = vsel %vm525, %v3319, 0
        %v3500 = vsel %vm525, %v3322, 0
        %v3503 = vsel %vm525, %v3325, 0
        %v3506 = vsel %vm525, %v3328, 0
        %v3509 = vsel %vm525, %v3331, 0
        %3511 = vmatpush.xpose.msra.mxu0 %v3509
        %3512 = vmatpush.xpose.msra.mxu0 %v3506
        %3513 = vmatpush.xpose.msra.mxu0 %v3503
        %3514 = vmatpush.xpose.msra.mxu0 %v3500
        %3515 = vmatpush.xpose.msra.mxu0 %v3497
        %3516 = vmatpush.xpose.msra.mxu0 %v3494
        %3517 = vmatpush.xpose.msra.mxu0 %v3491
        %3518 = vmatpush.xpose.msra.mxu0 %v3488
        %3519 = vmatpush.xpose.msra.mxu0 %v3485
        %3520 = vmatpush.xpose.msra.mxu0 %v3482
        %3521 = vmatpush.xpose.msra.mxu0 %v3479
        %3522 = vmatpush.xpose.msra.mxu0 %v3476
        %3523 = vmatpush.xpose.msra.mxu0 %v3473
        %3524 = vmatpush.xpose.msra.mxu0 %v3470
        %3525 = vmatpush.xpose.msra.mxu0 %v3467
        %3526 = vmatpush.xpose.msra.mxu0 %v3464
        %3527 = vmatmul.f32.gmra.mxu0 %v3416
        %v3528 = vpop.f32.mrf.mxu0
        %v3529 = vadd.f32 0.0, %v3528
        %3530 = vmatmul.f32.gmra.mxu0 %v3419
        %v3531 = vpop.f32.mrf.mxu0
        %v3532 = vadd.f32 0.0, %v3531
        %3533 = vmatmul.f32.gmra.mxu0 %v3422
        %v3534 = vpop.f32.mrf.mxu0
        %v3535 = vadd.f32 0.0, %v3534
        %3536 = vmatmul.f32.gmra.mxu0 %v3425
        %v3537 = vpop.f32.mrf.mxu0
        %v3538 = vadd.f32 0.0, %v3537
        %3539 = vmatmul.f32.gmra.mxu0 %v3428
        %v3540 = vpop.f32.mrf.mxu0
        %v3541 = vadd.f32 0.0, %v3540
        %3542 = vmatmul.f32.gmra.mxu0 %v3431
        %v3543 = vpop.f32.mrf.mxu0
        %v3544 = vadd.f32 0.0, %v3543
        %3545 = vmatmul.f32.gmra.mxu0 %v3434
        %v3546 = vpop.f32.mrf.mxu0
        %v3547 = vadd.f32 0.0, %v3546
        %3548 = vmatmul.f32.gmra.mxu0 %v3437
        %v3549 = vpop.f32.mrf.mxu0
        %v3550 = vadd.f32 0.0, %v3549
        %3551 = vmatmul.f32.gmra.mxu0 %v3440
        %v3552 = vpop.f32.mrf.mxu0
        %v3553 = vadd.f32 0.0, %v3552
        %3554 = vmatmul.f32.gmra.mxu0 %v3443
        %v3555 = vpop.f32.mrf.mxu0
        %v3556 = vadd.f32 0.0, %v3555
        %3557 = vmatmul.f32.gmra.mxu0 %v3446
        %v3558 = vpop.f32.mrf.mxu0
        %v3559 = vadd.f32 0.0, %v3558
        %3560 = vmatmul.f32.gmra.mxu0 %v3449
        %v3561 = vpop.f32.mrf.mxu0
        %v3562 = vadd.f32 0.0, %v3561
        %3563 = vmatmul.f32.gmra.mxu0 %v3452
        %v3564 = vpop.f32.mrf.mxu0
        %v3565 = vadd.f32 0.0, %v3564
        %3566 = vmatmul.f32.gmra.mxu0 %v3455
        %v3567 = vpop.f32.mrf.mxu0
        %v3568 = vadd.f32 0.0, %v3567
        %3569 = vmatmul.f32.gmra.mxu0 %v3458
        %v3570 = vpop.f32.mrf.mxu0
        %v3571 = vadd.f32 0.0, %v3570
        %3572 = vmatmul.f32.gmra.mxu0 %v3461
        %v3573 = vpop.f32.mrf.mxu0
        %v3574 = vadd.f32 0.0, %v3573
        %3575 = vdwg.mxu0
        %3576 = vmax.xlane.f32.xlu0 %v3529
        %v3577 = vpop.xlane.xlu0 %3576
        %3578 = vmax.xlane.f32.xlu0 %v3532
        %v3579 = vpop.xlane.xlu0 %3578
        %3580 = vmax.xlane.f32.xlu0 %v3535
        %v3581 = vpop.xlane.xlu0 %3580
        %3582 = vmax.xlane.f32.xlu0 %v3538
        %v3583 = vpop.xlane.xlu0 %3582
        %3584 = vmax.xlane.f32.xlu0 %v3541
        %v3585 = vpop.xlane.xlu0 %3584
        %3586 = vmax.xlane.f32.xlu0 %v3544
        %v3587 = vpop.xlane.xlu0 %3586
        %3588 = vmax.xlane.f32.xlu0 %v3547
        %v3589 = vpop.xlane.xlu0 %3588
        %3590 = vmax.xlane.f32.xlu0 %v3550
        %v3591 = vpop.xlane.xlu0 %3590
        %3592 = vmax.xlane.f32.xlu0 %v3553
        %v3593 = vpop.xlane.xlu0 %3592
        %3594 = vmax.xlane.f32.xlu0 %v3556
        %v3595 = vpop.xlane.xlu0 %3594
        %3596 = vmax.xlane.f32.xlu0 %v3559
        %v3597 = vpop.xlane.xlu0 %3596
        %3598 = vmax.xlane.f32.xlu0 %v3562
        %v3599 = vpop.xlane.xlu0 %3598
        %3600 = vmax.xlane.f32.xlu0 %v3565
        %v3601 = vpop.xlane.xlu0 %3600
        %3602 = vmax.xlane.f32.xlu0 %v3568
        %v3603 = vpop.xlane.xlu0 %3602
        %3604 = vmax.xlane.f32.xlu0 %v3571
        %v3605 = vpop.xlane.xlu0 %3604
        %3606 = vmax.xlane.f32.xlu0 %v3574
        %v3607 = vpop.xlane.xlu0 %3606
        %v3608 = vsub.f32 %v3529, %v3577
        %v3609 = vsub.f32 %v3532, %v3579
        %v3610 = vsub.f32 %v3535, %v3581
        %v3611 = vsub.f32 %v3538, %v3583
        %v3612 = vsub.f32 %v3541, %v3585
        %v3613 = vsub.f32 %v3544, %v3587
        %v3614 = vsub.f32 %v3547, %v3589
        %v3615 = vsub.f32 %v3550, %v3591
        %v3616 = vsub.f32 %v3553, %v3593
        %v3617 = vsub.f32 %v3556, %v3595
        %v3618 = vsub.f32 %v3559, %v3597
        %v3619 = vsub.f32 %v3562, %v3599
        %v3620 = vsub.f32 %v3565, %v3601
        %v3621 = vsub.f32 %v3568, %v3603
        %v3622 = vsub.f32 %v3571, %v3605
        %v3623 = vsub.f32 %v3574, %v3607
        %v3624 = vmul.f32 %v3608, 1.442695
        %v3625 = vpow.pop %v3624
        %v3626 = vmul.f32 %v3609, 1.442695
        %v3627 = vpow.pop %v3626
        %v3628 = vmul.f32 %v3610, 1.442695
        %v3629 = vpow.pop %v3628
        %v3630 = vmul.f32 %v3611, 1.442695
        %v3631 = vpow.pop %v3630
        %v3632 = vmul.f32 %v3612, 1.442695
        %v3633 = vpow.pop %v3632
        %v3634 = vmul.f32 %v3613, 1.442695
        %v3635 = vpow.pop %v3634
        %v3636 = vmul.f32 %v3614, 1.442695
        %v3637 = vpow.pop %v3636
        %v3638 = vmul.f32 %v3615, 1.442695
        %v3639 = vpow.pop %v3638
        %v3640 = vmul.f32 %v3616, 1.442695
        %v3641 = vpow.pop %v3640
        %v3642 = vmul.f32 %v3617, 1.442695
        %v3643 = vpow.pop %v3642
        %v3644 = vmul.f32 %v3618, 1.442695
        %v3645 = vpow.pop %v3644
        %v3646 = vmul.f32 %v3619, 1.442695
        %v3647 = vpow.pop %v3646
        %v3648 = vmul.f32 %v3620, 1.442695
        %v3649 = vpow.pop %v3648
        %v3650 = vmul.f32 %v3621, 1.442695
        %v3651 = vpow.pop %v3650
        %v3652 = vmul.f32 %v3622, 1.442695
        %v3653 = vpow.pop %v3652
        %v3654 = vmul.f32 %v3623, 1.442695
        %v3655 = vpow.pop %v3654
        %3656 = vadd.xlane.f32.xlu0 %v3625
        %v3657 = vpop.xlane.xlu0 %3656
        %3658 = vadd.xlane.f32.xlu0 %v3627
        %v3659 = vpop.xlane.xlu0 %3658
        %3660 = vadd.xlane.f32.xlu0 %v3629
        %v3661 = vpop.xlane.xlu0 %3660
        %3662 = vadd.xlane.f32.xlu0 %v3631
        %v3663 = vpop.xlane.xlu0 %3662
        %3664 = vadd.xlane.f32.xlu0 %v3633
        %v3665 = vpop.xlane.xlu0 %3664
        %3666 = vadd.xlane.f32.xlu0 %v3635
        %v3667 = vpop.xlane.xlu0 %3666
        %3668 = vadd.xlane.f32.xlu0 %v3637
        %v3669 = vpop.xlane.xlu0 %3668
        %3670 = vadd.xlane.f32.xlu0 %v3639
        %v3671 = vpop.xlane.xlu0 %3670
        %3672 = vadd.xlane.f32.xlu0 %v3641
        %v3673 = vpop.xlane.xlu0 %3672
        %3674 = vadd.xlane.f32.xlu0 %v3643
        %v3675 = vpop.xlane.xlu0 %3674
        %3676 = vadd.xlane.f32.xlu0 %v3645
        %v3677 = vpop.xlane.xlu0 %3676
        %3678 = vadd.xlane.f32.xlu0 %v3647
        %v3679 = vpop.xlane.xlu0 %3678
        %3680 = vadd.xlane.f32.xlu0 %v3649
        %v3681 = vpop.xlane.xlu0 %3680
        %3682 = vadd.xlane.f32.xlu0 %v3651
        %v3683 = vpop.xlane.xlu0 %3682
        %3684 = vadd.xlane.f32.xlu0 %v3653
        %v3685 = vpop.xlane.xlu0 %3684
        %3686 = vadd.xlane.f32.xlu0 %v3655
        %v3687 = vpop.xlane.xlu0 %3686
        %v3688 = vrcp.pop %v3657
        %v3689 = vmul.f32 %v3657, %v3688
        %v3690 = vsub.f32 1.0, %v3689
        %v3691 = vmul.f32 %v3688, %v3690
        %v3692 = vadd.f32 %v3688, %v3691
        %vm3693 = vweird.f32 %v3657
        %vm3694 = vweird.f32 %v3688
        %vm3695 = vmor %vm3693, %vm3694
        %v3696 = vsel %vm3695, %v3688, %v3692
        %v3697 = vand.u32 2147483647, %v3657
        %vm3698 = vcmp.eq.f32.partialorder %v3697, 8.507059e+37
        %v3699 = vand.u32 %v3657, 2147483648
        %v3700 = vor.u32 1.1754944e-38, %v3699
        %v3701 = vsel %vm3698, %v3700, %v3696
        %v3702 = vmul.f32 %v3625, %v3701
        %v3703 = vrcp.pop %v3659
        %v3704 = vmul.f32 %v3659, %v3703
        %v3705 = vsub.f32 1.0, %v3704
        %v3706 = vmul.f32 %v3703, %v3705
        %v3707 = vadd.f32 %v3703, %v3706
        %vm3708 = vweird.f32 %v3659
        %vm3709 = vweird.f32 %v3703
        %vm3710 = vmor %vm3708, %vm3709
        %v3711 = vsel %vm3710, %v3703, %v3707
        %v3712 = vand.u32 2147483647, %v3659
        %vm3713 = vcmp.eq.f32.partialorder %v3712, 8.507059e+37
        %v3714 = vand.u32 %v3659, 2147483648
        %v3715 = vor.u32 1.1754944e-38, %v3714
        %v3716 = vsel %vm3713, %v3715, %v3711
        %v3717 = vmul.f32 %v3627, %v3716
        %v3718 = vrcp.pop %v3661
        %v3719 = vmul.f32 %v3661, %v3718
        %v3720 = vsub.f32 1.0, %v3719
        %v3721 = vmul.f32 %v3718, %v3720
        %v3722 = vadd.f32 %v3718, %v3721
        %vm3723 = vweird.f32 %v3661
        %vm3724 = vweird.f32 %v3718
        %vm3725 = vmor %vm3723, %vm3724
        %v3726 = vsel %vm3725, %v3718, %v3722
        %v3727 = vand.u32 2147483647, %v3661
        %vm3728 = vcmp.eq.f32.partialorder %v3727, 8.507059e+37
        %v3729 = vand.u32 %v3661, 2147483648
        %v3730 = vor.u32 1.1754944e-38, %v3729
        %v3731 = vsel %vm3728, %v3730, %v3726
        %v3732 = vmul.f32 %v3629, %v3731
        %v3733 = vrcp.pop %v3663
        %v3734 = vmul.f32 %v3663, %v3733
        %v3735 = vsub.f32 1.0, %v3734
        %v3736 = vmul.f32 %v3733, %v3735
        %v3737 = vadd.f32 %v3733, %v3736
        %vm3738 = vweird.f32 %v3663
        %vm3739 = vweird.f32 %v3733
        %vm3740 = vmor %vm3738, %vm3739
        %v3741 = vsel %vm3740, %v3733, %v3737
        %v3742 = vand.u32 2147483647, %v3663
        %vm3743 = vcmp.eq.f32.partialorder %v3742, 8.507059e+37
        %v3744 = vand.u32 %v3663, 2147483648
        %v3745 = vor.u32 1.1754944e-38, %v3744
        %v3746 = vsel %vm3743, %v3745, %v3741
        %v3747 = vmul.f32 %v3631, %v3746
        %v3748 = vrcp.pop %v3665
        %v3749 = vmul.f32 %v3665, %v3748
        %v3750 = vsub.f32 1.0, %v3749
        %v3751 = vmul.f32 %v3748, %v3750
        %v3752 = vadd.f32 %v3748, %v3751
        %vm3753 = vweird.f32 %v3665
        %vm3754 = vweird.f32 %v3748
        %vm3755 = vmor %vm3753, %vm3754
        %v3756 = vsel %vm3755, %v3748, %v3752
        %v3757 = vand.u32 2147483647, %v3665
        %vm3758 = vcmp.eq.f32.partialorder %v3757, 8.507059e+37
        %v3759 = vand.u32 %v3665, 2147483648
        %v3760 = vor.u32 1.1754944e-38, %v3759
        %v3761 = vsel %vm3758, %v3760, %v3756
        %v3762 = vmul.f32 %v3633, %v3761
        %v3763 = vrcp.pop %v3667
        %v3764 = vmul.f32 %v3667, %v3763
        %v3765 = vsub.f32 1.0, %v3764
        %v3766 = vmul.f32 %v3763, %v3765
        %v3767 = vadd.f32 %v3763, %v3766
        %vm3768 = vweird.f32 %v3667
        %vm3769 = vweird.f32 %v3763
        %vm3770 = vmor %vm3768, %vm3769
        %v3771 = vsel %vm3770, %v3763, %v3767
        %v3772 = vand.u32 2147483647, %v3667
        %vm3773 = vcmp.eq.f32.partialorder %v3772, 8.507059e+37
        %v3774 = vand.u32 %v3667, 2147483648
        %v3775 = vor.u32 1.1754944e-38, %v3774
        %v3776 = vsel %vm3773, %v3775, %v3771
        %v3777 = vmul.f32 %v3635, %v3776
        %v3778 = vrcp.pop %v3669
        %v3779 = vmul.f32 %v3669, %v3778
        %v3780 = vsub.f32 1.0, %v3779
        %v3781 = vmul.f32 %v3778, %v3780
        %v3782 = vadd.f32 %v3778, %v3781
        %vm3783 = vweird.f32 %v3669
        %vm3784 = vweird.f32 %v3778
        %vm3785 = vmor %vm3783, %vm3784
        %v3786 = vsel %vm3785, %v3778, %v3782
        %v3787 = vand.u32 2147483647, %v3669
        %vm3788 = vcmp.eq.f32.partialorder %v3787, 8.507059e+37
        %v3789 = vand.u32 %v3669, 2147483648
        %v3790 = vor.u32 1.1754944e-38, %v3789
        %v3791 = vsel %vm3788, %v3790, %v3786
        %v3792 = vmul.f32 %v3637, %v3791
        %v3793 = vrcp.pop %v3671
        %v3794 = vmul.f32 %v3671, %v3793
        %v3795 = vsub.f32 1.0, %v3794
        %v3796 = vmul.f32 %v3793, %v3795
        %v3797 = vadd.f32 %v3793, %v3796
        %vm3798 = vweird.f32 %v3671
        %vm3799 = vweird.f32 %v3793
        %vm3800 = vmor %vm3798, %vm3799
        %v3801 = vsel %vm3800, %v3793, %v3797
        %v3802 = vand.u32 2147483647, %v3671
        %vm3803 = vcmp.eq.f32.partialorder %v3802, 8.507059e+37
        %v3804 = vand.u32 %v3671, 2147483648
        %v3805 = vor.u32 1.1754944e-38, %v3804
        %v3806 = vsel %vm3803, %v3805, %v3801
        %v3807 = vmul.f32 %v3639, %v3806
        %v3808 = vrcp.pop %v3673
        %v3809 = vmul.f32 %v3673, %v3808
        %v3810 = vsub.f32 1.0, %v3809
        %v3811 = vmul.f32 %v3808, %v3810
        %v3812 = vadd.f32 %v3808, %v3811
        %vm3813 = vweird.f32 %v3673
        %vm3814 = vweird.f32 %v3808
        %vm3815 = vmor %vm3813, %vm3814
        %v3816 = vsel %vm3815, %v3808, %v3812
        %v3817 = vand.u32 2147483647, %v3673
        %vm3818 = vcmp.eq.f32.partialorder %v3817, 8.507059e+37
        %v3819 = vand.u32 %v3673, 2147483648
        %v3820 = vor.u32 1.1754944e-38, %v3819
        %v3821 = vsel %vm3818, %v3820, %v3816
        %v3822 = vmul.f32 %v3641, %v3821
        %v3823 = vrcp.pop %v3675
        %v3824 = vmul.f32 %v3675, %v3823
        %v3825 = vsub.f32 1.0, %v3824
        %v3826 = vmul.f32 %v3823, %v3825
        %v3827 = vadd.f32 %v3823, %v3826
        %vm3828 = vweird.f32 %v3675
        %vm3829 = vweird.f32 %v3823
        %vm3830 = vmor %vm3828, %vm3829
        %v3831 = vsel %vm3830, %v3823, %v3827
        %v3832 = vand.u32 2147483647, %v3675
        %vm3833 = vcmp.eq.f32.partialorder %v3832, 8.507059e+37
        %v3834 = vand.u32 %v3675, 2147483648
        %v3835 = vor.u32 1.1754944e-38, %v3834
        %v3836 = vsel %vm3833, %v3835, %v3831
        %v3837 = vmul.f32 %v3643, %v3836
        %v3838 = vrcp.pop %v3677
        %v3839 = vmul.f32 %v3677, %v3838
        %v3840 = vsub.f32 1.0, %v3839
        %v3841 = vmul.f32 %v3838, %v3840
        %v3842 = vadd.f32 %v3838, %v3841
        %vm3843 = vweird.f32 %v3677
        %vm3844 = vweird.f32 %v3838
        %vm3845 = vmor %vm3843, %vm3844
        %v3846 = vsel %vm3845, %v3838, %v3842
        %v3847 = vand.u32 2147483647, %v3677
        %vm3848 = vcmp.eq.f32.partialorder %v3847, 8.507059e+37
        %v3849 = vand.u32 %v3677, 2147483648
        %v3850 = vor.u32 1.1754944e-38, %v3849
        %v3851 = vsel %vm3848, %v3850, %v3846
        %v3852 = vmul.f32 %v3645, %v3851
        %v3853 = vrcp.pop %v3679
        %v3854 = vmul.f32 %v3679, %v3853
        %v3855 = vsub.f32 1.0, %v3854
        %v3856 = vmul.f32 %v3853, %v3855
        %v3857 = vadd.f32 %v3853, %v3856
        %vm3858 = vweird.f32 %v3679
        %vm3859 = vweird.f32 %v3853
        %vm3860 = vmor %vm3858, %vm3859
        %v3861 = vsel %vm3860, %v3853, %v3857
        %v3862 = vand.u32 2147483647, %v3679
        %vm3863 = vcmp.eq.f32.partialorder %v3862, 8.507059e+37
        %v3864 = vand.u32 %v3679, 2147483648
        %v3865 = vor.u32 1.1754944e-38, %v3864
        %v3866 = vsel %vm3863, %v3865, %v3861
        %v3867 = vmul.f32 %v3647, %v3866
        %v3868 = vrcp.pop %v3681
        %v3869 = vmul.f32 %v3681, %v3868
        %v3870 = vsub.f32 1.0, %v3869
        %v3871 = vmul.f32 %v3868, %v3870
        %v3872 = vadd.f32 %v3868, %v3871
        %vm3873 = vweird.f32 %v3681
        %vm3874 = vweird.f32 %v3868
        %vm3875 = vmor %vm3873, %vm3874
        %v3876 = vsel %vm3875, %v3868, %v3872
        %v3877 = vand.u32 2147483647, %v3681
        %vm3878 = vcmp.eq.f32.partialorder %v3877, 8.507059e+37
        %v3879 = vand.u32 %v3681, 2147483648
        %v3880 = vor.u32 1.1754944e-38, %v3879
        %v3881 = vsel %vm3878, %v3880, %v3876
        %v3882 = vmul.f32 %v3649, %v3881
        %v3883 = vrcp.pop %v3683
        %v3884 = vmul.f32 %v3683, %v3883
        %v3885 = vsub.f32 1.0, %v3884
        %v3886 = vmul.f32 %v3883, %v3885
        %v3887 = vadd.f32 %v3883, %v3886
        %vm3888 = vweird.f32 %v3683
        %vm3889 = vweird.f32 %v3883
        %vm3890 = vmor %vm3888, %vm3889
        %v3891 = vsel %vm3890, %v3883, %v3887
        %v3892 = vand.u32 2147483647, %v3683
        %vm3893 = vcmp.eq.f32.partialorder %v3892, 8.507059e+37
        %v3894 = vand.u32 %v3683, 2147483648
        %v3895 = vor.u32 1.1754944e-38, %v3894
        %v3896 = vsel %vm3893, %v3895, %v3891
        %v3897 = vmul.f32 %v3651, %v3896
        %v3898 = vrcp.pop %v3685
        %v3899 = vmul.f32 %v3685, %v3898
        %v3900 = vsub.f32 1.0, %v3899
        %v3901 = vmul.f32 %v3898, %v3900
        %v3902 = vadd.f32 %v3898, %v3901
        %vm3903 = vweird.f32 %v3685
        %vm3904 = vweird.f32 %v3898
        %vm3905 = vmor %vm3903, %vm3904
        %v3906 = vsel %vm3905, %v3898, %v3902
        %v3907 = vand.u32 2147483647, %v3685
        %vm3908 = vcmp.eq.f32.partialorder %v3907, 8.507059e+37
        %v3909 = vand.u32 %v3685, 2147483648
        %v3910 = vor.u32 1.1754944e-38, %v3909
        %v3911 = vsel %vm3908, %v3910, %v3906
        %v3912 = vmul.f32 %v3653, %v3911
        %v3913 = vrcp.pop %v3687
        %v3914 = vmul.f32 %v3687, %v3913
        %v3915 = vsub.f32 1.0, %v3914
        %v3916 = vmul.f32 %v3913, %v3915
        %v3917 = vadd.f32 %v3913, %v3916
        %vm3918 = vweird.f32 %v3687
        %vm3919 = vweird.f32 %v3913
        %vm3920 = vmor %vm3918, %vm3919
        %v3921 = vsel %vm3920, %v3913, %v3917
        %v3922 = vand.u32 2147483647, %v3687
        %vm3923 = vcmp.eq.f32.partialorder %v3922, 8.507059e+37
        %v3924 = vand.u32 %v3687, 2147483648
        %v3925 = vor.u32 1.1754944e-38, %v3924
        %v3926 = vsel %vm3923, %v3925, %v3921
        %v3927 = vmul.f32 %v3655, %v3926
        %3928 = vmatpush.msra.mxu0 %v3413
        %3929 = vmatpush.msra.mxu0 %v3410
        %3930 = vmatpush.msra.mxu0 %v3407
        %3931 = vmatpush.msra.mxu0 %v3404
        %3932 = vmatpush.msra.mxu0 %v3401
        %3933 = vmatpush.msra.mxu0 %v3398
        %3934 = vmatpush.msra.mxu0 %v3395
        %3935 = vmatpush.msra.mxu0 %v3392
        %3936 = vmatpush.msra.mxu0 %v3389
        %3937 = vmatpush.msra.mxu0 %v3386
        %3938 = vmatpush.msra.mxu0 %v3383
        %3939 = vmatpush.msra.mxu0 %v3380
        %3940 = vmatpush.msra.mxu0 %v3377
        %3941 = vmatpush.msra.mxu0 %v3374
        %3942 = vmatpush.msra.mxu0 %v3371
        %3943 = vmatpush.msra.mxu0 %v3368
        %3944 = vmatmul.f32.gmra.mxu0 %v3702
        %v3945 = vpop.f32.mrf.mxu0
        %v3946 = vadd.f32 0.0, %v3945
        %3947 = vmatmul.f32.gmra.mxu0 %v3717
        %v3948 = vpop.f32.mrf.mxu0
        %v3949 = vadd.f32 0.0, %v3948
        %3950 = vmatmul.f32.gmra.mxu0 %v3732
        %v3951 = vpop.f32.mrf.mxu0
        %v3952 = vadd.f32 0.0, %v3951
        %3953 = vmatmul.f32.gmra.mxu0 %v3747
        %v3954 = vpop.f32.mrf.mxu0
        %v3955 = vadd.f32 0.0, %v3954
        %3956 = vmatmul.f32.gmra.mxu0 %v3762
        %v3957 = vpop.f32.mrf.mxu0
        %v3958 = vadd.f32 0.0, %v3957
        %3959 = vmatmul.f32.gmra.mxu0 %v3777
        %v3960 = vpop.f32.mrf.mxu0
        %v3961 = vadd.f32 0.0, %v3960
        %3962 = vmatmul.f32.gmra.mxu0 %v3792
        %v3963 = vpop.f32.mrf.mxu0
        %v3964 = vadd.f32 0.0, %v3963
        %3965 = vmatmul.f32.gmra.mxu0 %v3807
        %v3966 = vpop.f32.mrf.mxu0
        %v3967 = vadd.f32 0.0, %v3966
        %3968 = vmatmul.f32.gmra.mxu0 %v3822
        %v3969 = vpop.f32.mrf.mxu0
        %v3970 = vadd.f32 0.0, %v3969
        %3971 = vmatmul.f32.gmra.mxu0 %v3837
        %v3972 = vpop.f32.mrf.mxu0
        %v3973 = vadd.f32 0.0, %v3972
        %3974 = vmatmul.f32.gmra.mxu0 %v3852
        %v3975 = vpop.f32.mrf.mxu0
        %v3976 = vadd.f32 0.0, %v3975
        %3977 = vmatmul.f32.gmra.mxu0 %v3867
        %v3978 = vpop.f32.mrf.mxu0
        %v3979 = vadd.f32 0.0, %v3978
        %3980 = vmatmul.f32.gmra.mxu0 %v3882
        %v3981 = vpop.f32.mrf.mxu0
        %v3982 = vadd.f32 0.0, %v3981
        %3983 = vmatmul.f32.gmra.mxu0 %v3897
        %v3984 = vpop.f32.mrf.mxu0
        %v3985 = vadd.f32 0.0, %v3984
        %3986 = vmatmul.f32.gmra.mxu0 %v3912
        %v3987 = vpop.f32.mrf.mxu0
        %v3988 = vadd.f32 0.0, %v3987
        %3989 = vmatmul.f32.gmra.mxu0 %v3927
        %v3990 = vpop.f32.mrf.mxu0
        %v3991 = vadd.f32 0.0, %v3990
        %3992 = vdwg.mxu0
        %s3993 = scalar_lea.vmem %s4, 96
        %v3994 = vld [vmem:[%s3993] sm:$0xff]
        %v3995 = vld [vmem:[%s3993 + $0x8] sm:$0xff]
        %v3996 = vld [vmem:[%s3993 + $0x10] sm:$0xff]
        %v3997 = vld [vmem:[%s3993 + $0x18] sm:$0xff]
        %v3999 = vsel %vm525, %v3946, 0
        %v4002 = vsel %vm525, %v3949, 0
        %v4005 = vsel %vm525, %v3952, 0
        %v4008 = vsel %vm525, %v3955, 0
        %v4011 = vsel %vm525, %v3958, 0
        %v4014 = vsel %vm525, %v3961, 0
        %v4017 = vsel %vm525, %v3964, 0
        %v4020 = vsel %vm525, %v3967, 0
        %v4023 = vsel %vm525, %v3970, 0
        %v4026 = vsel %vm525, %v3973, 0
        %v4029 = vsel %vm525, %v3976, 0
        %v4032 = vsel %vm525, %v3979, 0
        %v4035 = vsel %vm525, %v3982, 0
        %v4038 = vsel %vm525, %v3985, 0
        %v4041 = vsel %vm525, %v3988, 0
        %v4044 = vsel %vm525, %v3991, 0
        %4046 = vmatpush.msra.mxu0 0.0
        %4047 = vmatpush.msra.mxu0 0.0
        %4048 = vmatpush.msra.mxu0 0.0
        %4049 = vmatpush.msra.mxu0 0.0
        %4050 = vmatpush.msra.mxu0 0.0
        %4051 = vmatpush.msra.mxu0 0.0
        %4052 = vmatpush.msra.mxu0 0.0
        %4053 = vmatpush.msra.mxu0 0.0
        %4054 = vmatpush.msra.mxu0 0.0
        %4055 = vmatpush.msra.mxu0 0.0
        %4056 = vmatpush.msra.mxu0 0.0
        %4057 = vmatpush.msra.mxu0 0.0
        %4058 = vmatpush.msra.mxu0 %v3997
        %4059 = vmatpush.msra.mxu0 %v3996
        %4060 = vmatpush.msra.mxu0 %v3995
        %4061 = vmatpush.msra.mxu0 %v3994
        %4062 = vmatmul.f32.gmra.mxu0 %v3999
        %v4063 = vpop.f32.mrf.mxu0
        %v4064 = vadd.f32 0.0, %v4063
        %4065 = vmatmul.f32.gmra.mxu0 %v4002
        %v4066 = vpop.f32.mrf.mxu0
        %v4067 = vadd.f32 0.0, %v4066
        %4068 = vmatmul.f32.gmra.mxu0 %v4005
        %v4069 = vpop.f32.mrf.mxu0
        %v4070 = vadd.f32 0.0, %v4069
        %4071 = vmatmul.f32.gmra.mxu0 %v4008
        %v4072 = vpop.f32.mrf.mxu0
        %v4073 = vadd.f32 0.0, %v4072
        %4074 = vmatmul.f32.gmra.mxu0 %v4011
        %v4075 = vpop.f32.mrf.mxu0
        %v4076 = vadd.f32 0.0, %v4075
        %4077 = vmatmul.f32.gmra.mxu0 %v4014
        %v4078 = vpop.f32.mrf.mxu0
        %v4079 = vadd.f32 0.0, %v4078
        %4080 = vmatmul.f32.gmra.mxu0 %v4017
        %v4081 = vpop.f32.mrf.mxu0
        %v4082 = vadd.f32 0.0, %v4081
        %4083 = vmatmul.f32.gmra.mxu0 %v4020
        %v4084 = vpop.f32.mrf.mxu0
        %v4085 = vadd.f32 0.0, %v4084
        %4086 = vmatmul.f32.gmra.mxu0 %v4023
        %v4087 = vpop.f32.mrf.mxu0
        %v4088 = vadd.f32 0.0, %v4087
        %4089 = vmatmul.f32.gmra.mxu0 %v4026
        %v4090 = vpop.f32.mrf.mxu0
        %v4091 = vadd.f32 0.0, %v4090
        %4092 = vmatmul.f32.gmra.mxu0 %v4029
        %v4093 = vpop.f32.mrf.mxu0
        %v4094 = vadd.f32 0.0, %v4093
        %4095 = vmatmul.f32.gmra.mxu0 %v4032
        %v4096 = vpop.f32.mrf.mxu0
        %v4097 = vadd.f32 0.0, %v4096
        %4098 = vmatmul.f32.gmra.mxu0 %v4035
        %v4099 = vpop.f32.mrf.mxu0
        %v4100 = vadd.f32 0.0, %v4099
        %4101 = vmatmul.f32.gmra.mxu0 %v4038
        %v4102 = vpop.f32.mrf.mxu0
        %v4103 = vadd.f32 0.0, %v4102
        %4104 = vmatmul.f32.gmra.mxu0 %v4041
        %v4105 = vpop.f32.mrf.mxu0
        %v4106 = vadd.f32 0.0, %v4105
        %4107 = vmatmul.f32.gmra.mxu0 %v4044
        %v4108 = vpop.f32.mrf.mxu0
        %v4109 = vadd.f32 0.0, %v4108
        %4110 = vdwg.mxu0
        %v4111 = vadd.f32 %v3137, %v4064
        %v4112 = vadd.f32 %v3138, %v4067
        %v4113 = vadd.f32 %v3139, %v4070
        %v4114 = vadd.f32 %v3140, %v4073
        %v4115 = vadd.f32 %v3141, %v4076
        %v4116 = vadd.f32 %v3142, %v4079
        %v4117 = vadd.f32 %v3143, %v4082
        %v4118 = vadd.f32 %v3144, %v4085
        %v4119 = vadd.f32 %v3145, %v4088
        %v4120 = vadd.f32 %v3146, %v4091
        %v4121 = vadd.f32 %v3147, %v4094
        %v4122 = vadd.f32 %v3148, %v4097
        %v4123 = vadd.f32 %v3149, %v4100
        %v4124 = vadd.f32 %v3150, %v4103
        %v4125 = vadd.f32 %v3151, %v4106
        %v4126 = vadd.f32 %v3152, %v4109
        %v4127 = vld [vmem:[%s5] sm:$0x1]
        %v4129 = vperm.slane %v4127, 0
        %v4131 = vadd.f32 %v4111, %v4129
        %v4132 = vadd.f32 %v4112, %v4129
        %v4133 = vadd.f32 %v4113, %v4129
        %v4134 = vadd.f32 %v4114, %v4129
        %v4135 = vadd.f32 %v4115, %v4129
        %v4136 = vadd.f32 %v4116, %v4129
        %v4137 = vadd.f32 %v4117, %v4129
        %v4138 = vadd.f32 %v4118, %v4129
        %v4139 = vadd.f32 %v4119, %v4129
        %v4140 = vadd.f32 %v4120, %v4129
        %v4141 = vadd.f32 %v4121, %v4129
        %v4142 = vadd.f32 %v4122, %v4129
        %v4143 = vadd.f32 %v4123, %v4129
        %v4144 = vadd.f32 %v4124, %v4129
        %v4145 = vadd.f32 %v4125, %v4129
        %v4146 = vadd.f32 %v4126, %v4129
        %4147 = vst [vmem:[%s244] sm:$0xff] %v4131
        %4148 = vst [vmem:[%s244 + $0x8] sm:$0xff] %v4132
        %4149 = vst [vmem:[%s244 + $0x10] sm:$0xff] %v4133
        %4150 = vst [vmem:[%s244 + $0x18] sm:$0xff] %v4134
        %4151 = vst [vmem:[%s244 + $0x20] sm:$0xff] %v4135
        %4152 = vst [vmem:[%s244 + $0x28] sm:$0xff] %v4136
        %4153 = vst [vmem:[%s244 + $0x30] sm:$0xff] %v4137
        %4154 = vst [vmem:[%s244 + $0x38] sm:$0xff] %v4138
        %4155 = vst [vmem:[%s244 + $0x40] sm:$0xff] %v4139
        %4156 = vst [vmem:[%s244 + $0x48] sm:$0xff] %v4140
        %4157 = vst [vmem:[%s244 + $0x50] sm:$0xff] %v4141
        %4158 = vst [vmem:[%s244 + $0x58] sm:$0xff] %v4142
        %4159 = vst [vmem:[%s244 + $0x60] sm:$0xff] %v4143
        %4160 = vst [vmem:[%s244 + $0x68] sm:$0xff] %v4144
        %4161 = vst [vmem:[%s244 + $0x70] sm:$0xff] %v4145
        %4162 = vst [vmem:[%s244 + $0x78] sm:$0xff] %v4146
        %s4163 = sand.u32 %s159, 1
        %s4164 = scalar_lea.sflag [#allocation3], %s4163
        %s4165 = sand.u32 %s159, 1
        %s4166 = smul.addr %s4165, 128
        %s4167 = scalar_lea.vmem [#allocation2], %s4166
        // Predicated region
        $region45: #{tpu_custom_call.1} parent=43 // pred_check
          %p4168 = pneg %p169
        $region46: #{tpu_custom_call.1} parent=43 // pred_check_branch
          %4170 = sbr.rel (%p4168) target = $region48
        $region47: #{tpu_custom_call.1} parent=43 // pred_region
          %4172 = vsyncadd %s4164, 0
          %s4173 = smul.addr %s20, 16
          %s4174 = smul.addr %s4173, 8
          %s4175 = scalar_lea.hbm %s6, %s4174
          %s4176 = sshll.u32 %s4167, 4
          %s4177 = int_to_ptr.vmem [resolvable:$true] %s4176
          %s4178 = sshll.u32 %s4175, 4
          %s4179 = int_to_ptr.hbm [resolvable:$true] %s4178
          %4184 = dma.vmem_to_hbm [thread:$0]  %s4177, 2048, %s4179, %s4164, 128, 128, 8
        $region48: #{tpu_custom_call.1} parent=43 // pred_fallthru
          _
      $region44: #{tpu_custom_call.1} parent=5 // pred_fallthru
        _
      %p4185 = scmp.le.s32.totalorder 2, %s15
      // Predicated region
      $region49: #{tpu_custom_call.1} parent=5 // pred_check
        %p4186 = pneg %p4185
      $region50: #{tpu_custom_call.1} parent=5 // pred_check_branch
        %4188 = sbr.rel (%p4186) target = $region52
      $region51: #{tpu_custom_call.1} parent=5 // pred_region
        %s4189 = ssub.s32 %s15, 2
        // Predicated region
        $region53: #{tpu_custom_call.1} parent=51 // pred_check
          %p4190 = pneg %p175
        $region54: #{tpu_custom_call.1} parent=51 // pred_check_branch
          %4192 = sbr.rel (%p4190) target = $region56
        $region55: #{tpu_custom_call.1} parent=51 // pred_region
          %s4193 = sand.u32 %s160, 1
          %s4194 = scalar_lea.sflag [#allocation3], %s4193
          %s4195 = sand.u32 %s160, 1
          %s4196 = smul.addr %s4195, 128
          %s4197 = scalar_lea.vmem [#allocation2], %s4196
          %4199 = dma.done %s4194, 2048
        $region56: #{tpu_custom_call.1} parent=51 // pred_fallthru
          _
      $region52: #{tpu_custom_call.1} parent=5 // pred_fallthru
        _
    $region6: #{tpu_custom_call.1} parent=1 // loop_footer
      %s19 = sadd.s32 1, %s15
    $region7: #{tpu_custom_call.1} parent=1 // loop_footer_branch
      %14 = sbr.rel target = $region3
    $region8: #{tpu_custom_call.1} parent=1 // loop_exit
      _
    %4200 = vsyncpa [#allocation3], 1
    %s4201 = scalar_lea.sflag [#allocation3], 1
    %4202 = vsyncpa %s4201, 1

</llo_original>
